<compile_context>
chip_gen: v7x
topology: tpu7x:2x2x1
jax: 0.10.0
libtpu: 0.0.40
codegen_flags: <defaults>
</compile_context>

<pallas_src>
import functools

import jax
import jax.numpy as jnp
from jax.experimental import pallas as pl
from jax.experimental.pallas import tpu as pltpu


# ----------------------------------------------------------------------------
# Fused Pallas kernel: im2col (in VMEM) + one MXU matmul + folded BN + ReLU
# ----------------------------------------------------------------------------
def _deconv_bn_ac_kernel(x_ref, w_ref, scale_ref, shift_ref, o_ref, patch_ref, *,
                         H, W, KH, KW, apply_relu):
    """One batch element per grid step.

    x_ref     : (1, H+KH-1, W+KW-1, Cin_pad)   zero-padded NHWC input (VMEM)
    w_ref     : (KH*KW*Cin_pad, Cout_pad)      correlation weight, im2col layout
    scale_ref : (1, Cout_pad)                  folded-BN scale
    shift_ref : (1, Cout_pad)                  folded-BN shift
    o_ref     : (1, H*W, Cout_pad)             lane-dense output
    patch_ref : (H*W, KH*KW*Cin_pad)           VMEM scratch (im2col patch matrix)
    """
    cin = x_ref.shape[-1]
    x = x_ref[0]                                   # whole padded image, VMEM-resident
    # Build the im2col patch: tap (kh, kw) occupies lane slice [t*cin, (t+1)*cin).
    # Static slices -> masked lane-offset stores; all data stays in VMEM.
    for kh in range(KH):
        for kw in range(KW):
            t = kh * KW + kw
            patch_ref[:, t * cin:(t + 1) * cin] = (
                x[kh:kh + H, kw:kw + W, :].reshape(H * W, cin))
    # Single dense MXU matmul over the full contraction K = KH*KW*Cin_pad (=128).
    acc = jnp.dot(patch_ref[...], w_ref[...], preferred_element_type=jnp.float32)
    acc = acc * scale_ref[...] + shift_ref[...]    # folded inference BatchNorm
    if apply_relu:
        acc = jnp.maximum(acc, 0.0)
    o_ref[0] = acc.astype(o_ref.dtype)


@functools.partial(jax.jit, static_argnames=("out_channels", "apply_relu"))
def conv_transpose2d_bn_ac2(x_nchw, w_mat, bn_scale, bn_shift, *, out_channels,
                            apply_relu=True):
    """Forward pass of ConvTranspose2d_BN_AC2 (kernel_size=4, stride=1 path)."""
    KH = KW = 4
    K, cout_pad = w_mat.shape
    cin_pad = K // (KH * KW)
    B, Cin, H, W = x_nchw.shape
    assert cin_pad >= Cin

    # NCHW -> NHWC (channels on the 128-lane axis); ConstantPad2d((2,1,2,1), 0)
    # zero pad, plus zero-pad contraction channels up to cin_pad (a math no-op).
    # Wrapper-side layout plumbing only; all compute happens in the kernel.
    x = jnp.transpose(x_nchw, (0, 2, 3, 1)).astype(jnp.float32)
    x = jnp.pad(x, ((0, 0), (2, 1), (2, 1), (0, cin_pad - Cin)))
    Hp, Wp = H + KH - 1, W + KW - 1

    kernel = functools.partial(_deconv_bn_ac_kernel, H=H, W=W, KH=KH, KW=KW,
                               apply_relu=apply_relu)
    out = pl.pallas_call(
        kernel,
        out_shape=jax.ShapeDtypeStruct((B, H * W, cout_pad), jnp.float32),
        grid=(B,),
        in_specs=[
            pl.BlockSpec((1, Hp, Wp, cin_pad), lambda b: (b, 0, 0, 0)),
            pl.BlockSpec((K, cout_pad), lambda b: (0, 0)),
            pl.BlockSpec((1, cout_pad), lambda b: (0, 0)),
            pl.BlockSpec((1, cout_pad), lambda b: (0, 0)),
        ],
        out_specs=pl.BlockSpec((1, H * W, cout_pad), lambda b: (b, 0, 0)),
        scratch_shapes=[pltpu.VMEM((H * W, K), jnp.float32)],
        compiler_params=pltpu.CompilerParams(
            dimension_semantics=("parallel",)),    # batch axis -> 2 TCs on v7x
    )(x, w_mat, bn_scale, bn_shift)

    out = out.reshape(B, H, W, cout_pad)[..., :out_channels]
    return jnp.transpose(out, (0, 3, 1, 2))        # back to NCHW


# ----------------------------------------------------------------------------
# Parameters (deterministic synthetic init; BN folded to inference scale/shift)
# ----------------------------------------------------------------------------
def init_params(key, in_channels, out_channels, kernel_size=4, eps=1e-3):
    """Synthetic ConvTranspose2d weight + folded inference BatchNorm.

    Returns the weight already in the (KH*KW*Cin_pad, Cout_pad) im2col layout the
    kernel consumes: Cout zero-padded to a multiple of 128 (lane-dense stores),
    Cin zero-padded to a multiple of 8 (so K = 16*Cin_pad is a multiple of 128).
    """
    assert kernel_size == 4, "odd-stride path of the module is built around k=4"
    kw_, kg, kb, km, kv = jax.random.split(key, 5)

    # PyTorch ConvTranspose2d weight layout: (Cin, Cout, KH, KW), U(-b, b) init.
    fan = in_channels * kernel_size * kernel_size
    bound = 1.0 / float(fan) ** 0.5
    w_pt = jax.random.uniform(kw_, (in_channels, out_channels, kernel_size, kernel_size),
                              minval=-bound, maxval=bound, dtype=jnp.float32)
    # stride-1 ConvTranspose2d(pad=3) == valid correlation with transpose(0,1)+flip(2,3).
    w_eff = jnp.transpose(jnp.flip(w_pt, axis=(2, 3)), (2, 3, 0, 1))  # (KH,KW,Cin,Cout)

    # inference-mode BatchNorm2d(eps=1e-3) folded to per-channel scale/shift
    gamma = 1.0 + 0.1 * jax.random.normal(kg, (out_channels,))
    beta = 0.1 * jax.random.normal(kb, (out_channels,))
    mean = 0.1 * jax.random.normal(km, (out_channels,))
    var = jnp.abs(jax.random.normal(kv, (out_channels,))) + 0.5
    scale = (gamma * jax.lax.rsqrt(var + eps)).astype(jnp.float32)
    shift = (beta - mean * scale).astype(jnp.float32)

    cin_pad = ((in_channels + 7) // 8) * 8
    cout_pad = ((out_channels + 127) // 128) * 128
    w_full = jnp.zeros((kernel_size, kernel_size, cin_pad, cout_pad), jnp.float32)
    w_full = w_full.at[:, :, :in_channels, :out_channels].set(w_eff)
    # im2col row index = (kh*KW + kw)*cin_pad + c  (matches the kernel's patch layout)
    w_mat = w_full.reshape(kernel_size * kernel_size * cin_pad, cout_pad)
    bn_scale = jnp.zeros((1, cout_pad), jnp.float32).at[0, :out_channels].set(scale)
    bn_shift = jnp.zeros((1, cout_pad), jnp.float32).at[0, :out_channels].set(shift)
    return w_mat, bn_scale, bn_shift


# ----------------------------------------------------------------------------
# Pure-JAX (XLA) reference of the same math, for a numeric sanity check
# ----------------------------------------------------------------------------
def _reference_forward(x_nchw, w_mat, bn_scale, bn_shift, out_channels):
    KH = KW = 4
    K, cout_pad = w_mat.shape
    cin_pad = K // (KH * KW)
    w_full = w_mat.reshape(KH, KW, cin_pad, cout_pad)
    B, Cin, H, W = x_nchw.shape
    x = jnp.transpose(x_nchw, (0, 2, 3, 1)).astype(jnp.float32)
    x = jnp.pad(x, ((0, 0), (2, 1), (2, 1), (0, cin_pad - Cin)))
    out = jnp.zeros((B, H, W, cout_pad), jnp.float32)
    for kh in range(KH):
        for kw in range(KW):
            out = out + jnp.einsum("bhwc,cn->bhwn",
                                   x[:, kh:kh + H, kw:kw + W, :], w_full[kh, kw])
    out = jnp.maximum(out * bn_scale[0] + bn_shift[0], 0.0)[..., :out_channels]
    return jnp.transpose(out, (0, 3, 1, 2))


# ----------------------------------------------------------------------------
if __name__ == "__main__":
    B, Cin, H, W = 2, 4, 16, 16
    Cout = 32

    key = jax.random.PRNGKey(0)
    kx, kp = jax.random.split(key)
    x = jax.random.normal(kx, (B, Cin, H, W), dtype=jnp.float32)   # NCHW like PyTorch
    w_mat, bn_scale, bn_shift = init_params(kp, Cin, Cout)

    out = conv_transpose2d_bn_ac2(x, w_mat, bn_scale, bn_shift, out_channels=Cout)
    out = jax.block_until_ready(out)

    assert out.shape == (B, Cout, H, W), out.shape            # stride=1 preserves spatial size
    assert bool(jnp.all(jnp.isfinite(out)))
    assert bool(jnp.all(out >= 0.0))                           # ReLU output

    ref = _reference_forward(x, w_mat, bn_scale, bn_shift, Cout)
    assert bool(jnp.allclose(out, ref, rtol=5e-2, atol=5e-2)), \
        float(jnp.max(jnp.abs(out - ref)))

    print("KERNEL_OK")
</pallas_src>

<mosaic_0001>
module attributes {stable_mosaic.version = 11 : i64} {
  func.func @_deconv_bn_ac_kernel(%arg0: i32, %arg1: memref<1x19x19x8xf32, #tpu.memory_space<vmem>>, %arg2: memref<128x128xf32, #tpu.memory_space<vmem>>, %arg3: memref<1x128xf32, #tpu.memory_space<vmem>>, %arg4: memref<1x128xf32, #tpu.memory_space<vmem>>, %arg5: memref<1x256x128xf32, #tpu.memory_space<vmem>>, %arg6: memref<256x128xf32, #tpu.memory_space<vmem>>) attributes {dimension_semantics = [#tpu.dimension_semantics<parallel>], iteration_bounds = array<i64: 2>, scalar_prefetch = 0 : i64, scratch_operands = 1 : i64, tpu.core_type = #tpu.core_type<tc>, window_params = [{transform_indices = @transform_0, window_bounds = array<i64: 1, 19, 19, 8>}, {pipeline_mode = #tpu.pipeline_mode<synchronous>, transform_indices = @transform_1, window_bounds = array<i64: 128, 128>}, {pipeline_mode = #tpu.pipeline_mode<synchronous>, transform_indices = @transform_2, window_bounds = array<i64: 1, 128>}, {pipeline_mode = #tpu.pipeline_mode<synchronous>, transform_indices = @transform_3, window_bounds = array<i64: 1, 128>}, {transform_indices = @transform_4, window_bounds = array<i64: 1, 256, 128>}]} {
    %c0 = arith.constant 0 : index
    %c0_0 = arith.constant 0 : index
    %c0_1 = arith.constant 0 : index
    %c0_2 = arith.constant 0 : index
    %0 = vector.load %arg1[%c0, %c0_0, %c0_1, %c0_2] : memref<1x19x19x8xf32, #tpu.memory_space<vmem>>, vector<1x19x19x8xf32>
    %1 = vector.shape_cast %0 : vector<1x19x19x8xf32> to vector<19x19x8xf32>
    %2 = vector.extract_strided_slice %1 {offsets = [0, 0, 0], sizes = [16, 16, 8], strides = [1, 1, 1]} : vector<19x19x8xf32> to vector<16x16x8xf32>
    %3 = vector.shape_cast %2 : vector<16x16x8xf32> to vector<256x8xf32>
    %c0_3 = arith.constant 0 : index
    %c0_4 = arith.constant 0 : index
    %4 = vector.load %arg6[%c0_3, %c0_4] : memref<256x128xf32, #tpu.memory_space<vmem>>, vector<256x8xf32>
    tpu.vector_store %arg6[%c0_3, %c0_4], %3 {strides = array<i32>} : memref<256x128xf32, #tpu.memory_space<vmem>>, vector<256x8xf32>,
    %5 = vector.extract_strided_slice %1 {offsets = [0, 1, 0], sizes = [16, 16, 8], strides = [1, 1, 1]} : vector<19x19x8xf32> to vector<16x16x8xf32>
    %6 = vector.shape_cast %5 : vector<16x16x8xf32> to vector<256x8xf32>
    %c0_5 = arith.constant 0 : index
    %c8 = arith.constant 8 : index
    %7 = vector.load %arg6[%c0_5, %c8] : memref<256x128xf32, #tpu.memory_space<vmem>>, vector<256x8xf32>
    tpu.vector_store %arg6[%c0_5, %c8], %6 {strides = array<i32>} : memref<256x128xf32, #tpu.memory_space<vmem>>, vector<256x8xf32>,
    %8 = vector.extract_strided_slice %1 {offsets = [0, 2, 0], sizes = [16, 16, 8], strides = [1, 1, 1]} : vector<19x19x8xf32> to vector<16x16x8xf32>
    %9 = vector.shape_cast %8 : vector<16x16x8xf32> to vector<256x8xf32>
    %c0_6 = arith.constant 0 : index
    %c16 = arith.constant 16 : index
    %10 = vector.load %arg6[%c0_6, %c16] : memref<256x128xf32, #tpu.memory_space<vmem>>, vector<256x8xf32>
    tpu.vector_store %arg6[%c0_6, %c16], %9 {strides = array<i32>} : memref<256x128xf32, #tpu.memory_space<vmem>>, vector<256x8xf32>,
    %11 = vector.extract_strided_slice %1 {offsets = [0, 3, 0], sizes = [16, 16, 8], strides = [1, 1, 1]} : vector<19x19x8xf32> to vector<16x16x8xf32>
    %12 = vector.shape_cast %11 : vector<16x16x8xf32> to vector<256x8xf32>
    %c0_7 = arith.constant 0 : index
    %c24 = arith.constant 24 : index
    %13 = vector.load %arg6[%c0_7, %c24] : memref<256x128xf32, #tpu.memory_space<vmem>>, vector<256x8xf32>
    tpu.vector_store %arg6[%c0_7, %c24], %12 {strides = array<i32>} : memref<256x128xf32, #tpu.memory_space<vmem>>, vector<256x8xf32>,
    %14 = vector.extract_strided_slice %1 {offsets = [1, 0, 0], sizes = [16, 16, 8], strides = [1, 1, 1]} : vector<19x19x8xf32> to vector<16x16x8xf32>
    %15 = vector.shape_cast %14 : vector<16x16x8xf32> to vector<256x8xf32>
    %c0_8 = arith.constant 0 : index
    %c32 = arith.constant 32 : index
    %16 = vector.load %arg6[%c0_8, %c32] : memref<256x128xf32, #tpu.memory_space<vmem>>, vector<256x8xf32>
    tpu.vector_store %arg6[%c0_8, %c32], %15 {strides = array<i32>} : memref<256x128xf32, #tpu.memory_space<vmem>>, vector<256x8xf32>,
    %17 = vector.extract_strided_slice %1 {offsets = [1, 1, 0], sizes = [16, 16, 8], strides = [1, 1, 1]} : vector<19x19x8xf32> to vector<16x16x8xf32>
    %18 = vector.shape_cast %17 : vector<16x16x8xf32> to vector<256x8xf32>
    %c0_9 = arith.constant 0 : index
    %c40 = arith.constant 40 : index
    %19 = vector.load %arg6[%c0_9, %c40] : memref<256x128xf32, #tpu.memory_space<vmem>>, vector<256x8xf32>
    tpu.vector_store %arg6[%c0_9, %c40], %18 {strides = array<i32>} : memref<256x128xf32, #tpu.memory_space<vmem>>, vector<256x8xf32>,
    %20 = vector.extract_strided_slice %1 {offsets = [1, 2, 0], sizes = [16, 16, 8], strides = [1, 1, 1]} : vector<19x19x8xf32> to vector<16x16x8xf32>
    %21 = vector.shape_cast %20 : vector<16x16x8xf32> to vector<256x8xf32>
    %c0_10 = arith.constant 0 : index
    %c48 = arith.constant 48 : index
    %22 = vector.load %arg6[%c0_10, %c48] : memref<256x128xf32, #tpu.memory_space<vmem>>, vector<256x8xf32>
    tpu.vector_store %arg6[%c0_10, %c48], %21 {strides = array<i32>} : memref<256x128xf32, #tpu.memory_space<vmem>>, vector<256x8xf32>,
    %23 = vector.extract_strided_slice %1 {offsets = [1, 3, 0], sizes = [16, 16, 8], strides = [1, 1, 1]} : vector<19x19x8xf32> to vector<16x16x8xf32>
    %24 = vector.shape_cast %23 : vector<16x16x8xf32> to vector<256x8xf32>
    %c0_11 = arith.constant 0 : index
    %c56 = arith.constant 56 : index
    %25 = vector.load %arg6[%c0_11, %c56] : memref<256x128xf32, #tpu.memory_space<vmem>>, vector<256x8xf32>
    tpu.vector_store %arg6[%c0_11, %c56], %24 {strides = array<i32>} : memref<256x128xf32, #tpu.memory_space<vmem>>, vector<256x8xf32>,
    %26 = vector.extract_strided_slice %1 {offsets = [2, 0, 0], sizes = [16, 16, 8], strides = [1, 1, 1]} : vector<19x19x8xf32> to vector<16x16x8xf32>
    %27 = vector.shape_cast %26 : vector<16x16x8xf32> to vector<256x8xf32>
    %c0_12 = arith.constant 0 : index
    %c64 = arith.constant 64 : index
    %28 = vector.load %arg6[%c0_12, %c64] : memref<256x128xf32, #tpu.memory_space<vmem>>, vector<256x8xf32>
    tpu.vector_store %arg6[%c0_12, %c64], %27 {strides = array<i32>} : memref<256x128xf32, #tpu.memory_space<vmem>>, vector<256x8xf32>,
    %29 = vector.extract_strided_slice %1 {offsets = [2, 1, 0], sizes = [16, 16, 8], strides = [1, 1, 1]} : vector<19x19x8xf32> to vector<16x16x8xf32>
    %30 = vector.shape_cast %29 : vector<16x16x8xf32> to vector<256x8xf32>
    %c0_13 = arith.constant 0 : index
    %c72 = arith.constant 72 : index
    %31 = vector.load %arg6[%c0_13, %c72] : memref<256x128xf32, #tpu.memory_space<vmem>>, vector<256x8xf32>
    tpu.vector_store %arg6[%c0_13, %c72], %30 {strides = array<i32>} : memref<256x128xf32, #tpu.memory_space<vmem>>, vector<256x8xf32>,
    %32 = vector.extract_strided_slice %1 {offsets = [2, 2, 0], sizes = [16, 16, 8], strides = [1, 1, 1]} : vector<19x19x8xf32> to vector<16x16x8xf32>
    %33 = vector.shape_cast %32 : vector<16x16x8xf32> to vector<256x8xf32>
    %c0_14 = arith.constant 0 : index
    %c80 = arith.constant 80 : index
    %34 = vector.load %arg6[%c0_14, %c80] : memref<256x128xf32, #tpu.memory_space<vmem>>, vector<256x8xf32>
    tpu.vector_store %arg6[%c0_14, %c80], %33 {strides = array<i32>} : memref<256x128xf32, #tpu.memory_space<vmem>>, vector<256x8xf32>,
    %35 = vector.extract_strided_slice %1 {offsets = [2, 3, 0], sizes = [16, 16, 8], strides = [1, 1, 1]} : vector<19x19x8xf32> to vector<16x16x8xf32>
    %36 = vector.shape_cast %35 : vector<16x16x8xf32> to vector<256x8xf32>
    %c0_15 = arith.constant 0 : index
    %c88 = arith.constant 88 : index
    %37 = vector.load %arg6[%c0_15, %c88] : memref<256x128xf32, #tpu.memory_space<vmem>>, vector<256x8xf32>
    tpu.vector_store %arg6[%c0_15, %c88], %36 {strides = array<i32>} : memref<256x128xf32, #tpu.memory_space<vmem>>, vector<256x8xf32>,
    %38 = vector.extract_strided_slice %1 {offsets = [3, 0, 0], sizes = [16, 16, 8], strides = [1, 1, 1]} : vector<19x19x8xf32> to vector<16x16x8xf32>
    %39 = vector.shape_cast %38 : vector<16x16x8xf32> to vector<256x8xf32>
    %c0_16 = arith.constant 0 : index
    %c96 = arith.constant 96 : index
    %40 = vector.load %arg6[%c0_16, %c96] : memref<256x128xf32, #tpu.memory_space<vmem>>, vector<256x8xf32>
    tpu.vector_store %arg6[%c0_16, %c96], %39 {strides = array<i32>} : memref<256x128xf32, #tpu.memory_space<vmem>>, vector<256x8xf32>,
    %41 = vector.extract_strided_slice %1 {offsets = [3, 1, 0], sizes = [16, 16, 8], strides = [1, 1, 1]} : vector<19x19x8xf32> to vector<16x16x8xf32>
    %42 = vector.shape_cast %41 : vector<16x16x8xf32> to vector<256x8xf32>
    %c0_17 = arith.constant 0 : index
    %c104 = arith.constant 104 : index
    %43 = vector.load %arg6[%c0_17, %c104] : memref<256x128xf32, #tpu.memory_space<vmem>>, vector<256x8xf32>
    tpu.vector_store %arg6[%c0_17, %c104], %42 {strides = array<i32>} : memref<256x128xf32, #tpu.memory_space<vmem>>, vector<256x8xf32>,
    %44 = vector.extract_strided_slice %1 {offsets = [3, 2, 0], sizes = [16, 16, 8], strides = [1, 1, 1]} : vector<19x19x8xf32> to vector<16x16x8xf32>
    %45 = vector.shape_cast %44 : vector<16x16x8xf32> to vector<256x8xf32>
    %c0_18 = arith.constant 0 : index
    %c112 = arith.constant 112 : index
    %46 = vector.load %arg6[%c0_18, %c112] : memref<256x128xf32, #tpu.memory_space<vmem>>, vector<256x8xf32>
    tpu.vector_store %arg6[%c0_18, %c112], %45 {strides = array<i32>} : memref<256x128xf32, #tpu.memory_space<vmem>>, vector<256x8xf32>,
    %47 = vector.extract_strided_slice %1 {offsets = [3, 3, 0], sizes = [16, 16, 8], strides = [1, 1, 1]} : vector<19x19x8xf32> to vector<16x16x8xf32>
    %48 = vector.shape_cast %47 : vector<16x16x8xf32> to vector<256x8xf32>
    %c0_19 = arith.constant 0 : index
    %c120 = arith.constant 120 : index
    %49 = vector.load %arg6[%c0_19, %c120] : memref<256x128xf32, #tpu.memory_space<vmem>>, vector<256x8xf32>
    tpu.vector_store %arg6[%c0_19, %c120], %48 {strides = array<i32>} : memref<256x128xf32, #tpu.memory_space<vmem>>, vector<256x8xf32>,
    %c0_20 = arith.constant 0 : index
    %c0_21 = arith.constant 0 : index
    %50 = vector.load %arg6[%c0_20, %c0_21] : memref<256x128xf32, #tpu.memory_space<vmem>>, vector<256x128xf32>
    %c0_22 = arith.constant 0 : index
    %c0_23 = arith.constant 0 : index
    %51 = vector.load %arg2[%c0_22, %c0_23] : memref<128x128xf32, #tpu.memory_space<vmem>>, vector<128x128xf32>
    %cst = arith.constant dense<0.000000e+00> : vector<256x128xf32>
    %52 = tpu.matmul %50, %51, %cst {dimension_numbers = #tpu.dot_dimension_numbers<[1], [0], [0], [1], [0, 0, 1, 1], [], []>} : vector<256x128xf32>, vector<128x128xf32>, vector<256x128xf32> -> vector<256x128xf32>
    %c0_24 = arith.constant 0 : index
    %c0_25 = arith.constant 0 : index
    %53 = vector.load %arg3[%c0_24, %c0_25] : memref<1x128xf32, #tpu.memory_space<vmem>>, vector<1x128xf32>
    %54 = vector.broadcast %53 : vector<1x128xf32> to vector<256x128xf32>
    %55 = arith.mulf %52, %54 : vector<256x128xf32>
    %c0_26 = arith.constant 0 : index
    %c0_27 = arith.constant 0 : index
    %56 = vector.load %arg4[%c0_26, %c0_27] : memref<1x128xf32, #tpu.memory_space<vmem>>, vector<1x128xf32>
    %57 = vector.broadcast %56 : vector<1x128xf32> to vector<256x128xf32>
    %58 = arith.addf %55, %57 : vector<256x128xf32>
    %cst_28 = arith.constant 0.000000e+00 : f32
    %59 = vector.broadcast %cst_28 : f32 to vector<256x128xf32>
    %60 = arith.maximumf %58, %59 : vector<256x128xf32>
    %c0_29 = arith.constant 0 : index
    %c0_30 = arith.constant 0 : index
    %c0_31 = arith.constant 0 : index
    %61 = vector.load %arg5[%c0_29, %c0_30, %c0_31] : memref<1x256x128xf32, #tpu.memory_space<vmem>>, vector<1x256x128xf32>
    %62 = vector.shape_cast %61 : vector<1x256x128xf32> to vector<256x128xf32>
    %63 = vector.shape_cast %60 : vector<256x128xf32> to vector<1x256x128xf32>
    tpu.vector_store %arg5[%c0_29, %c0_30, %c0_31], %63 {strides = array<i32>} : memref<1x256x128xf32, #tpu.memory_space<vmem>>, vector<1x256x128xf32>,
    return
  }
  func.func @transform_0(%arg0: i32) -> (i32, i32, i32, i32) {
    %c0_i32 = arith.constant 0 : i32
    %c0_i32_0 = arith.constant 0 : i32
    %c0_i32_1 = arith.constant 0 : i32
    %c0_i32_2 = arith.constant 0 : i32
    return %arg0, %c0_i32, %c0_i32_0, %c0_i32_1 : i32, i32, i32, i32
  }
  func.func @transform_1(%arg0: i32) -> (i32, i32) {
    %c0_i32 = arith.constant 0 : i32
    %c0_i32_0 = arith.constant 0 : i32
    %c0_i32_1 = arith.constant 0 : i32
    return %c0_i32, %c0_i32_0 : i32, i32
  }
  func.func @transform_2(%arg0: i32) -> (i32, i32) {
    %c0_i32 = arith.constant 0 : i32
    %c0_i32_0 = arith.constant 0 : i32
    %c0_i32_1 = arith.constant 0 : i32
    return %c0_i32, %c0_i32_0 : i32, i32
  }
  func.func @transform_3(%arg0: i32) -> (i32, i32) {
    %c0_i32 = arith.constant 0 : i32
    %c0_i32_0 = arith.constant 0 : i32
    %c0_i32_1 = arith.constant 0 : i32
    return %c0_i32, %c0_i32_0 : i32, i32
  }
  func.func @transform_4(%arg0: i32) -> (i32, i32, i32) {
    %c0_i32 = arith.constant 0 : i32
    %c0_i32_0 = arith.constant 0 : i32
    %c0_i32_1 = arith.constant 0 : i32
    return %arg0, %c0_i32, %c0_i32_0 : i32, i32, i32
  }
}

</mosaic_0001>

<llo_original>
// kernel: conv_transpose2d_bn_ac2.1
$region0: #{conv_transpose2d_bn_ac2.1}
  #allocation0 [shape = 'u32[]', space=smem, size = 0x4, offset = 0x4, fixed_abs, tag = 'smem constant byte address 0x4 - core index']
  #allocation1 [shape = 'u32[144,128]{1,0:T(1,128)}', space=vmem, size = 0x12000, scoped, tag = 'internal scratch']
  #allocation2 [shape = 'f32[256,128]{1,0:T(8,128)}', space=vmem, size = 0x20000, scoped, tag = 'scratch operand']
  %s0 = inlined_call_operand.vmem [shape: f32[2,19,19,8], index: 0, kind: input, shape index: {}]
  %s1 = inlined_call_operand.vmem [shape: f32[128,128], index: 1, kind: input, shape index: {}]
  %s2 = inlined_call_operand.vmem [shape: f32[1,128], index: 2, kind: input, shape index: {}]
  %s3 = inlined_call_operand.vmem [shape: f32[1,128], index: 3, kind: input, shape index: {}]
  %s4 = inlined_call_operand.vmem [shape: f32[2,256,128], index: 4, kind: output, shape index: {}]
  %s5 = sld [smem:[#allocation0]]
  $region49: #{conv_transpose2d_bn_ac2.1} parent=0
    _
  %s7 = ssub.s32 1, %s5
  %s8 = scalar_select 0, %s7, %s5
  loop: start=0, step=1, limit=4
  $region2: #{conv_transpose2d_bn_ac2.1} parent=0 // loop_pre_header
    _
  $region3: #{conv_transpose2d_bn_ac2.1} parent=0 // loop_header
    %s10 = sphi 0, %s14
    %p11 = scmp.ge.s32.totalorder %s10, 4
    %s20 = sphi 0, %s22
    %s23 = sphi 0, %s20
    %s24 = sphi 0, %s23
    %s40 = sphi 0, %s24
    %s44 = sphi 0, %s44
    %s46 = sphi 0, %s44
    %s47 = sphi 0, %s46
    %s61 = sphi 0, %s47
    %s65 = sphi 0, %s65
    %s67 = sphi 0, %s65
    %s68 = sphi 0, %s67
    %s82 = sphi 0, %s68
    %s86 = sphi 0, %s86
    %s88 = sphi 0, %s86
    %s89 = sphi 0, %s88
    %s103 = sphi 0, %s89
    %s109 = sphi 0, %s111
    %s112 = sphi 0, %s109
    %s113 = sphi 0, %s112
    %s129 = sphi 0, %s113
  $region4: #{conv_transpose2d_bn_ac2.1} parent=0 // loop_header_branch
    %13 = sbr.rel (%p11) target = $region8
  $region5: #{conv_transpose2d_bn_ac2.1} parent=0 // loop_body
    %s15 = ssub.s32 %s10, 1
    %s16 = ssub.s32 %s10, 2
    %s17 = sadd.s32 %s10, 1
    %s18 = ssub.s32 %s10, %s17
    %p19 = scmp.eq.s32.totalorder %s18, 0
    %s21 = sadd.s32 %s20, 1
    %s22 = scalar_select %p19, %s20, %s21
    %p25 = pneg %p19
    %p26 = scmp.eq.s32.totalorder %s10, 1
    %p27 = por %p25, %p26
    %p28 = scmp.ne.s32.totalorder %s20, %s23
    %p29 = scmp.eq.s32.totalorder %s10, 0
    %p30 = por %p28, %p29
    %p31 = scmp.ne.s32.totalorder %s20, %s23
    %p32 = scmp.eq.s32.totalorder %s15, 1
    %p33 = por %p31, %p32
    %p34 = scmp.ne.s32.totalorder %s23, %s24
    %p35 = scmp.eq.s32.totalorder %s15, 0
    %p36 = por %p34, %p35
    %p37 = scmp.ne.s32.totalorder %s23, %s24
    %p38 = scmp.eq.s32.totalorder %s16, 1
    %p39 = por %p37, %p38
    %p41 = scmp.ne.s32.totalorder %s24, %s40
    %p42 = scmp.eq.s32.totalorder %s16, 0
    %p43 = por %p41, %p42
    %s45 = sadd.s32 %s44, 1
    %p48 = scmp.eq.s32.totalorder %s10, 1
    %p49 = scmp.ne.s32.totalorder %s44, %s46
    %p50 = scmp.eq.s32.totalorder %s10, 0
    %p51 = por %p49, %p50
    %p52 = scmp.ne.s32.totalorder %s44, %s46
    %p53 = scmp.eq.s32.totalorder %s15, 1
    %p54 = por %p52, %p53
    %p55 = scmp.ne.s32.totalorder %s46, %s47
    %p56 = scmp.eq.s32.totalorder %s15, 0
    %p57 = por %p55, %p56
    %p58 = scmp.ne.s32.totalorder %s46, %s47
    %p59 = scmp.eq.s32.totalorder %s16, 1
    %p60 = por %p58, %p59
    %p62 = scmp.ne.s32.totalorder %s47, %s61
    %p63 = scmp.eq.s32.totalorder %s16, 0
    %p64 = por %p62, %p63
    %s66 = sadd.s32 %s65, 1
    %p69 = scmp.eq.s32.totalorder %s10, 1
    %p70 = scmp.ne.s32.totalorder %s65, %s67
    %p71 = scmp.eq.s32.totalorder %s10, 0
    %p72 = por %p70, %p71
    %p73 = scmp.ne.s32.totalorder %s65, %s67
    %p74 = scmp.eq.s32.totalorder %s15, 1
    %p75 = por %p73, %p74
    %p76 = scmp.ne.s32.totalorder %s67, %s68
    %p77 = scmp.eq.s32.totalorder %s15, 0
    %p78 = por %p76, %p77
    %p79 = scmp.ne.s32.totalorder %s67, %s68
    %p80 = scmp.eq.s32.totalorder %s16, 1
    %p81 = por %p79, %p80
    %p83 = scmp.ne.s32.totalorder %s68, %s82
    %p84 = scmp.eq.s32.totalorder %s16, 0
    %p85 = por %p83, %p84
    %s87 = sadd.s32 %s86, 1
    %p90 = scmp.eq.s32.totalorder %s10, 1
    %p91 = scmp.ne.s32.totalorder %s86, %s88
    %p92 = scmp.eq.s32.totalorder %s10, 0
    %p93 = por %p91, %p92
    %p94 = scmp.ne.s32.totalorder %s86, %s88
    %p95 = scmp.eq.s32.totalorder %s15, 1
    %p96 = por %p94, %p95
    %p97 = scmp.ne.s32.totalorder %s88, %s89
    %p98 = scmp.eq.s32.totalorder %s15, 0
    %p99 = por %p97, %p98
    %p100 = scmp.ne.s32.totalorder %s88, %s89
    %p101 = scmp.eq.s32.totalorder %s16, 1
    %p102 = por %p100, %p101
    %p104 = scmp.ne.s32.totalorder %s89, %s103
    %p105 = scmp.eq.s32.totalorder %s16, 0
    %p106 = por %p104, %p105
    %s107 = ssub.s32 %s10, %s17
    %p108 = scmp.eq.s32.totalorder %s107, 0
    %s110 = sadd.s32 %s109, 1
    %s111 = scalar_select %p108, %s109, %s110
    %p114 = pneg %p108
    %p115 = scmp.eq.s32.totalorder %s10, 1
    %p116 = por %p114, %p115
    %p117 = scmp.ne.s32.totalorder %s109, %s112
    %p118 = scmp.eq.s32.totalorder %s10, 0
    %p119 = por %p117, %p118
    %p120 = scmp.ne.s32.totalorder %s109, %s112
    %p121 = scmp.eq.s32.totalorder %s15, 1
    %p122 = por %p120, %p121
    %p123 = scmp.ne.s32.totalorder %s112, %s113
    %p124 = scmp.eq.s32.totalorder %s15, 0
    %p125 = por %p123, %p124
    %p126 = scmp.ne.s32.totalorder %s112, %s113
    %p127 = scmp.eq.s32.totalorder %s16, 1
    %p128 = por %p126, %p127
    %p130 = scmp.ne.s32.totalorder %s113, %s129
    %p131 = scmp.eq.s32.totalorder %s16, 0
    %p132 = por %p130, %p131
    %p133 = scmp.le.s32.totalorder 1, %s10
    %p134 = scmp.lt.s32.totalorder %s10, 3
    %p135 = pnand %p133, %p134
    %p136 = pneg %p135
    // Predicated region
    $region9: #{conv_transpose2d_bn_ac2.1} parent=5 // pred_check
      _
    $region10: #{conv_transpose2d_bn_ac2.1} parent=5 // pred_check_branch
      %138 = sbr.rel (%p135) target = $region12
    $region11: #{conv_transpose2d_bn_ac2.1} parent=5 // pred_region
      %s139 = ssub.s32 %s10, 1
      // Predicated region
      $region13: #{conv_transpose2d_bn_ac2.1} parent=11 // pred_check
        %p140 = pneg %p57
      $region14: #{conv_transpose2d_bn_ac2.1} parent=11 // pred_check_branch
        %142 = sbr.rel (%p140) target = $region16
      $region15: #{conv_transpose2d_bn_ac2.1} parent=11 // pred_region
        _
      $region16: #{conv_transpose2d_bn_ac2.1} parent=11 // pred_fallthru
        _
      // Predicated region
      $region17: #{conv_transpose2d_bn_ac2.1} parent=11 // pred_check
        %p143 = pneg %p78
      $region18: #{conv_transpose2d_bn_ac2.1} parent=11 // pred_check_branch
        %145 = sbr.rel (%p143) target = $region20
      $region19: #{conv_transpose2d_bn_ac2.1} parent=11 // pred_region
        _
      $region20: #{conv_transpose2d_bn_ac2.1} parent=11 // pred_fallthru
        _
      // Predicated region
      $region21: #{conv_transpose2d_bn_ac2.1} parent=11 // pred_check
        %p146 = pneg %p99
      $region22: #{conv_transpose2d_bn_ac2.1} parent=11 // pred_check_branch
        %148 = sbr.rel (%p146) target = $region24
      $region23: #{conv_transpose2d_bn_ac2.1} parent=11 // pred_region
        _
      $region24: #{conv_transpose2d_bn_ac2.1} parent=11 // pred_fallthru
        _
    $region12: #{conv_transpose2d_bn_ac2.1} parent=5 // pred_fallthru
      _
    %p149 = scmp.lt.s32.totalorder %s10, 2
    // Predicated region
    $region25: #{conv_transpose2d_bn_ac2.1} parent=5 // pred_check
      %p150 = pneg %p149
    $region26: #{conv_transpose2d_bn_ac2.1} parent=5 // pred_check_branch
      %152 = sbr.rel (%p150) target = $region28
    $region27: #{conv_transpose2d_bn_ac2.1} parent=5 // pred_region
      // Predicated region
      $region29: #{conv_transpose2d_bn_ac2.1} parent=27 // pred_check
        %p153 = pneg %p30
      $region30: #{conv_transpose2d_bn_ac2.1} parent=27 // pred_check_branch
        %155 = sbr.rel (%p153) target = $region32
      $region31: #{conv_transpose2d_bn_ac2.1} parent=27 // pred_region
        %p156 = scmp.lt.s32.totalorder %s10, 1
        %s157 = scalar_select %p156, %s10, 1
        %s158 = smul.addr %s157, 57
        %s159 = smul.addr %s158, 8
        %s160 = scalar_lea.vmem %s0, %s159
      $region32: #{conv_transpose2d_bn_ac2.1} parent=27 // pred_fallthru
        _
    $region28: #{conv_transpose2d_bn_ac2.1} parent=5 // pred_fallthru
      _
    %p161 = scmp.le.s32.totalorder 1, %s10
    %p162 = scmp.lt.s32.totalorder %s10, 3
    %p163 = pnand %p161, %p162
    %p164 = pneg %p163
    // Predicated region
    $region33: #{conv_transpose2d_bn_ac2.1} parent=5 // pred_check
      _
    $region34: #{conv_transpose2d_bn_ac2.1} parent=5 // pred_check_branch
      %166 = sbr.rel (%p163) target = $region36
    $region35: #{conv_transpose2d_bn_ac2.1} parent=5 // pred_region
      %s167 = ssub.s32 %s10, 1
      %p168 = scmp.lt.s32.totalorder %s15, 1
      %s169 = scalar_select %p168, %s15, 1
      %s170 = smul.addr %s169, 57
      %s171 = smul.addr %s170, 8
      %s172 = scalar_lea.vmem %s0, %s171
      %p173 = pneg %p36
      %p174 = pneg %p33
      %p175 = pneg %p57
      %p176 = pneg %p54
      %p177 = pneg %p78
      %p178 = pneg %p75
      %p179 = pneg %p99
      %p180 = pneg %p96
      %p181 = pneg %p125
      %p182 = pneg %p122
      %p183 = scmp.lt.s32.totalorder %s15, 1
      %s184 = scalar_select %p183, %s15, 1
      %s185 = smul.addr %s184, 32
      %s186 = smul.addr %s185, 8
      %s187 = scalar_lea.vmem %s4, %s186
      %p188 = scmp.lt.s32.totalorder %s15, 1
      %s189 = scalar_select %p188, %s15, 1
      %s190 = smul.addr %s189, 57
      %s191 = smul.addr %s190, 8
      %s192 = scalar_lea.vmem %s0, %s191
      %p193 = scmp.lt.s32.totalorder %s15, 1
      %s194 = scalar_select %p193, %s15, 1
      %s195 = smul.addr %s194, 32
      %s196 = smul.addr %s195, 8
      %s197 = scalar_lea.vmem %s4, %s196
      %v198 = vld [vmem:[%s192] sm:$0xff]
      %v199 = vld [vmem:[%s192 + $0x8] sm:$0xff]
      %v200 = vld [vmem:[%s192 + $0x10] sm:$0x7]
      %v201 = vld [vmem:[%s192 + $0x18] sm:$0xff]
      %v202 = vld [vmem:[%s192 + $0x20] sm:$0xff]
      %v203 = vld [vmem:[%s192 + $0x28] sm:$0x7]
      %v204 = vld [vmem:[%s192 + $0x30] sm:$0xff]
      %v205 = vld [vmem:[%s192 + $0x38] sm:$0xff]
      %v206 = vld [vmem:[%s192 + $0x40] sm:$0x7]
      %v207 = vld [vmem:[%s192 + $0x48] sm:$0xff]
      %v208 = vld [vmem:[%s192 + $0x50] sm:$0xff]
      %v209 = vld [vmem:[%s192 + $0x58] sm:$0x7]
      %v210 = vld [vmem:[%s192 + $0x60] sm:$0xff]
      %v211 = vld [vmem:[%s192 + $0x68] sm:$0xff]
      %v212 = vld [vmem:[%s192 + $0x70] sm:$0x7]
      %v213 = vld [vmem:[%s192 + $0x78] sm:$0xff]
      %v214 = vld [vmem:[%s192 + $0x80] sm:$0xff]
      %v215 = vld [vmem:[%s192 + $0x88] sm:$0x7]
      %v216 = vld [vmem:[%s192 + $0x90] sm:$0xff]
      %v217 = vld [vmem:[%s192 + $0x98] sm:$0xff]
      %v218 = vld [vmem:[%s192 + $0xa0] sm:$0x7]
      %v219 = vld [vmem:[%s192 + $0xa8] sm:$0xff]
      %v220 = vld [vmem:[%s192 + $0xb0] sm:$0xff]
      %v221 = vld [vmem:[%s192 + $0xb8] sm:$0x7]
      %v222 = vld [vmem:[%s192 + $0xc0] sm:$0xff]
      %v223 = vld [vmem:[%s192 + $0xc8] sm:$0xff]
      %v224 = vld [vmem:[%s192 + $0xd0] sm:$0x7]
      %v225 = vld [vmem:[%s192 + $0xd8] sm:$0xff]
      %v226 = vld [vmem:[%s192 + $0xe0] sm:$0xff]
      %v227 = vld [vmem:[%s192 + $0xe8] sm:$0x7]
      %v228 = vld [vmem:[%s192 + $0xf0] sm:$0xff]
      %v229 = vld [vmem:[%s192 + $0xf8] sm:$0xff]
      %v230 = vld [vmem:[%s192 + $0x100] sm:$0x7]
      %v231 = vld [vmem:[%s192 + $0x108] sm:$0xff]
      %v232 = vld [vmem:[%s192 + $0x110] sm:$0xff]
      %v233 = vld [vmem:[%s192 + $0x118] sm:$0x7]
      %v234 = vld [vmem:[%s192 + $0x120] sm:$0xff]
      %v235 = vld [vmem:[%s192 + $0x128] sm:$0xff]
      %v236 = vld [vmem:[%s192 + $0x130] sm:$0x7]
      %v237 = vld [vmem:[%s192 + $0x138] sm:$0xff]
      %v238 = vld [vmem:[%s192 + $0x140] sm:$0xff]
      %v239 = vld [vmem:[%s192 + $0x148] sm:$0x7]
      %v240 = vld [vmem:[%s192 + $0x150] sm:$0xff]
      %v241 = vld [vmem:[%s192 + $0x158] sm:$0xff]
      %v242 = vld [vmem:[%s192 + $0x160] sm:$0x7]
      %v243 = vld [vmem:[%s192 + $0x168] sm:$0xff]
      %v244 = vld [vmem:[%s192 + $0x170] sm:$0xff]
      %v245 = vld [vmem:[%s192 + $0x178] sm:$0x7]
      %v246 = vld [vmem:[%s192 + $0x180] sm:$0xff]
      %v247 = vld [vmem:[%s192 + $0x188] sm:$0xff]
      %v248 = vld [vmem:[%s192 + $0x190] sm:$0x7]
      %v249 = vld [vmem:[%s192 + $0x198] sm:$0xff]
      %v250 = vld [vmem:[%s192 + $0x1a0] sm:$0xff]
      %v251 = vld [vmem:[%s192 + $0x1a8] sm:$0x7]
      %v252 = vld [vmem:[%s192 + $0x1b0] sm:$0xff]
      %v253 = vld [vmem:[%s192 + $0x1b8] sm:$0xff]
      %v254 = vld [vmem:[%s192 + $0x1c0] sm:$0x7]
      %vm255 = vcmask 64512
      %256 = vst.msk [vmem:[#allocation2] sm:$0xff] %vm255, %v198
      %257 = vst.msk [vmem:[#allocation2 + $0x8] sm:$0xff] %vm255, %v199
      %258 = vst.msk [vmem:[#allocation2 + $0x10] sm:$0xff] %vm255, %v201
      %259 = vst.msk [vmem:[#allocation2 + $0x18] sm:$0xff] %vm255, %v202
      %260 = vst.msk [vmem:[#allocation2 + $0x20] sm:$0xff] %vm255, %v204
      %261 = vst.msk [vmem:[#allocation2 + $0x28] sm:$0xff] %vm255, %v205
      %262 = vst.msk [vmem:[#allocation2 + $0x30] sm:$0xff] %vm255, %v207
      %263 = vst.msk [vmem:[#allocation2 + $0x38] sm:$0xff] %vm255, %v208
      %264 = vst.msk [vmem:[#allocation2 + $0x40] sm:$0xff] %vm255, %v210
      %265 = vst.msk [vmem:[#allocation2 + $0x48] sm:$0xff] %vm255, %v211
      %266 = vst.msk [vmem:[#allocation2 + $0x50] sm:$0xff] %vm255, %v213
      %267 = vst.msk [vmem:[#allocation2 + $0x58] sm:$0xff] %vm255, %v214
      %268 = vst.msk [vmem:[#allocation2 + $0x60] sm:$0xff] %vm255, %v216
      %269 = vst.msk [vmem:[#allocation2 + $0x68] sm:$0xff] %vm255, %v217
      %270 = vst.msk [vmem:[#allocation2 + $0x70] sm:$0xff] %vm255, %v219
      %271 = vst.msk [vmem:[#allocation2 + $0x78] sm:$0xff] %vm255, %v220
      %272 = vst.msk [vmem:[#allocation2 + $0x80] sm:$0xff] %vm255, %v222
      %273 = vst.msk [vmem:[#allocation2 + $0x88] sm:$0xff] %vm255, %v223
      %274 = vst.msk [vmem:[#allocation2 + $0x90] sm:$0xff] %vm255, %v225
      %275 = vst.msk [vmem:[#allocation2 + $0x98] sm:$0xff] %vm255, %v226
      %276 = vst.msk [vmem:[#allocation2 + $0xa0] sm:$0xff] %vm255, %v228
      %277 = vst.msk [vmem:[#allocation2 + $0xa8] sm:$0xff] %vm255, %v229
      %278 = vst.msk [vmem:[#allocation2 + $0xb0] sm:$0xff] %vm255, %v231
      %279 = vst.msk [vmem:[#allocation2 + $0xb8] sm:$0xff] %vm255, %v232
      %280 = vst.msk [vmem:[#allocation2 + $0xc0] sm:$0xff] %vm255, %v234
      %281 = vst.msk [vmem:[#allocation2 + $0xc8] sm:$0xff] %vm255, %v235
      %282 = vst.msk [vmem:[#allocation2 + $0xd0] sm:$0xff] %vm255, %v237
      %283 = vst.msk [vmem:[#allocation2 + $0xd8] sm:$0xff] %vm255, %v238
      %284 = vst.msk [vmem:[#allocation2 + $0xe0] sm:$0xff] %vm255, %v240
      %285 = vst.msk [vmem:[#allocation2 + $0xe8] sm:$0xff] %vm255, %v241
      %286 = vst.msk [vmem:[#allocation2 + $0xf0] sm:$0xff] %vm255, %v243
      %287 = vst.msk [vmem:[#allocation2 + $0xf8] sm:$0xff] %vm255, %v244
      %vm336 = vcmask 1046528
      %v337 = vrot.slane %v198, 1
      %v338 = vrot.slane %v199, 1
      %v339 = vsel %vm336, %v337, %v338
      %v340 = vrot.slane %v200, 1
      %v341 = vsel %vm336, %v338, %v340
      %v342 = vrot.slane %v201, 1
      %v343 = vrot.slane %v202, 1
      %v344 = vsel %vm336, %v342, %v343
      %v345 = vrot.slane %v203, 1
      %v346 = vsel %vm336, %v343, %v345
      %v347 = vrot.slane %v204, 1
      %v348 = vrot.slane %v205, 1
      %v349 = vsel %vm336, %v347, %v348
      %v350 = vrot.slane %v206, 1
      %v351 = vsel %vm336, %v348, %v350
      %v352 = vrot.slane %v207, 1
      %v353 = vrot.slane %v208, 1
      %v354 = vsel %vm336, %v352, %v353
      %v355 = vrot.slane %v209, 1
      %v356 = vsel %vm336, %v353, %v355
      %v357 = vrot.slane %v210, 1
      %v358 = vrot.slane %v211, 1
      %v359 = vsel %vm336, %v357, %v358
      %v360 = vrot.slane %v212, 1
      %v361 = vsel %vm336, %v358, %v360
      %v362 = vrot.slane %v213, 1
      %v363 = vrot.slane %v214, 1
      %v364 = vsel %vm336, %v362, %v363
      %v365 = vrot.slane %v215, 1
      %v366 = vsel %vm336, %v363, %v365
      %v367 = vrot.slane %v216, 1
      %v368 = vrot.slane %v217, 1
      %v369 = vsel %vm336, %v367, %v368
      %v370 = vrot.slane %v218, 1
      %v371 = vsel %vm336, %v368, %v370
      %v372 = vrot.slane %v219, 1
      %v373 = vrot.slane %v220, 1
      %v374 = vsel %vm336, %v372, %v373
      %v375 = vrot.slane %v221, 1
      %v376 = vsel %vm336, %v373, %v375
      %v377 = vrot.slane %v222, 1
      %v378 = vrot.slane %v223, 1
      %v379 = vsel %vm336, %v377, %v378
      %v380 = vrot.slane %v224, 1
      %v381 = vsel %vm336, %v378, %v380
      %v382 = vrot.slane %v225, 1
      %v383 = vrot.slane %v226, 1
      %v384 = vsel %vm336, %v382, %v383
      %v385 = vrot.slane %v227, 1
      %v386 = vsel %vm336, %v383, %v385
      %v387 = vrot.slane %v228, 1
      %v388 = vrot.slane %v229, 1
      %v389 = vsel %vm336, %v387, %v388
      %v390 = vrot.slane %v230, 1
      %v391 = vsel %vm336, %v388, %v390
      %v392 = vrot.slane %v231, 1
      %v393 = vrot.slane %v232, 1
      %v394 = vsel %vm336, %v392, %v393
      %v395 = vrot.slane %v233, 1
      %v396 = vsel %vm336, %v393, %v395
      %v397 = vrot.slane %v234, 1
      %v398 = vrot.slane %v235, 1
      %v399 = vsel %vm336, %v397, %v398
      %v400 = vrot.slane %v236, 1
      %v401 = vsel %vm336, %v398, %v400
      %v402 = vrot.slane %v237, 1
      %v403 = vrot.slane %v238, 1
      %v404 = vsel %vm336, %v402, %v403
      %v405 = vrot.slane %v239, 1
      %v406 = vsel %vm336, %v403, %v405
      %v407 = vrot.slane %v240, 1
      %v408 = vrot.slane %v241, 1
      %v409 = vsel %vm336, %v407, %v408
      %v410 = vrot.slane %v242, 1
      %v411 = vsel %vm336, %v408, %v410
      %v412 = vrot.slane %v243, 1
      %v413 = vrot.slane %v244, 1
      %v414 = vsel %vm336, %v412, %v413
      %v415 = vrot.slane %v245, 1
      %v416 = vsel %vm336, %v413, %v415
      %417 = vrot.lane.b32.xlu0 %v339, 8
      %v418 = vpop.permute.xlu0 %417
      %419 = vrot.lane.b32.xlu0 %v341, 8
      %v420 = vpop.permute.xlu0 %419
      %421 = vrot.lane.b32.xlu0 %v344, 8
      %v422 = vpop.permute.xlu0 %421
      %423 = vrot.lane.b32.xlu0 %v346, 8
      %v424 = vpop.permute.xlu0 %423
      %425 = vrot.lane.b32.xlu0 %v349, 8
      %v426 = vpop.permute.xlu0 %425
      %427 = vrot.lane.b32.xlu0 %v351, 8
      %v428 = vpop.permute.xlu0 %427
      %429 = vrot.lane.b32.xlu0 %v354, 8
      %v430 = vpop.permute.xlu0 %429
      %431 = vrot.lane.b32.xlu0 %v356, 8
      %v432 = vpop.permute.xlu0 %431
      %433 = vrot.lane.b32.xlu0 %v359, 8
      %v434 = vpop.permute.xlu0 %433
      %435 = vrot.lane.b32.xlu0 %v361, 8
      %v436 = vpop.permute.xlu0 %435
      %437 = vrot.lane.b32.xlu0 %v364, 8
      %v438 = vpop.permute.xlu0 %437
      %439 = vrot.lane.b32.xlu0 %v366, 8
      %v440 = vpop.permute.xlu0 %439
      %441 = vrot.lane.b32.xlu0 %v369, 8
      %v442 = vpop.permute.xlu0 %441
      %443 = vrot.lane.b32.xlu0 %v371, 8
      %v444 = vpop.permute.xlu0 %443
      %445 = vrot.lane.b32.xlu0 %v374, 8
      %v446 = vpop.permute.xlu0 %445
      %447 = vrot.lane.b32.xlu0 %v376, 8
      %v448 = vpop.permute.xlu0 %447
      %449 = vrot.lane.b32.xlu0 %v379, 8
      %v450 = vpop.permute.xlu0 %449
      %451 = vrot.lane.b32.xlu0 %v381, 8
      %v452 = vpop.permute.xlu0 %451
      %453 = vrot.lane.b32.xlu0 %v384, 8
      %v454 = vpop.permute.xlu0 %453
      %455 = vrot.lane.b32.xlu0 %v386, 8
      %v456 = vpop.permute.xlu0 %455
      %457 = vrot.lane.b32.xlu0 %v389, 8
      %v458 = vpop.permute.xlu0 %457
      %459 = vrot.lane.b32.xlu0 %v391, 8
      %v460 = vpop.permute.xlu0 %459
      %461 = vrot.lane.b32.xlu0 %v394, 8
      %v462 = vpop.permute.xlu0 %461
      %463 = vrot.lane.b32.xlu0 %v396, 8
      %v464 = vpop.permute.xlu0 %463
      %465 = vrot.lane.b32.xlu0 %v399, 8
      %v466 = vpop.permute.xlu0 %465
      %467 = vrot.lane.b32.xlu0 %v401, 8
      %v468 = vpop.permute.xlu0 %467
      %469 = vrot.lane.b32.xlu0 %v404, 8
      %v470 = vpop.permute.xlu0 %469
      %471 = vrot.lane.b32.xlu0 %v406, 8
      %v472 = vpop.permute.xlu0 %471
      %473 = vrot.lane.b32.xlu0 %v409, 8
      %v474 = vpop.permute.xlu0 %473
      %475 = vrot.lane.b32.xlu0 %v411, 8
      %v476 = vpop.permute.xlu0 %475
      %477 = vrot.lane.b32.xlu0 %v414, 8
      %v478 = vpop.permute.xlu0 %477
      %479 = vrot.lane.b32.xlu0 %v416, 8
      %v480 = vpop.permute.xlu0 %479
      %vm513 = vcmask 130112
      %514 = vst.msk [vmem:[#allocation2] sm:$0xff] %vm513, %v418
      %515 = vst.msk [vmem:[#allocation2 + $0x8] sm:$0xff] %vm513, %v420
      %516 = vst.msk [vmem:[#allocation2 + $0x10] sm:$0xff] %vm513, %v422
      %517 = vst.msk [vmem:[#allocation2 + $0x18] sm:$0xff] %vm513, %v424
      %518 = vst.msk [vmem:[#allocation2 + $0x20] sm:$0xff] %vm513, %v426
      %519 = vst.msk [vmem:[#allocation2 + $0x28] sm:$0xff] %vm513, %v428
      %520 = vst.msk [vmem:[#allocation2 + $0x30] sm:$0xff] %vm513, %v430
      %521 = vst.msk [vmem:[#allocation2 + $0x38] sm:$0xff] %vm513, %v432
      %522 = vst.msk [vmem:[#allocation2 + $0x40] sm:$0xff] %vm513, %v434
      %523 = vst.msk [vmem:[#allocation2 + $0x48] sm:$0xff] %vm513, %v436
      %524 = vst.msk [vmem:[#allocation2 + $0x50] sm:$0xff] %vm513, %v438
      %525 = vst.msk [vmem:[#allocation2 + $0x58] sm:$0xff] %vm513, %v440
      %526 = vst.msk [vmem:[#allocation2 + $0x60] sm:$0xff] %vm513, %v442
      %527 = vst.msk [vmem:[#allocation2 + $0x68] sm:$0xff] %vm513, %v444
      %528 = vst.msk [vmem:[#allocation2 + $0x70] sm:$0xff] %vm513, %v446
      %529 = vst.msk [vmem:[#allocation2 + $0x78] sm:$0xff] %vm513, %v448
      %530 = vst.msk [vmem:[#allocation2 + $0x80] sm:$0xff] %vm513, %v450
      %531 = vst.msk [vmem:[#allocation2 + $0x88] sm:$0xff] %vm513, %v452
      %532 = vst.msk [vmem:[#allocation2 + $0x90] sm:$0xff] %vm513, %v454
      %533 = vst.msk [vmem:[#allocation2 + $0x98] sm:$0xff] %vm513, %v456
      %534 = vst.msk [vmem:[#allocation2 + $0xa0] sm:$0xff] %vm513, %v458
      %535 = vst.msk [vmem:[#allocation2 + $0xa8] sm:$0xff] %vm513, %v460
      %536 = vst.msk [vmem:[#allocation2 + $0xb0] sm:$0xff] %vm513, %v462
      %537 = vst.msk [vmem:[#allocation2 + $0xb8] sm:$0xff] %vm513, %v464
      %538 = vst.msk [vmem:[#allocation2 + $0xc0] sm:$0xff] %vm513, %v466
      %539 = vst.msk [vmem:[#allocation2 + $0xc8] sm:$0xff] %vm513, %v468
      %540 = vst.msk [vmem:[#allocation2 + $0xd0] sm:$0xff] %vm513, %v470
      %541 = vst.msk [vmem:[#allocation2 + $0xd8] sm:$0xff] %vm513, %v472
      %542 = vst.msk [vmem:[#allocation2 + $0xe0] sm:$0xff] %vm513, %v474
      %543 = vst.msk [vmem:[#allocation2 + $0xe8] sm:$0xff] %vm513, %v476
      %544 = vst.msk [vmem:[#allocation2 + $0xf0] sm:$0xff] %vm513, %v478
      %545 = vst.msk [vmem:[#allocation2 + $0xf8] sm:$0xff] %vm513, %v480
      %vm546 = vcmask 1045504
      %v547 = vrot.slane %v198, 2
      %v548 = vrot.slane %v199, 2
      %v549 = vsel %vm546, %v547, %v548
      %v550 = vrot.slane %v200, 2
      %v551 = vsel %vm546, %v548, %v550
      %v552 = vrot.slane %v201, 2
      %v553 = vrot.slane %v202, 2
      %v554 = vsel %vm546, %v552, %v553
      %v555 = vrot.slane %v203, 2
      %v556 = vsel %vm546, %v553, %v555
      %v557 = vrot.slane %v204, 2
      %v558 = vrot.slane %v205, 2
      %v559 = vsel %vm546, %v557, %v558
      %v560 = vrot.slane %v206, 2
      %v561 = vsel %vm546, %v558, %v560
      %v562 = vrot.slane %v207, 2
      %v563 = vrot.slane %v208, 2
      %v564 = vsel %vm546, %v562, %v563
      %v565 = vrot.slane %v209, 2
      %v566 = vsel %vm546, %v563, %v565
      %v567 = vrot.slane %v210, 2
      %v568 = vrot.slane %v211, 2
      %v569 = vsel %vm546, %v567, %v568
      %v570 = vrot.slane %v212, 2
      %v571 = vsel %vm546, %v568, %v570
      %v572 = vrot.slane %v213, 2
      %v573 = vrot.slane %v214, 2
      %v574 = vsel %vm546, %v572, %v573
      %v575 = vrot.slane %v215, 2
      %v576 = vsel %vm546, %v573, %v575
      %v577 = vrot.slane %v216, 2
      %v578 = vrot.slane %v217, 2
      %v579 = vsel %vm546, %v577, %v578
      %v580 = vrot.slane %v218, 2
      %v581 = vsel %vm546, %v578, %v580
      %v582 = vrot.slane %v219, 2
      %v583 = vrot.slane %v220, 2
      %v584 = vsel %vm546, %v582, %v583
      %v585 = vrot.slane %v221, 2
      %v586 = vsel %vm546, %v583, %v585
      %v587 = vrot.slane %v222, 2
      %v588 = vrot.slane %v223, 2
      %v589 = vsel %vm546, %v587, %v588
      %v590 = vrot.slane %v224, 2
      %v591 = vsel %vm546, %v588, %v590
      %v592 = vrot.slane %v225, 2
      %v593 = vrot.slane %v226, 2
      %v594 = vsel %vm546, %v592, %v593
      %v595 = vrot.slane %v227, 2
      %v596 = vsel %vm546, %v593, %v595
      %v597 = vrot.slane %v228, 2
      %v598 = vrot.slane %v229, 2
      %v599 = vsel %vm546, %v597, %v598
      %v600 = vrot.slane %v230, 2
      %v601 = vsel %vm546, %v598, %v600
      %v602 = vrot.slane %v231, 2
      %v603 = vrot.slane %v232, 2
      %v604 = vsel %vm546, %v602, %v603
      %v605 = vrot.slane %v233, 2
      %v606 = vsel %vm546, %v603, %v605
      %v607 = vrot.slane %v234, 2
      %v608 = vrot.slane %v235, 2
      %v609 = vsel %vm546, %v607, %v608
      %v610 = vrot.slane %v236, 2
      %v611 = vsel %vm546, %v608, %v610
      %v612 = vrot.slane %v237, 2
      %v613 = vrot.slane %v238, 2
      %v614 = vsel %vm546, %v612, %v613
      %v615 = vrot.slane %v239, 2
      %v616 = vsel %vm546, %v613, %v615
      %v617 = vrot.slane %v240, 2
      %v618 = vrot.slane %v241, 2
      %v619 = vsel %vm546, %v617, %v618
      %v620 = vrot.slane %v242, 2
      %v621 = vsel %vm546, %v618, %v620
      %v622 = vrot.slane %v243, 2
      %v623 = vrot.slane %v244, 2
      %v624 = vsel %vm546, %v622, %v623
      %v625 = vrot.slane %v245, 2
      %v626 = vsel %vm546, %v623, %v625
      %627 = vrot.lane.b32.xlu0 %v549, 16
      %v628 = vpop.permute.xlu0 %627
      %629 = vrot.lane.b32.xlu0 %v551, 16
      %v630 = vpop.permute.xlu0 %629
      %631 = vrot.lane.b32.xlu0 %v554, 16
      %v632 = vpop.permute.xlu0 %631
      %633 = vrot.lane.b32.xlu0 %v556, 16
      %v634 = vpop.permute.xlu0 %633
      %635 = vrot.lane.b32.xlu0 %v559, 16
      %v636 = vpop.permute.xlu0 %635
      %637 = vrot.lane.b32.xlu0 %v561, 16
      %v638 = vpop.permute.xlu0 %637
      %639 = vrot.lane.b32.xlu0 %v564, 16
      %v640 = vpop.permute.xlu0 %639
      %641 = vrot.lane.b32.xlu0 %v566, 16
      %v642 = vpop.permute.xlu0 %641
      %643 = vrot.lane.b32.xlu0 %v569, 16
      %v644 = vpop.permute.xlu0 %643
      %645 = vrot.lane.b32.xlu0 %v571, 16
      %v646 = vpop.permute.xlu0 %645
      %647 = vrot.lane.b32.xlu0 %v574, 16
      %v648 = vpop.permute.xlu0 %647
      %649 = vrot.lane.b32.xlu0 %v576, 16
      %v650 = vpop.permute.xlu0 %649
      %651 = vrot.lane.b32.xlu0 %v579, 16
      %v652 = vpop.permute.xlu0 %651
      %653 = vrot.lane.b32.xlu0 %v581, 16
      %v654 = vpop.permute.xlu0 %653
      %655 = vrot.lane.b32.xlu0 %v584, 16
      %v656 = vpop.permute.xlu0 %655
      %657 = vrot.lane.b32.xlu0 %v586, 16
      %v658 = vpop.permute.xlu0 %657
      %659 = vrot.lane.b32.xlu0 %v589, 16
      %v660 = vpop.permute.xlu0 %659
      %661 = vrot.lane.b32.xlu0 %v591, 16
      %v662 = vpop.permute.xlu0 %661
      %663 = vrot.lane.b32.xlu0 %v594, 16
      %v664 = vpop.permute.xlu0 %663
      %665 = vrot.lane.b32.xlu0 %v596, 16
      %v666 = vpop.permute.xlu0 %665
      %667 = vrot.lane.b32.xlu0 %v599, 16
      %v668 = vpop.permute.xlu0 %667
      %669 = vrot.lane.b32.xlu0 %v601, 16
      %v670 = vpop.permute.xlu0 %669
      %671 = vrot.lane.b32.xlu0 %v604, 16
      %v672 = vpop.permute.xlu0 %671
      %673 = vrot.lane.b32.xlu0 %v606, 16
      %v674 = vpop.permute.xlu0 %673
      %675 = vrot.lane.b32.xlu0 %v609, 16
      %v676 = vpop.permute.xlu0 %675
      %677 = vrot.lane.b32.xlu0 %v611, 16
      %v678 = vpop.permute.xlu0 %677
      %679 = vrot.lane.b32.xlu0 %v614, 16
      %v680 = vpop.permute.xlu0 %679
      %681 = vrot.lane.b32.xlu0 %v616, 16
      %v682 = vpop.permute.xlu0 %681
      %683 = vrot.lane.b32.xlu0 %v619, 16
      %v684 = vpop.permute.xlu0 %683
      %685 = vrot.lane.b32.xlu0 %v621, 16
      %v686 = vpop.permute.xlu0 %685
      %687 = vrot.lane.b32.xlu0 %v624, 16
      %v688 = vpop.permute.xlu0 %687
      %689 = vrot.lane.b32.xlu0 %v626, 16
      %v690 = vpop.permute.xlu0 %689
      %vm723 = vcmask 195712
      %724 = vst.msk [vmem:[#allocation2] sm:$0xff] %vm723, %v628
      %725 = vst.msk [vmem:[#allocation2 + $0x8] sm:$0xff] %vm723, %v630
      %726 = vst.msk [vmem:[#allocation2 + $0x10] sm:$0xff] %vm723, %v632
      %727 = vst.msk [vmem:[#allocation2 + $0x18] sm:$0xff] %vm723, %v634
      %728 = vst.msk [vmem:[#allocation2 + $0x20] sm:$0xff] %vm723, %v636
      %729 = vst.msk [vmem:[#allocation2 + $0x28] sm:$0xff] %vm723, %v638
      %730 = vst.msk [vmem:[#allocation2 + $0x30] sm:$0xff] %vm723, %v640
      %731 = vst.msk [vmem:[#allocation2 + $0x38] sm:$0xff] %vm723, %v642
      %732 = vst.msk [vmem:[#allocation2 + $0x40] sm:$0xff] %vm723, %v644
      %733 = vst.msk [vmem:[#allocation2 + $0x48] sm:$0xff] %vm723, %v646
      %734 = vst.msk [vmem:[#allocation2 + $0x50] sm:$0xff] %vm723, %v648
      %735 = vst.msk [vmem:[#allocation2 + $0x58] sm:$0xff] %vm723, %v650
      %736 = vst.msk [vmem:[#allocation2 + $0x60] sm:$0xff] %vm723, %v652
      %737 = vst.msk [vmem:[#allocation2 + $0x68] sm:$0xff] %vm723, %v654
      %738 = vst.msk [vmem:[#allocation2 + $0x70] sm:$0xff] %vm723, %v656
      %739 = vst.msk [vmem:[#allocation2 + $0x78] sm:$0xff] %vm723, %v658
      %740 = vst.msk [vmem:[#allocation2 + $0x80] sm:$0xff] %vm723, %v660
      %741 = vst.msk [vmem:[#allocation2 + $0x88] sm:$0xff] %vm723, %v662
      %742 = vst.msk [vmem:[#allocation2 + $0x90] sm:$0xff] %vm723, %v664
      %743 = vst.msk [vmem:[#allocation2 + $0x98] sm:$0xff] %vm723, %v666
      %744 = vst.msk [vmem:[#allocation2 + $0xa0] sm:$0xff] %vm723, %v668
      %745 = vst.msk [vmem:[#allocation2 + $0xa8] sm:$0xff] %vm723, %v670
      %746 = vst.msk [vmem:[#allocation2 + $0xb0] sm:$0xff] %vm723, %v672
      %747 = vst.msk [vmem:[#allocation2 + $0xb8] sm:$0xff] %vm723, %v674
      %748 = vst.msk [vmem:[#allocation2 + $0xc0] sm:$0xff] %vm723, %v676
      %749 = vst.msk [vmem:[#allocation2 + $0xc8] sm:$0xff] %vm723, %v678
      %750 = vst.msk [vmem:[#allocation2 + $0xd0] sm:$0xff] %vm723, %v680
      %751 = vst.msk [vmem:[#allocation2 + $0xd8] sm:$0xff] %vm723, %v682
      %752 = vst.msk [vmem:[#allocation2 + $0xe0] sm:$0xff] %vm723, %v684
      %753 = vst.msk [vmem:[#allocation2 + $0xe8] sm:$0xff] %vm723, %v686
      %754 = vst.msk [vmem:[#allocation2 + $0xf0] sm:$0xff] %vm723, %v688
      %755 = vst.msk [vmem:[#allocation2 + $0xf8] sm:$0xff] %vm723, %v690
      %vm756 = vcmask 1044480
      %v757 = vrot.slane %v198, 3
      %v758 = vrot.slane %v199, 3
      %v759 = vsel %vm756, %v757, %v758
      %v760 = vrot.slane %v200, 3
      %v761 = vsel %vm756, %v758, %v760
      %v762 = vrot.slane %v201, 3
      %v763 = vrot.slane %v202, 3
      %v764 = vsel %vm756, %v762, %v763
      %v765 = vrot.slane %v203, 3
      %v766 = vsel %vm756, %v763, %v765
      %v767 = vrot.slane %v204, 3
      %v768 = vrot.slane %v205, 3
      %v769 = vsel %vm756, %v767, %v768
      %v770 = vrot.slane %v206, 3
      %v771 = vsel %vm756, %v768, %v770
      %v772 = vrot.slane %v207, 3
      %v773 = vrot.slane %v208, 3
      %v774 = vsel %vm756, %v772, %v773
      %v775 = vrot.slane %v209, 3
      %v776 = vsel %vm756, %v773, %v775
      %v777 = vrot.slane %v210, 3
      %v778 = vrot.slane %v211, 3
      %v779 = vsel %vm756, %v777, %v778
      %v780 = vrot.slane %v212, 3
      %v781 = vsel %vm756, %v778, %v780
      %v782 = vrot.slane %v213, 3
      %v783 = vrot.slane %v214, 3
      %v784 = vsel %vm756, %v782, %v783
      %v785 = vrot.slane %v215, 3
      %v786 = vsel %vm756, %v783, %v785
      %v787 = vrot.slane %v216, 3
      %v788 = vrot.slane %v217, 3
      %v789 = vsel %vm756, %v787, %v788
      %v790 = vrot.slane %v218, 3
      %v791 = vsel %vm756, %v788, %v790
      %v792 = vrot.slane %v219, 3
      %v793 = vrot.slane %v220, 3
      %v794 = vsel %vm756, %v792, %v793
      %v795 = vrot.slane %v221, 3
      %v796 = vsel %vm756, %v793, %v795
      %v797 = vrot.slane %v222, 3
      %v798 = vrot.slane %v223, 3
      %v799 = vsel %vm756, %v797, %v798
      %v800 = vrot.slane %v224, 3
      %v801 = vsel %vm756, %v798, %v800
      %v802 = vrot.slane %v225, 3
      %v803 = vrot.slane %v226, 3
      %v804 = vsel %vm756, %v802, %v803
      %v805 = vrot.slane %v227, 3
      %v806 = vsel %vm756, %v803, %v805
      %v807 = vrot.slane %v228, 3
      %v808 = vrot.slane %v229, 3
      %v809 = vsel %vm756, %v807, %v808
      %v810 = vrot.slane %v230, 3
      %v811 = vsel %vm756, %v808, %v810
      %v812 = vrot.slane %v231, 3
      %v813 = vrot.slane %v232, 3
      %v814 = vsel %vm756, %v812, %v813
      %v815 = vrot.slane %v233, 3
      %v816 = vsel %vm756, %v813, %v815
      %v817 = vrot.slane %v234, 3
      %v818 = vrot.slane %v235, 3
      %v819 = vsel %vm756, %v817, %v818
      %v820 = vrot.slane %v236, 3
      %v821 = vsel %vm756, %v818, %v820
      %v822 = vrot.slane %v237, 3
      %v823 = vrot.slane %v238, 3
      %v824 = vsel %vm756, %v822, %v823
      %v825 = vrot.slane %v239, 3
      %v826 = vsel %vm756, %v823, %v825
      %v827 = vrot.slane %v240, 3
      %v828 = vrot.slane %v241, 3
      %v829 = vsel %vm756, %v827, %v828
      %v830 = vrot.slane %v242, 3
      %v831 = vsel %vm756, %v828, %v830
      %v832 = vrot.slane %v243, 3
      %v833 = vrot.slane %v244, 3
      %v834 = vsel %vm756, %v832, %v833
      %v835 = vrot.slane %v245, 3
      %v836 = vsel %vm756, %v833, %v835
      %837 = vrot.lane.b32.xlu0 %v759, 24
      %v838 = vpop.permute.xlu0 %837
      %839 = vrot.lane.b32.xlu0 %v761, 24
      %v840 = vpop.permute.xlu0 %839
      %841 = vrot.lane.b32.xlu0 %v764, 24
      %v842 = vpop.permute.xlu0 %841
      %843 = vrot.lane.b32.xlu0 %v766, 24
      %v844 = vpop.permute.xlu0 %843
      %845 = vrot.lane.b32.xlu0 %v769, 24
      %v846 = vpop.permute.xlu0 %845
      %847 = vrot.lane.b32.xlu0 %v771, 24
      %v848 = vpop.permute.xlu0 %847
      %849 = vrot.lane.b32.xlu0 %v774, 24
      %v850 = vpop.permute.xlu0 %849
      %851 = vrot.lane.b32.xlu0 %v776, 24
      %v852 = vpop.permute.xlu0 %851
      %853 = vrot.lane.b32.xlu0 %v779, 24
      %v854 = vpop.permute.xlu0 %853
      %855 = vrot.lane.b32.xlu0 %v781, 24
      %v856 = vpop.permute.xlu0 %855
      %857 = vrot.lane.b32.xlu0 %v784, 24
      %v858 = vpop.permute.xlu0 %857
      %859 = vrot.lane.b32.xlu0 %v786, 24
      %v860 = vpop.permute.xlu0 %859
      %861 = vrot.lane.b32.xlu0 %v789, 24
      %v862 = vpop.permute.xlu0 %861
      %863 = vrot.lane.b32.xlu0 %v791, 24
      %v864 = vpop.permute.xlu0 %863
      %865 = vrot.lane.b32.xlu0 %v794, 24
      %v866 = vpop.permute.xlu0 %865
      %867 = vrot.lane.b32.xlu0 %v796, 24
      %v868 = vpop.permute.xlu0 %867
      %869 = vrot.lane.b32.xlu0 %v799, 24
      %v870 = vpop.permute.xlu0 %869
      %871 = vrot.lane.b32.xlu0 %v801, 24
      %v872 = vpop.permute.xlu0 %871
      %873 = vrot.lane.b32.xlu0 %v804, 24
      %v874 = vpop.permute.xlu0 %873
      %875 = vrot.lane.b32.xlu0 %v806, 24
      %v876 = vpop.permute.xlu0 %875
      %877 = vrot.lane.b32.xlu0 %v809, 24
      %v878 = vpop.permute.xlu0 %877
      %879 = vrot.lane.b32.xlu0 %v811, 24
      %v880 = vpop.permute.xlu0 %879
      %881 = vrot.lane.b32.xlu0 %v814, 24
      %v882 = vpop.permute.xlu0 %881
      %883 = vrot.lane.b32.xlu0 %v816, 24
      %v884 = vpop.permute.xlu0 %883
      %885 = vrot.lane.b32.xlu0 %v819, 24
      %v886 = vpop.permute.xlu0 %885
      %887 = vrot.lane.b32.xlu0 %v821, 24
      %v888 = vpop.permute.xlu0 %887
      %889 = vrot.lane.b32.xlu0 %v824, 24
      %v890 = vpop.permute.xlu0 %889
      %891 = vrot.lane.b32.xlu0 %v826, 24
      %v892 = vpop.permute.xlu0 %891
      %893 = vrot.lane.b32.xlu0 %v829, 24
      %v894 = vpop.permute.xlu0 %893
      %895 = vrot.lane.b32.xlu0 %v831, 24
      %v896 = vpop.permute.xlu0 %895
      %897 = vrot.lane.b32.xlu0 %v834, 24
      %v898 = vpop.permute.xlu0 %897
      %899 = vrot.lane.b32.xlu0 %v836, 24
      %v900 = vpop.permute.xlu0 %899
      %vm933 = vcmask 261312
      %934 = vst.msk [vmem:[#allocation2] sm:$0xff] %vm933, %v838
      %935 = vst.msk [vmem:[#allocation2 + $0x8] sm:$0xff] %vm933, %v840
      %936 = vst.msk [vmem:[#allocation2 + $0x10] sm:$0xff] %vm933, %v842
      %937 = vst.msk [vmem:[#allocation2 + $0x18] sm:$0xff] %vm933, %v844
      %938 = vst.msk [vmem:[#allocation2 + $0x20] sm:$0xff] %vm933, %v846
      %939 = vst.msk [vmem:[#allocation2 + $0x28] sm:$0xff] %vm933, %v848
      %940 = vst.msk [vmem:[#allocation2 + $0x30] sm:$0xff] %vm933, %v850
      %941 = vst.msk [vmem:[#allocation2 + $0x38] sm:$0xff] %vm933, %v852
      %942 = vst.msk [vmem:[#allocation2 + $0x40] sm:$0xff] %vm933, %v854
      %943 = vst.msk [vmem:[#allocation2 + $0x48] sm:$0xff] %vm933, %v856
      %944 = vst.msk [vmem:[#allocation2 + $0x50] sm:$0xff] %vm933, %v858
      %945 = vst.msk [vmem:[#allocation2 + $0x58] sm:$0xff] %vm933, %v860
      %946 = vst.msk [vmem:[#allocation2 + $0x60] sm:$0xff] %vm933, %v862
      %947 = vst.msk [vmem:[#allocation2 + $0x68] sm:$0xff] %vm933, %v864
      %948 = vst.msk [vmem:[#allocation2 + $0x70] sm:$0xff] %vm933, %v866
      %949 = vst.msk [vmem:[#allocation2 + $0x78] sm:$0xff] %vm933, %v868
      %950 = vst.msk [vmem:[#allocation2 + $0x80] sm:$0xff] %vm933, %v870
      %951 = vst.msk [vmem:[#allocation2 + $0x88] sm:$0xff] %vm933, %v872
      %952 = vst.msk [vmem:[#allocation2 + $0x90] sm:$0xff] %vm933, %v874
      %953 = vst.msk [vmem:[#allocation2 + $0x98] sm:$0xff] %vm933, %v876
      %954 = vst.msk [vmem:[#allocation2 + $0xa0] sm:$0xff] %vm933, %v878
      %955 = vst.msk [vmem:[#allocation2 + $0xa8] sm:$0xff] %vm933, %v880
      %956 = vst.msk [vmem:[#allocation2 + $0xb0] sm:$0xff] %vm933, %v882
      %957 = vst.msk [vmem:[#allocation2 + $0xb8] sm:$0xff] %vm933, %v884
      %958 = vst.msk [vmem:[#allocation2 + $0xc0] sm:$0xff] %vm933, %v886
      %959 = vst.msk [vmem:[#allocation2 + $0xc8] sm:$0xff] %vm933, %v888
      %960 = vst.msk [vmem:[#allocation2 + $0xd0] sm:$0xff] %vm933, %v890
      %961 = vst.msk [vmem:[#allocation2 + $0xd8] sm:$0xff] %vm933, %v892
      %962 = vst.msk [vmem:[#allocation2 + $0xe0] sm:$0xff] %vm933, %v894
      %963 = vst.msk [vmem:[#allocation2 + $0xe8] sm:$0xff] %vm933, %v896
      %964 = vst.msk [vmem:[#allocation2 + $0xf0] sm:$0xff] %vm933, %v898
      %965 = vst.msk [vmem:[#allocation2 + $0xf8] sm:$0xff] %vm933, %v900
      %968 = vrot.lane.b32.xlu0 %v201, 32
      %v969 = vpop.permute.xlu0 %968
      %970 = vrot.lane.b32.xlu0 %v202, 32
      %v971 = vpop.permute.xlu0 %970
      %972 = vrot.lane.b32.xlu0 %v204, 32
      %v973 = vpop.permute.xlu0 %972
      %974 = vrot.lane.b32.xlu0 %v205, 32
      %v975 = vpop.permute.xlu0 %974
      %976 = vrot.lane.b32.xlu0 %v207, 32
      %v977 = vpop.permute.xlu0 %976
      %978 = vrot.lane.b32.xlu0 %v208, 32
      %v979 = vpop.permute.xlu0 %978
      %980 = vrot.lane.b32.xlu0 %v210, 32
      %v981 = vpop.permute.xlu0 %980
      %982 = vrot.lane.b32.xlu0 %v211, 32
      %v983 = vpop.permute.xlu0 %982
      %984 = vrot.lane.b32.xlu0 %v213, 32
      %v985 = vpop.permute.xlu0 %984
      %986 = vrot.lane.b32.xlu0 %v214, 32
      %v987 = vpop.permute.xlu0 %986
      %988 = vrot.lane.b32.xlu0 %v216, 32
      %v989 = vpop.permute.xlu0 %988
      %990 = vrot.lane.b32.xlu0 %v217, 32
      %v991 = vpop.permute.xlu0 %990
      %992 = vrot.lane.b32.xlu0 %v219, 32
      %v993 = vpop.permute.xlu0 %992
      %994 = vrot.lane.b32.xlu0 %v220, 32
      %v995 = vpop.permute.xlu0 %994
      %996 = vrot.lane.b32.xlu0 %v222, 32
      %v997 = vpop.permute.xlu0 %996
      %998 = vrot.lane.b32.xlu0 %v223, 32
      %v999 = vpop.permute.xlu0 %998
      %1000 = vrot.lane.b32.xlu0 %v225, 32
      %v1001 = vpop.permute.xlu0 %1000
      %1002 = vrot.lane.b32.xlu0 %v226, 32
      %v1003 = vpop.permute.xlu0 %1002
      %1004 = vrot.lane.b32.xlu0 %v228, 32
      %v1005 = vpop.permute.xlu0 %1004
      %1006 = vrot.lane.b32.xlu0 %v229, 32
      %v1007 = vpop.permute.xlu0 %1006
      %1008 = vrot.lane.b32.xlu0 %v231, 32
      %v1009 = vpop.permute.xlu0 %1008
      %1010 = vrot.lane.b32.xlu0 %v232, 32
      %v1011 = vpop.permute.xlu0 %1010
      %1012 = vrot.lane.b32.xlu0 %v234, 32
      %v1013 = vpop.permute.xlu0 %1012
      %1014 = vrot.lane.b32.xlu0 %v235, 32
      %v1015 = vpop.permute.xlu0 %1014
      %1016 = vrot.lane.b32.xlu0 %v237, 32
      %v1017 = vpop.permute.xlu0 %1016
      %1018 = vrot.lane.b32.xlu0 %v238, 32
      %v1019 = vpop.permute.xlu0 %1018
      %1020 = vrot.lane.b32.xlu0 %v240, 32
      %v1021 = vpop.permute.xlu0 %1020
      %1022 = vrot.lane.b32.xlu0 %v241, 32
      %v1023 = vpop.permute.xlu0 %1022
      %1024 = vrot.lane.b32.xlu0 %v243, 32
      %v1025 = vpop.permute.xlu0 %1024
      %1026 = vrot.lane.b32.xlu0 %v244, 32
      %v1027 = vpop.permute.xlu0 %1026
      %1028 = vrot.lane.b32.xlu0 %v246, 32
      %v1029 = vpop.permute.xlu0 %1028
      %1030 = vrot.lane.b32.xlu0 %v247, 32
      %v1031 = vpop.permute.xlu0 %1030
      %vm1064 = vcmask 326912
      %1065 = vst.msk [vmem:[#allocation2] sm:$0xff] %vm1064, %v969
      %1066 = vst.msk [vmem:[#allocation2 + $0x8] sm:$0xff] %vm1064, %v971
      %1067 = vst.msk [vmem:[#allocation2 + $0x10] sm:$0xff] %vm1064, %v973
      %1068 = vst.msk [vmem:[#allocation2 + $0x18] sm:$0xff] %vm1064, %v975
      %1069 = vst.msk [vmem:[#allocation2 + $0x20] sm:$0xff] %vm1064, %v977
      %1070 = vst.msk [vmem:[#allocation2 + $0x28] sm:$0xff] %vm1064, %v979
      %1071 = vst.msk [vmem:[#allocation2 + $0x30] sm:$0xff] %vm1064, %v981
      %1072 = vst.msk [vmem:[#allocation2 + $0x38] sm:$0xff] %vm1064, %v983
      %1073 = vst.msk [vmem:[#allocation2 + $0x40] sm:$0xff] %vm1064, %v985
      %1074 = vst.msk [vmem:[#allocation2 + $0x48] sm:$0xff] %vm1064, %v987
      %1075 = vst.msk [vmem:[#allocation2 + $0x50] sm:$0xff] %vm1064, %v989
      %1076 = vst.msk [vmem:[#allocation2 + $0x58] sm:$0xff] %vm1064, %v991
      %1077 = vst.msk [vmem:[#allocation2 + $0x60] sm:$0xff] %vm1064, %v993
      %1078 = vst.msk [vmem:[#allocation2 + $0x68] sm:$0xff] %vm1064, %v995
      %1079 = vst.msk [vmem:[#allocation2 + $0x70] sm:$0xff] %vm1064, %v997
      %1080 = vst.msk [vmem:[#allocation2 + $0x78] sm:$0xff] %vm1064, %v999
      %1081 = vst.msk [vmem:[#allocation2 + $0x80] sm:$0xff] %vm1064, %v1001
      %1082 = vst.msk [vmem:[#allocation2 + $0x88] sm:$0xff] %vm1064, %v1003
      %1083 = vst.msk [vmem:[#allocation2 + $0x90] sm:$0xff] %vm1064, %v1005
      %1084 = vst.msk [vmem:[#allocation2 + $0x98] sm:$0xff] %vm1064, %v1007
      %1085 = vst.msk [vmem:[#allocation2 + $0xa0] sm:$0xff] %vm1064, %v1009
      %1086 = vst.msk [vmem:[#allocation2 + $0xa8] sm:$0xff] %vm1064, %v1011
      %1087 = vst.msk [vmem:[#allocation2 + $0xb0] sm:$0xff] %vm1064, %v1013
      %1088 = vst.msk [vmem:[#allocation2 + $0xb8] sm:$0xff] %vm1064, %v1015
      %1089 = vst.msk [vmem:[#allocation2 + $0xc0] sm:$0xff] %vm1064, %v1017
      %1090 = vst.msk [vmem:[#allocation2 + $0xc8] sm:$0xff] %vm1064, %v1019
      %1091 = vst.msk [vmem:[#allocation2 + $0xd0] sm:$0xff] %vm1064, %v1021
      %1092 = vst.msk [vmem:[#allocation2 + $0xd8] sm:$0xff] %vm1064, %v1023
      %1093 = vst.msk [vmem:[#allocation2 + $0xe0] sm:$0xff] %vm1064, %v1025
      %1094 = vst.msk [vmem:[#allocation2 + $0xe8] sm:$0xff] %vm1064, %v1027
      %1095 = vst.msk [vmem:[#allocation2 + $0xf0] sm:$0xff] %vm1064, %v1029
      %1096 = vst.msk [vmem:[#allocation2 + $0xf8] sm:$0xff] %vm1064, %v1031
      %v1098 = vrot.slane %v246, 1
      %v1099 = vrot.slane %v247, 1
      %v1100 = vsel %vm336, %v1098, %v1099
      %v1101 = vrot.slane %v248, 1
      %v1102 = vsel %vm336, %v1099, %v1101
      %1103 = vrot.lane.b32.xlu0 %v344, 40
      %v1104 = vpop.permute.xlu0 %1103
      %1105 = vrot.lane.b32.xlu0 %v346, 40
      %v1106 = vpop.permute.xlu0 %1105
      %1107 = vrot.lane.b32.xlu0 %v349, 40
      %v1108 = vpop.permute.xlu0 %1107
      %1109 = vrot.lane.b32.xlu0 %v351, 40
      %v1110 = vpop.permute.xlu0 %1109
      %1111 = vrot.lane.b32.xlu0 %v354, 40
      %v1112 = vpop.permute.xlu0 %1111
      %1113 = vrot.lane.b32.xlu0 %v356, 40
      %v1114 = vpop.permute.xlu0 %1113
      %1115 = vrot.lane.b32.xlu0 %v359, 40
      %v1116 = vpop.permute.xlu0 %1115
      %1117 = vrot.lane.b32.xlu0 %v361, 40
      %v1118 = vpop.permute.xlu0 %1117
      %1119 = vrot.lane.b32.xlu0 %v364, 40
      %v1120 = vpop.permute.xlu0 %1119
      %1121 = vrot.lane.b32.xlu0 %v366, 40
      %v1122 = vpop.permute.xlu0 %1121
      %1123 = vrot.lane.b32.xlu0 %v369, 40
      %v1124 = vpop.permute.xlu0 %1123
      %1125 = vrot.lane.b32.xlu0 %v371, 40
      %v1126 = vpop.permute.xlu0 %1125
      %1127 = vrot.lane.b32.xlu0 %v374, 40
      %v1128 = vpop.permute.xlu0 %1127
      %1129 = vrot.lane.b32.xlu0 %v376, 40
      %v1130 = vpop.permute.xlu0 %1129
      %1131 = vrot.lane.b32.xlu0 %v379, 40
      %v1132 = vpop.permute.xlu0 %1131
      %1133 = vrot.lane.b32.xlu0 %v381, 40
      %v1134 = vpop.permute.xlu0 %1133
      %1135 = vrot.lane.b32.xlu0 %v384, 40
      %v1136 = vpop.permute.xlu0 %1135
      %1137 = vrot.lane.b32.xlu0 %v386, 40
      %v1138 = vpop.permute.xlu0 %1137
      %1139 = vrot.lane.b32.xlu0 %v389, 40
      %v1140 = vpop.permute.xlu0 %1139
      %1141 = vrot.lane.b32.xlu0 %v391, 40
      %v1142 = vpop.permute.xlu0 %1141
      %1143 = vrot.lane.b32.xlu0 %v394, 40
      %v1144 = vpop.permute.xlu0 %1143
      %1145 = vrot.lane.b32.xlu0 %v396, 40
      %v1146 = vpop.permute.xlu0 %1145
      %1147 = vrot.lane.b32.xlu0 %v399, 40
      %v1148 = vpop.permute.xlu0 %1147
      %1149 = vrot.lane.b32.xlu0 %v401, 40
      %v1150 = vpop.permute.xlu0 %1149
      %1151 = vrot.lane.b32.xlu0 %v404, 40
      %v1152 = vpop.permute.xlu0 %1151
      %1153 = vrot.lane.b32.xlu0 %v406, 40
      %v1154 = vpop.permute.xlu0 %1153
      %1155 = vrot.lane.b32.xlu0 %v409, 40
      %v1156 = vpop.permute.xlu0 %1155
      %1157 = vrot.lane.b32.xlu0 %v411, 40
      %v1158 = vpop.permute.xlu0 %1157
      %1159 = vrot.lane.b32.xlu0 %v414, 40
      %v1160 = vpop.permute.xlu0 %1159
      %1161 = vrot.lane.b32.xlu0 %v416, 40
      %v1162 = vpop.permute.xlu0 %1161
      %1163 = vrot.lane.b32.xlu0 %v1100, 40
      %v1164 = vpop.permute.xlu0 %1163
      %1165 = vrot.lane.b32.xlu0 %v1102, 40
      %v1166 = vpop.permute.xlu0 %1165
      %vm1199 = vcmask 392512
      %1200 = vst.msk [vmem:[#allocation2] sm:$0xff] %vm1199, %v1104
      %1201 = vst.msk [vmem:[#allocation2 + $0x8] sm:$0xff] %vm1199, %v1106
      %1202 = vst.msk [vmem:[#allocation2 + $0x10] sm:$0xff] %vm1199, %v1108
      %1203 = vst.msk [vmem:[#allocation2 + $0x18] sm:$0xff] %vm1199, %v1110
      %1204 = vst.msk [vmem:[#allocation2 + $0x20] sm:$0xff] %vm1199, %v1112
      %1205 = vst.msk [vmem:[#allocation2 + $0x28] sm:$0xff] %vm1199, %v1114
      %1206 = vst.msk [vmem:[#allocation2 + $0x30] sm:$0xff] %vm1199, %v1116
      %1207 = vst.msk [vmem:[#allocation2 + $0x38] sm:$0xff] %vm1199, %v1118
      %1208 = vst.msk [vmem:[#allocation2 + $0x40] sm:$0xff] %vm1199, %v1120
      %1209 = vst.msk [vmem:[#allocation2 + $0x48] sm:$0xff] %vm1199, %v1122
      %1210 = vst.msk [vmem:[#allocation2 + $0x50] sm:$0xff] %vm1199, %v1124
      %1211 = vst.msk [vmem:[#allocation2 + $0x58] sm:$0xff] %vm1199, %v1126
      %1212 = vst.msk [vmem:[#allocation2 + $0x60] sm:$0xff] %vm1199, %v1128
      %1213 = vst.msk [vmem:[#allocation2 + $0x68] sm:$0xff] %vm1199, %v1130
      %1214 = vst.msk [vmem:[#allocation2 + $0x70] sm:$0xff] %vm1199, %v1132
      %1215 = vst.msk [vmem:[#allocation2 + $0x78] sm:$0xff] %vm1199, %v1134
      %1216 = vst.msk [vmem:[#allocation2 + $0x80] sm:$0xff] %vm1199, %v1136
      %1217 = vst.msk [vmem:[#allocation2 + $0x88] sm:$0xff] %vm1199, %v1138
      %1218 = vst.msk [vmem:[#allocation2 + $0x90] sm:$0xff] %vm1199, %v1140
      %1219 = vst.msk [vmem:[#allocation2 + $0x98] sm:$0xff] %vm1199, %v1142
      %1220 = vst.msk [vmem:[#allocation2 + $0xa0] sm:$0xff] %vm1199, %v1144
      %1221 = vst.msk [vmem:[#allocation2 + $0xa8] sm:$0xff] %vm1199, %v1146
      %1222 = vst.msk [vmem:[#allocation2 + $0xb0] sm:$0xff] %vm1199, %v1148
      %1223 = vst.msk [vmem:[#allocation2 + $0xb8] sm:$0xff] %vm1199, %v1150
      %1224 = vst.msk [vmem:[#allocation2 + $0xc0] sm:$0xff] %vm1199, %v1152
      %1225 = vst.msk [vmem:[#allocation2 + $0xc8] sm:$0xff] %vm1199, %v1154
      %1226 = vst.msk [vmem:[#allocation2 + $0xd0] sm:$0xff] %vm1199, %v1156
      %1227 = vst.msk [vmem:[#allocation2 + $0xd8] sm:$0xff] %vm1199, %v1158
      %1228 = vst.msk [vmem:[#allocation2 + $0xe0] sm:$0xff] %vm1199, %v1160
      %1229 = vst.msk [vmem:[#allocation2 + $0xe8] sm:$0xff] %vm1199, %v1162
      %1230 = vst.msk [vmem:[#allocation2 + $0xf0] sm:$0xff] %vm1199, %v1164
      %1231 = vst.msk [vmem:[#allocation2 + $0xf8] sm:$0xff] %vm1199, %v1166
      %v1232 = vrot.slane %v246, 2
      %v1233 = vrot.slane %v247, 2
      %v1234 = vsel %vm546, %v1232, %v1233
      %v1235 = vrot.slane %v248, 2
      %v1236 = vsel %vm546, %v1233, %v1235
      %1237 = vrot.lane.b32.xlu0 %v554, 48
      %v1238 = vpop.permute.xlu0 %1237
      %1239 = vrot.lane.b32.xlu0 %v556, 48
      %v1240 = vpop.permute.xlu0 %1239
      %1241 = vrot.lane.b32.xlu0 %v559, 48
      %v1242 = vpop.permute.xlu0 %1241
      %1243 = vrot.lane.b32.xlu0 %v561, 48
      %v1244 = vpop.permute.xlu0 %1243
      %1245 = vrot.lane.b32.xlu0 %v564, 48
      %v1246 = vpop.permute.xlu0 %1245
      %1247 = vrot.lane.b32.xlu0 %v566, 48
      %v1248 = vpop.permute.xlu0 %1247
      %1249 = vrot.lane.b32.xlu0 %v569, 48
      %v1250 = vpop.permute.xlu0 %1249
      %1251 = vrot.lane.b32.xlu0 %v571, 48
      %v1252 = vpop.permute.xlu0 %1251
      %1253 = vrot.lane.b32.xlu0 %v574, 48
      %v1254 = vpop.permute.xlu0 %1253
      %1255 = vrot.lane.b32.xlu0 %v576, 48
      %v1256 = vpop.permute.xlu0 %1255
      %1257 = vrot.lane.b32.xlu0 %v579, 48
      %v1258 = vpop.permute.xlu0 %1257
      %1259 = vrot.lane.b32.xlu0 %v581, 48
      %v1260 = vpop.permute.xlu0 %1259
      %1261 = vrot.lane.b32.xlu0 %v584, 48
      %v1262 = vpop.permute.xlu0 %1261
      %1263 = vrot.lane.b32.xlu0 %v586, 48
      %v1264 = vpop.permute.xlu0 %1263
      %1265 = vrot.lane.b32.xlu0 %v589, 48
      %v1266 = vpop.permute.xlu0 %1265
      %1267 = vrot.lane.b32.xlu0 %v591, 48
      %v1268 = vpop.permute.xlu0 %1267
      %1269 = vrot.lane.b32.xlu0 %v594, 48
      %v1270 = vpop.permute.xlu0 %1269
      %1271 = vrot.lane.b32.xlu0 %v596, 48
      %v1272 = vpop.permute.xlu0 %1271
      %1273 = vrot.lane.b32.xlu0 %v599, 48
      %v1274 = vpop.permute.xlu0 %1273
      %1275 = vrot.lane.b32.xlu0 %v601, 48
      %v1276 = vpop.permute.xlu0 %1275
      %1277 = vrot.lane.b32.xlu0 %v604, 48
      %v1278 = vpop.permute.xlu0 %1277
      %1279 = vrot.lane.b32.xlu0 %v606, 48
      %v1280 = vpop.permute.xlu0 %1279
      %1281 = vrot.lane.b32.xlu0 %v609, 48
      %v1282 = vpop.permute.xlu0 %1281
      %1283 = vrot.lane.b32.xlu0 %v611, 48
      %v1284 = vpop.permute.xlu0 %1283
      %1285 = vrot.lane.b32.xlu0 %v614, 48
      %v1286 = vpop.permute.xlu0 %1285
      %1287 = vrot.lane.b32.xlu0 %v616, 48
      %v1288 = vpop.permute.xlu0 %1287
      %1289 = vrot.lane.b32.xlu0 %v619, 48
      %v1290 = vpop.permute.xlu0 %1289
      %1291 = vrot.lane.b32.xlu0 %v621, 48
      %v1292 = vpop.permute.xlu0 %1291
      %1293 = vrot.lane.b32.xlu0 %v624, 48
      %v1294 = vpop.permute.xlu0 %1293
      %1295 = vrot.lane.b32.xlu0 %v626, 48
      %v1296 = vpop.permute.xlu0 %1295
      %1297 = vrot.lane.b32.xlu0 %v1234, 48
      %v1298 = vpop.permute.xlu0 %1297
      %1299 = vrot.lane.b32.xlu0 %v1236, 48
      %v1300 = vpop.permute.xlu0 %1299
      %vm1333 = vcmask 458112
      %1334 = vst.msk [vmem:[#allocation2] sm:$0xff] %vm1333, %v1238
      %1335 = vst.msk [vmem:[#allocation2 + $0x8] sm:$0xff] %vm1333, %v1240
      %1336 = vst.msk [vmem:[#allocation2 + $0x10] sm:$0xff] %vm1333, %v1242
      %1337 = vst.msk [vmem:[#allocation2 + $0x18] sm:$0xff] %vm1333, %v1244
      %1338 = vst.msk [vmem:[#allocation2 + $0x20] sm:$0xff] %vm1333, %v1246
      %1339 = vst.msk [vmem:[#allocation2 + $0x28] sm:$0xff] %vm1333, %v1248
      %1340 = vst.msk [vmem:[#allocation2 + $0x30] sm:$0xff] %vm1333, %v1250
      %1341 = vst.msk [vmem:[#allocation2 + $0x38] sm:$0xff] %vm1333, %v1252
      %1342 = vst.msk [vmem:[#allocation2 + $0x40] sm:$0xff] %vm1333, %v1254
      %1343 = vst.msk [vmem:[#allocation2 + $0x48] sm:$0xff] %vm1333, %v1256
      %1344 = vst.msk [vmem:[#allocation2 + $0x50] sm:$0xff] %vm1333, %v1258
      %1345 = vst.msk [vmem:[#allocation2 + $0x58] sm:$0xff] %vm1333, %v1260
      %1346 = vst.msk [vmem:[#allocation2 + $0x60] sm:$0xff] %vm1333, %v1262
      %1347 = vst.msk [vmem:[#allocation2 + $0x68] sm:$0xff] %vm1333, %v1264
      %1348 = vst.msk [vmem:[#allocation2 + $0x70] sm:$0xff] %vm1333, %v1266
      %1349 = vst.msk [vmem:[#allocation2 + $0x78] sm:$0xff] %vm1333, %v1268
      %1350 = vst.msk [vmem:[#allocation2 + $0x80] sm:$0xff] %vm1333, %v1270
      %1351 = vst.msk [vmem:[#allocation2 + $0x88] sm:$0xff] %vm1333, %v1272
      %1352 = vst.msk [vmem:[#allocation2 + $0x90] sm:$0xff] %vm1333, %v1274
      %1353 = vst.msk [vmem:[#allocation2 + $0x98] sm:$0xff] %vm1333, %v1276
      %1354 = vst.msk [vmem:[#allocation2 + $0xa0] sm:$0xff] %vm1333, %v1278
      %1355 = vst.msk [vmem:[#allocation2 + $0xa8] sm:$0xff] %vm1333, %v1280
      %1356 = vst.msk [vmem:[#allocation2 + $0xb0] sm:$0xff] %vm1333, %v1282
      %1357 = vst.msk [vmem:[#allocation2 + $0xb8] sm:$0xff] %vm1333, %v1284
      %1358 = vst.msk [vmem:[#allocation2 + $0xc0] sm:$0xff] %vm1333, %v1286
      %1359 = vst.msk [vmem:[#allocation2 + $0xc8] sm:$0xff] %vm1333, %v1288
      %1360 = vst.msk [vmem:[#allocation2 + $0xd0] sm:$0xff] %vm1333, %v1290
      %1361 = vst.msk [vmem:[#allocation2 + $0xd8] sm:$0xff] %vm1333, %v1292
      %1362 = vst.msk [vmem:[#allocation2 + $0xe0] sm:$0xff] %vm1333, %v1294
      %1363 = vst.msk [vmem:[#allocation2 + $0xe8] sm:$0xff] %vm1333, %v1296
      %1364 = vst.msk [vmem:[#allocation2 + $0xf0] sm:$0xff] %vm1333, %v1298
      %1365 = vst.msk [vmem:[#allocation2 + $0xf8] sm:$0xff] %vm1333, %v1300
      %v1366 = vrot.slane %v246, 3
      %v1367 = vrot.slane %v247, 3
      %v1368 = vsel %vm756, %v1366, %v1367
      %v1369 = vrot.slane %v248, 3
      %v1370 = vsel %vm756, %v1367, %v1369
      %1371 = vrot.lane.b32.xlu0 %v764, 56
      %v1372 = vpop.permute.xlu0 %1371
      %1373 = vrot.lane.b32.xlu0 %v766, 56
      %v1374 = vpop.permute.xlu0 %1373
      %1375 = vrot.lane.b32.xlu0 %v769, 56
      %v1376 = vpop.permute.xlu0 %1375
      %1377 = vrot.lane.b32.xlu0 %v771, 56
      %v1378 = vpop.permute.xlu0 %1377
      %1379 = vrot.lane.b32.xlu0 %v774, 56
      %v1380 = vpop.permute.xlu0 %1379
      %1381 = vrot.lane.b32.xlu0 %v776, 56
      %v1382 = vpop.permute.xlu0 %1381
      %1383 = vrot.lane.b32.xlu0 %v779, 56
      %v1384 = vpop.permute.xlu0 %1383
      %1385 = vrot.lane.b32.xlu0 %v781, 56
      %v1386 = vpop.permute.xlu0 %1385
      %1387 = vrot.lane.b32.xlu0 %v784, 56
      %v1388 = vpop.permute.xlu0 %1387
      %1389 = vrot.lane.b32.xlu0 %v786, 56
      %v1390 = vpop.permute.xlu0 %1389
      %1391 = vrot.lane.b32.xlu0 %v789, 56
      %v1392 = vpop.permute.xlu0 %1391
      %1393 = vrot.lane.b32.xlu0 %v791, 56
      %v1394 = vpop.permute.xlu0 %1393
      %1395 = vrot.lane.b32.xlu0 %v794, 56
      %v1396 = vpop.permute.xlu0 %1395
      %1397 = vrot.lane.b32.xlu0 %v796, 56
      %v1398 = vpop.permute.xlu0 %1397
      %1399 = vrot.lane.b32.xlu0 %v799, 56
      %v1400 = vpop.permute.xlu0 %1399
      %1401 = vrot.lane.b32.xlu0 %v801, 56
      %v1402 = vpop.permute.xlu0 %1401
      %1403 = vrot.lane.b32.xlu0 %v804, 56
      %v1404 = vpop.permute.xlu0 %1403
      %1405 = vrot.lane.b32.xlu0 %v806, 56
      %v1406 = vpop.permute.xlu0 %1405
      %1407 = vrot.lane.b32.xlu0 %v809, 56
      %v1408 = vpop.permute.xlu0 %1407
      %1409 = vrot.lane.b32.xlu0 %v811, 56
      %v1410 = vpop.permute.xlu0 %1409
      %1411 = vrot.lane.b32.xlu0 %v814, 56
      %v1412 = vpop.permute.xlu0 %1411
      %1413 = vrot.lane.b32.xlu0 %v816, 56
      %v1414 = vpop.permute.xlu0 %1413
      %1415 = vrot.lane.b32.xlu0 %v819, 56
      %v1416 = vpop.permute.xlu0 %1415
      %1417 = vrot.lane.b32.xlu0 %v821, 56
      %v1418 = vpop.permute.xlu0 %1417
      %1419 = vrot.lane.b32.xlu0 %v824, 56
      %v1420 = vpop.permute.xlu0 %1419
      %1421 = vrot.lane.b32.xlu0 %v826, 56
      %v1422 = vpop.permute.xlu0 %1421
      %1423 = vrot.lane.b32.xlu0 %v829, 56
      %v1424 = vpop.permute.xlu0 %1423
      %1425 = vrot.lane.b32.xlu0 %v831, 56
      %v1426 = vpop.permute.xlu0 %1425
      %1427 = vrot.lane.b32.xlu0 %v834, 56
      %v1428 = vpop.permute.xlu0 %1427
      %1429 = vrot.lane.b32.xlu0 %v836, 56
      %v1430 = vpop.permute.xlu0 %1429
      %1431 = vrot.lane.b32.xlu0 %v1368, 56
      %v1432 = vpop.permute.xlu0 %1431
      %1433 = vrot.lane.b32.xlu0 %v1370, 56
      %v1434 = vpop.permute.xlu0 %1433
      %vm1467 = vcmask 523712
      %1468 = vst.msk [vmem:[#allocation2] sm:$0xff] %vm1467, %v1372
      %1469 = vst.msk [vmem:[#allocation2 + $0x8] sm:$0xff] %vm1467, %v1374
      %1470 = vst.msk [vmem:[#allocation2 + $0x10] sm:$0xff] %vm1467, %v1376
      %1471 = vst.msk [vmem:[#allocation2 + $0x18] sm:$0xff] %vm1467, %v1378
      %1472 = vst.msk [vmem:[#allocation2 + $0x20] sm:$0xff] %vm1467, %v1380
      %1473 = vst.msk [vmem:[#allocation2 + $0x28] sm:$0xff] %vm1467, %v1382
      %1474 = vst.msk [vmem:[#allocation2 + $0x30] sm:$0xff] %vm1467, %v1384
      %1475 = vst.msk [vmem:[#allocation2 + $0x38] sm:$0xff] %vm1467, %v1386
      %1476 = vst.msk [vmem:[#allocation2 + $0x40] sm:$0xff] %vm1467, %v1388
      %1477 = vst.msk [vmem:[#allocation2 + $0x48] sm:$0xff] %vm1467, %v1390
      %1478 = vst.msk [vmem:[#allocation2 + $0x50] sm:$0xff] %vm1467, %v1392
      %1479 = vst.msk [vmem:[#allocation2 + $0x58] sm:$0xff] %vm1467, %v1394
      %1480 = vst.msk [vmem:[#allocation2 + $0x60] sm:$0xff] %vm1467, %v1396
      %1481 = vst.msk [vmem:[#allocation2 + $0x68] sm:$0xff] %vm1467, %v1398
      %1482 = vst.msk [vmem:[#allocation2 + $0x70] sm:$0xff] %vm1467, %v1400
      %1483 = vst.msk [vmem:[#allocation2 + $0x78] sm:$0xff] %vm1467, %v1402
      %1484 = vst.msk [vmem:[#allocation2 + $0x80] sm:$0xff] %vm1467, %v1404
      %1485 = vst.msk [vmem:[#allocation2 + $0x88] sm:$0xff] %vm1467, %v1406
      %1486 = vst.msk [vmem:[#allocation2 + $0x90] sm:$0xff] %vm1467, %v1408
      %1487 = vst.msk [vmem:[#allocation2 + $0x98] sm:$0xff] %vm1467, %v1410
      %1488 = vst.msk [vmem:[#allocation2 + $0xa0] sm:$0xff] %vm1467, %v1412
      %1489 = vst.msk [vmem:[#allocation2 + $0xa8] sm:$0xff] %vm1467, %v1414
      %1490 = vst.msk [vmem:[#allocation2 + $0xb0] sm:$0xff] %vm1467, %v1416
      %1491 = vst.msk [vmem:[#allocation2 + $0xb8] sm:$0xff] %vm1467, %v1418
      %1492 = vst.msk [vmem:[#allocation2 + $0xc0] sm:$0xff] %vm1467, %v1420
      %1493 = vst.msk [vmem:[#allocation2 + $0xc8] sm:$0xff] %vm1467, %v1422
      %1494 = vst.msk [vmem:[#allocation2 + $0xd0] sm:$0xff] %vm1467, %v1424
      %1495 = vst.msk [vmem:[#allocation2 + $0xd8] sm:$0xff] %vm1467, %v1426
      %1496 = vst.msk [vmem:[#allocation2 + $0xe0] sm:$0xff] %vm1467, %v1428
      %1497 = vst.msk [vmem:[#allocation2 + $0xe8] sm:$0xff] %vm1467, %v1430
      %1498 = vst.msk [vmem:[#allocation2 + $0xf0] sm:$0xff] %vm1467, %v1432
      %1499 = vst.msk [vmem:[#allocation2 + $0xf8] sm:$0xff] %vm1467, %v1434
      %1502 = vrot.lane.b32.xlu0 %v204, 64
      %v1503 = vpop.permute.xlu0 %1502
      %1504 = vrot.lane.b32.xlu0 %v205, 64
      %v1505 = vpop.permute.xlu0 %1504
      %1506 = vrot.lane.b32.xlu0 %v207, 64
      %v1507 = vpop.permute.xlu0 %1506
      %1508 = vrot.lane.b32.xlu0 %v208, 64
      %v1509 = vpop.permute.xlu0 %1508
      %1510 = vrot.lane.b32.xlu0 %v210, 64
      %v1511 = vpop.permute.xlu0 %1510
      %1512 = vrot.lane.b32.xlu0 %v211, 64
      %v1513 = vpop.permute.xlu0 %1512
      %1514 = vrot.lane.b32.xlu0 %v213, 64
      %v1515 = vpop.permute.xlu0 %1514
      %1516 = vrot.lane.b32.xlu0 %v214, 64
      %v1517 = vpop.permute.xlu0 %1516
      %1518 = vrot.lane.b32.xlu0 %v216, 64
      %v1519 = vpop.permute.xlu0 %1518
      %1520 = vrot.lane.b32.xlu0 %v217, 64
      %v1521 = vpop.permute.xlu0 %1520
      %1522 = vrot.lane.b32.xlu0 %v219, 64
      %v1523 = vpop.permute.xlu0 %1522
      %1524 = vrot.lane.b32.xlu0 %v220, 64
      %v1525 = vpop.permute.xlu0 %1524
      %1526 = vrot.lane.b32.xlu0 %v222, 64
      %v1527 = vpop.permute.xlu0 %1526
      %1528 = vrot.lane.b32.xlu0 %v223, 64
      %v1529 = vpop.permute.xlu0 %1528
      %1530 = vrot.lane.b32.xlu0 %v225, 64
      %v1531 = vpop.permute.xlu0 %1530
      %1532 = vrot.lane.b32.xlu0 %v226, 64
      %v1533 = vpop.permute.xlu0 %1532
      %1534 = vrot.lane.b32.xlu0 %v228, 64
      %v1535 = vpop.permute.xlu0 %1534
      %1536 = vrot.lane.b32.xlu0 %v229, 64
      %v1537 = vpop.permute.xlu0 %1536
      %1538 = vrot.lane.b32.xlu0 %v231, 64
      %v1539 = vpop.permute.xlu0 %1538
      %1540 = vrot.lane.b32.xlu0 %v232, 64
      %v1541 = vpop.permute.xlu0 %1540
      %1542 = vrot.lane.b32.xlu0 %v234, 64
      %v1543 = vpop.permute.xlu0 %1542
      %1544 = vrot.lane.b32.xlu0 %v235, 64
      %v1545 = vpop.permute.xlu0 %1544
      %1546 = vrot.lane.b32.xlu0 %v237, 64
      %v1547 = vpop.permute.xlu0 %1546
      %1548 = vrot.lane.b32.xlu0 %v238, 64
      %v1549 = vpop.permute.xlu0 %1548
      %1550 = vrot.lane.b32.xlu0 %v240, 64
      %v1551 = vpop.permute.xlu0 %1550
      %1552 = vrot.lane.b32.xlu0 %v241, 64
      %v1553 = vpop.permute.xlu0 %1552
      %1554 = vrot.lane.b32.xlu0 %v243, 64
      %v1555 = vpop.permute.xlu0 %1554
      %1556 = vrot.lane.b32.xlu0 %v244, 64
      %v1557 = vpop.permute.xlu0 %1556
      %1558 = vrot.lane.b32.xlu0 %v246, 64
      %v1559 = vpop.permute.xlu0 %1558
      %1560 = vrot.lane.b32.xlu0 %v247, 64
      %v1561 = vpop.permute.xlu0 %1560
      %1562 = vrot.lane.b32.xlu0 %v249, 64
      %v1563 = vpop.permute.xlu0 %1562
      %1564 = vrot.lane.b32.xlu0 %v250, 64
      %v1565 = vpop.permute.xlu0 %1564
      %vm1598 = vcmask 589312
      %1599 = vst.msk [vmem:[#allocation2] sm:$0xff] %vm1598, %v1503
      %1600 = vst.msk [vmem:[#allocation2 + $0x8] sm:$0xff] %vm1598, %v1505
      %1601 = vst.msk [vmem:[#allocation2 + $0x10] sm:$0xff] %vm1598, %v1507
      %1602 = vst.msk [vmem:[#allocation2 + $0x18] sm:$0xff] %vm1598, %v1509
      %1603 = vst.msk [vmem:[#allocation2 + $0x20] sm:$0xff] %vm1598, %v1511
      %1604 = vst.msk [vmem:[#allocation2 + $0x28] sm:$0xff] %vm1598, %v1513
      %1605 = vst.msk [vmem:[#allocation2 + $0x30] sm:$0xff] %vm1598, %v1515
      %1606 = vst.msk [vmem:[#allocation2 + $0x38] sm:$0xff] %vm1598, %v1517
      %1607 = vst.msk [vmem:[#allocation2 + $0x40] sm:$0xff] %vm1598, %v1519
      %1608 = vst.msk [vmem:[#allocation2 + $0x48] sm:$0xff] %vm1598, %v1521
      %1609 = vst.msk [vmem:[#allocation2 + $0x50] sm:$0xff] %vm1598, %v1523
      %1610 = vst.msk [vmem:[#allocation2 + $0x58] sm:$0xff] %vm1598, %v1525
      %1611 = vst.msk [vmem:[#allocation2 + $0x60] sm:$0xff] %vm1598, %v1527
      %1612 = vst.msk [vmem:[#allocation2 + $0x68] sm:$0xff] %vm1598, %v1529
      %1613 = vst.msk [vmem:[#allocation2 + $0x70] sm:$0xff] %vm1598, %v1531
      %1614 = vst.msk [vmem:[#allocation2 + $0x78] sm:$0xff] %vm1598, %v1533
      %1615 = vst.msk [vmem:[#allocation2 + $0x80] sm:$0xff] %vm1598, %v1535
      %1616 = vst.msk [vmem:[#allocation2 + $0x88] sm:$0xff] %vm1598, %v1537
      %1617 = vst.msk [vmem:[#allocation2 + $0x90] sm:$0xff] %vm1598, %v1539
      %1618 = vst.msk [vmem:[#allocation2 + $0x98] sm:$0xff] %vm1598, %v1541
      %1619 = vst.msk [vmem:[#allocation2 + $0xa0] sm:$0xff] %vm1598, %v1543
      %1620 = vst.msk [vmem:[#allocation2 + $0xa8] sm:$0xff] %vm1598, %v1545
      %1621 = vst.msk [vmem:[#allocation2 + $0xb0] sm:$0xff] %vm1598, %v1547
      %1622 = vst.msk [vmem:[#allocation2 + $0xb8] sm:$0xff] %vm1598, %v1549
      %1623 = vst.msk [vmem:[#allocation2 + $0xc0] sm:$0xff] %vm1598, %v1551
      %1624 = vst.msk [vmem:[#allocation2 + $0xc8] sm:$0xff] %vm1598, %v1553
      %1625 = vst.msk [vmem:[#allocation2 + $0xd0] sm:$0xff] %vm1598, %v1555
      %1626 = vst.msk [vmem:[#allocation2 + $0xd8] sm:$0xff] %vm1598, %v1557
      %1627 = vst.msk [vmem:[#allocation2 + $0xe0] sm:$0xff] %vm1598, %v1559
      %1628 = vst.msk [vmem:[#allocation2 + $0xe8] sm:$0xff] %vm1598, %v1561
      %1629 = vst.msk [vmem:[#allocation2 + $0xf0] sm:$0xff] %vm1598, %v1563
      %1630 = vst.msk [vmem:[#allocation2 + $0xf8] sm:$0xff] %vm1598, %v1565
      %v1632 = vrot.slane %v249, 1
      %v1633 = vrot.slane %v250, 1
      %v1634 = vsel %vm336, %v1632, %v1633
      %v1635 = vrot.slane %v251, 1
      %v1636 = vsel %vm336, %v1633, %v1635
      %1637 = vrot.lane.b32.xlu0 %v349, 72
      %v1638 = vpop.permute.xlu0 %1637
      %1639 = vrot.lane.b32.xlu0 %v351, 72
      %v1640 = vpop.permute.xlu0 %1639
      %1641 = vrot.lane.b32.xlu0 %v354, 72
      %v1642 = vpop.permute.xlu0 %1641
      %1643 = vrot.lane.b32.xlu0 %v356, 72
      %v1644 = vpop.permute.xlu0 %1643
      %1645 = vrot.lane.b32.xlu0 %v359, 72
      %v1646 = vpop.permute.xlu0 %1645
      %1647 = vrot.lane.b32.xlu0 %v361, 72
      %v1648 = vpop.permute.xlu0 %1647
      %1649 = vrot.lane.b32.xlu0 %v364, 72
      %v1650 = vpop.permute.xlu0 %1649
      %1651 = vrot.lane.b32.xlu0 %v366, 72
      %v1652 = vpop.permute.xlu0 %1651
      %1653 = vrot.lane.b32.xlu0 %v369, 72
      %v1654 = vpop.permute.xlu0 %1653
      %1655 = vrot.lane.b32.xlu0 %v371, 72
      %v1656 = vpop.permute.xlu0 %1655
      %1657 = vrot.lane.b32.xlu0 %v374, 72
      %v1658 = vpop.permute.xlu0 %1657
      %1659 = vrot.lane.b32.xlu0 %v376, 72
      %v1660 = vpop.permute.xlu0 %1659
      %1661 = vrot.lane.b32.xlu0 %v379, 72
      %v1662 = vpop.permute.xlu0 %1661
      %1663 = vrot.lane.b32.xlu0 %v381, 72
      %v1664 = vpop.permute.xlu0 %1663
      %1665 = vrot.lane.b32.xlu0 %v384, 72
      %v1666 = vpop.permute.xlu0 %1665
      %1667 = vrot.lane.b32.xlu0 %v386, 72
      %v1668 = vpop.permute.xlu0 %1667
      %1669 = vrot.lane.b32.xlu0 %v389, 72
      %v1670 = vpop.permute.xlu0 %1669
      %1671 = vrot.lane.b32.xlu0 %v391, 72
      %v1672 = vpop.permute.xlu0 %1671
      %1673 = vrot.lane.b32.xlu0 %v394, 72
      %v1674 = vpop.permute.xlu0 %1673
      %1675 = vrot.lane.b32.xlu0 %v396, 72
      %v1676 = vpop.permute.xlu0 %1675
      %1677 = vrot.lane.b32.xlu0 %v399, 72
      %v1678 = vpop.permute.xlu0 %1677
      %1679 = vrot.lane.b32.xlu0 %v401, 72
      %v1680 = vpop.permute.xlu0 %1679
      %1681 = vrot.lane.b32.xlu0 %v404, 72
      %v1682 = vpop.permute.xlu0 %1681
      %1683 = vrot.lane.b32.xlu0 %v406, 72
      %v1684 = vpop.permute.xlu0 %1683
      %1685 = vrot.lane.b32.xlu0 %v409, 72
      %v1686 = vpop.permute.xlu0 %1685
      %1687 = vrot.lane.b32.xlu0 %v411, 72
      %v1688 = vpop.permute.xlu0 %1687
      %1689 = vrot.lane.b32.xlu0 %v414, 72
      %v1690 = vpop.permute.xlu0 %1689
      %1691 = vrot.lane.b32.xlu0 %v416, 72
      %v1692 = vpop.permute.xlu0 %1691
      %1693 = vrot.lane.b32.xlu0 %v1100, 72
      %v1694 = vpop.permute.xlu0 %1693
      %1695 = vrot.lane.b32.xlu0 %v1102, 72
      %v1696 = vpop.permute.xlu0 %1695
      %1697 = vrot.lane.b32.xlu0 %v1634, 72
      %v1698 = vpop.permute.xlu0 %1697
      %1699 = vrot.lane.b32.xlu0 %v1636, 72
      %v1700 = vpop.permute.xlu0 %1699
      %vm1733 = vcmask 654912
      %1734 = vst.msk [vmem:[#allocation2] sm:$0xff] %vm1733, %v1638
      %1735 = vst.msk [vmem:[#allocation2 + $0x8] sm:$0xff] %vm1733, %v1640
      %1736 = vst.msk [vmem:[#allocation2 + $0x10] sm:$0xff] %vm1733, %v1642
      %1737 = vst.msk [vmem:[#allocation2 + $0x18] sm:$0xff] %vm1733, %v1644
      %1738 = vst.msk [vmem:[#allocation2 + $0x20] sm:$0xff] %vm1733, %v1646
      %1739 = vst.msk [vmem:[#allocation2 + $0x28] sm:$0xff] %vm1733, %v1648
      %1740 = vst.msk [vmem:[#allocation2 + $0x30] sm:$0xff] %vm1733, %v1650
      %1741 = vst.msk [vmem:[#allocation2 + $0x38] sm:$0xff] %vm1733, %v1652
      %1742 = vst.msk [vmem:[#allocation2 + $0x40] sm:$0xff] %vm1733, %v1654
      %1743 = vst.msk [vmem:[#allocation2 + $0x48] sm:$0xff] %vm1733, %v1656
      %1744 = vst.msk [vmem:[#allocation2 + $0x50] sm:$0xff] %vm1733, %v1658
      %1745 = vst.msk [vmem:[#allocation2 + $0x58] sm:$0xff] %vm1733, %v1660
      %1746 = vst.msk [vmem:[#allocation2 + $0x60] sm:$0xff] %vm1733, %v1662
      %1747 = vst.msk [vmem:[#allocation2 + $0x68] sm:$0xff] %vm1733, %v1664
      %1748 = vst.msk [vmem:[#allocation2 + $0x70] sm:$0xff] %vm1733, %v1666
      %1749 = vst.msk [vmem:[#allocation2 + $0x78] sm:$0xff] %vm1733, %v1668
      %1750 = vst.msk [vmem:[#allocation2 + $0x80] sm:$0xff] %vm1733, %v1670
      %1751 = vst.msk [vmem:[#allocation2 + $0x88] sm:$0xff] %vm1733, %v1672
      %1752 = vst.msk [vmem:[#allocation2 + $0x90] sm:$0xff] %vm1733, %v1674
      %1753 = vst.msk [vmem:[#allocation2 + $0x98] sm:$0xff] %vm1733, %v1676
      %1754 = vst.msk [vmem:[#allocation2 + $0xa0] sm:$0xff] %vm1733, %v1678
      %1755 = vst.msk [vmem:[#allocation2 + $0xa8] sm:$0xff] %vm1733, %v1680
      %1756 = vst.msk [vmem:[#allocation2 + $0xb0] sm:$0xff] %vm1733, %v1682
      %1757 = vst.msk [vmem:[#allocation2 + $0xb8] sm:$0xff] %vm1733, %v1684
      %1758 = vst.msk [vmem:[#allocation2 + $0xc0] sm:$0xff] %vm1733, %v1686
      %1759 = vst.msk [vmem:[#allocation2 + $0xc8] sm:$0xff] %vm1733, %v1688
      %1760 = vst.msk [vmem:[#allocation2 + $0xd0] sm:$0xff] %vm1733, %v1690
      %1761 = vst.msk [vmem:[#allocation2 + $0xd8] sm:$0xff] %vm1733, %v1692
      %1762 = vst.msk [vmem:[#allocation2 + $0xe0] sm:$0xff] %vm1733, %v1694
      %1763 = vst.msk [vmem:[#allocation2 + $0xe8] sm:$0xff] %vm1733, %v1696
      %1764 = vst.msk [vmem:[#allocation2 + $0xf0] sm:$0xff] %vm1733, %v1698
      %1765 = vst.msk [vmem:[#allocation2 + $0xf8] sm:$0xff] %vm1733, %v1700
      %v1766 = vrot.slane %v249, 2
      %v1767 = vrot.slane %v250, 2
      %v1768 = vsel %vm546, %v1766, %v1767
      %v1769 = vrot.slane %v251, 2
      %v1770 = vsel %vm546, %v1767, %v1769
      %1771 = vrot.lane.b32.xlu0 %v559, 80
      %v1772 = vpop.permute.xlu0 %1771
      %1773 = vrot.lane.b32.xlu0 %v561, 80
      %v1774 = vpop.permute.xlu0 %1773
      %1775 = vrot.lane.b32.xlu0 %v564, 80
      %v1776 = vpop.permute.xlu0 %1775
      %1777 = vrot.lane.b32.xlu0 %v566, 80
      %v1778 = vpop.permute.xlu0 %1777
      %1779 = vrot.lane.b32.xlu0 %v569, 80
      %v1780 = vpop.permute.xlu0 %1779
      %1781 = vrot.lane.b32.xlu0 %v571, 80
      %v1782 = vpop.permute.xlu0 %1781
      %1783 = vrot.lane.b32.xlu0 %v574, 80
      %v1784 = vpop.permute.xlu0 %1783
      %1785 = vrot.lane.b32.xlu0 %v576, 80
      %v1786 = vpop.permute.xlu0 %1785
      %1787 = vrot.lane.b32.xlu0 %v579, 80
      %v1788 = vpop.permute.xlu0 %1787
      %1789 = vrot.lane.b32.xlu0 %v581, 80
      %v1790 = vpop.permute.xlu0 %1789
      %1791 = vrot.lane.b32.xlu0 %v584, 80
      %v1792 = vpop.permute.xlu0 %1791
      %1793 = vrot.lane.b32.xlu0 %v586, 80
      %v1794 = vpop.permute.xlu0 %1793
      %1795 = vrot.lane.b32.xlu0 %v589, 80
      %v1796 = vpop.permute.xlu0 %1795
      %1797 = vrot.lane.b32.xlu0 %v591, 80
      %v1798 = vpop.permute.xlu0 %1797
      %1799 = vrot.lane.b32.xlu0 %v594, 80
      %v1800 = vpop.permute.xlu0 %1799
      %1801 = vrot.lane.b32.xlu0 %v596, 80
      %v1802 = vpop.permute.xlu0 %1801
      %1803 = vrot.lane.b32.xlu0 %v599, 80
      %v1804 = vpop.permute.xlu0 %1803
      %1805 = vrot.lane.b32.xlu0 %v601, 80
      %v1806 = vpop.permute.xlu0 %1805
      %1807 = vrot.lane.b32.xlu0 %v604, 80
      %v1808 = vpop.permute.xlu0 %1807
      %1809 = vrot.lane.b32.xlu0 %v606, 80
      %v1810 = vpop.permute.xlu0 %1809
      %1811 = vrot.lane.b32.xlu0 %v609, 80
      %v1812 = vpop.permute.xlu0 %1811
      %1813 = vrot.lane.b32.xlu0 %v611, 80
      %v1814 = vpop.permute.xlu0 %1813
      %1815 = vrot.lane.b32.xlu0 %v614, 80
      %v1816 = vpop.permute.xlu0 %1815
      %1817 = vrot.lane.b32.xlu0 %v616, 80
      %v1818 = vpop.permute.xlu0 %1817
      %1819 = vrot.lane.b32.xlu0 %v619, 80
      %v1820 = vpop.permute.xlu0 %1819
      %1821 = vrot.lane.b32.xlu0 %v621, 80
      %v1822 = vpop.permute.xlu0 %1821
      %1823 = vrot.lane.b32.xlu0 %v624, 80
      %v1824 = vpop.permute.xlu0 %1823
      %1825 = vrot.lane.b32.xlu0 %v626, 80
      %v1826 = vpop.permute.xlu0 %1825
      %1827 = vrot.lane.b32.xlu0 %v1234, 80
      %v1828 = vpop.permute.xlu0 %1827
      %1829 = vrot.lane.b32.xlu0 %v1236, 80
      %v1830 = vpop.permute.xlu0 %1829
      %1831 = vrot.lane.b32.xlu0 %v1768, 80
      %v1832 = vpop.permute.xlu0 %1831
      %1833 = vrot.lane.b32.xlu0 %v1770, 80
      %v1834 = vpop.permute.xlu0 %1833
      %vm1867 = vcmask 720512
      %1868 = vst.msk [vmem:[#allocation2] sm:$0xff] %vm1867, %v1772
      %1869 = vst.msk [vmem:[#allocation2 + $0x8] sm:$0xff] %vm1867, %v1774
      %1870 = vst.msk [vmem:[#allocation2 + $0x10] sm:$0xff] %vm1867, %v1776
      %1871 = vst.msk [vmem:[#allocation2 + $0x18] sm:$0xff] %vm1867, %v1778
      %1872 = vst.msk [vmem:[#allocation2 + $0x20] sm:$0xff] %vm1867, %v1780
      %1873 = vst.msk [vmem:[#allocation2 + $0x28] sm:$0xff] %vm1867, %v1782
      %1874 = vst.msk [vmem:[#allocation2 + $0x30] sm:$0xff] %vm1867, %v1784
      %1875 = vst.msk [vmem:[#allocation2 + $0x38] sm:$0xff] %vm1867, %v1786
      %1876 = vst.msk [vmem:[#allocation2 + $0x40] sm:$0xff] %vm1867, %v1788
      %1877 = vst.msk [vmem:[#allocation2 + $0x48] sm:$0xff] %vm1867, %v1790
      %1878 = vst.msk [vmem:[#allocation2 + $0x50] sm:$0xff] %vm1867, %v1792
      %1879 = vst.msk [vmem:[#allocation2 + $0x58] sm:$0xff] %vm1867, %v1794
      %1880 = vst.msk [vmem:[#allocation2 + $0x60] sm:$0xff] %vm1867, %v1796
      %1881 = vst.msk [vmem:[#allocation2 + $0x68] sm:$0xff] %vm1867, %v1798
      %1882 = vst.msk [vmem:[#allocation2 + $0x70] sm:$0xff] %vm1867, %v1800
      %1883 = vst.msk [vmem:[#allocation2 + $0x78] sm:$0xff] %vm1867, %v1802
      %1884 = vst.msk [vmem:[#allocation2 + $0x80] sm:$0xff] %vm1867, %v1804
      %1885 = vst.msk [vmem:[#allocation2 + $0x88] sm:$0xff] %vm1867, %v1806
      %1886 = vst.msk [vmem:[#allocation2 + $0x90] sm:$0xff] %vm1867, %v1808
      %1887 = vst.msk [vmem:[#allocation2 + $0x98] sm:$0xff] %vm1867, %v1810
      %1888 = vst.msk [vmem:[#allocation2 + $0xa0] sm:$0xff] %vm1867, %v1812
      %1889 = vst.msk [vmem:[#allocation2 + $0xa8] sm:$0xff] %vm1867, %v1814
      %1890 = vst.msk [vmem:[#allocation2 + $0xb0] sm:$0xff] %vm1867, %v1816
      %1891 = vst.msk [vmem:[#allocation2 + $0xb8] sm:$0xff] %vm1867, %v1818
      %1892 = vst.msk [vmem:[#allocation2 + $0xc0] sm:$0xff] %vm1867, %v1820
      %1893 = vst.msk [vmem:[#allocation2 + $0xc8] sm:$0xff] %vm1867, %v1822
      %1894 = vst.msk [vmem:[#allocation2 + $0xd0] sm:$0xff] %vm1867, %v1824
      %1895 = vst.msk [vmem:[#allocation2 + $0xd8] sm:$0xff] %vm1867, %v1826
      %1896 = vst.msk [vmem:[#allocation2 + $0xe0] sm:$0xff] %vm1867, %v1828
      %1897 = vst.msk [vmem:[#allocation2 + $0xe8] sm:$0xff] %vm1867, %v1830
      %1898 = vst.msk [vmem:[#allocation2 + $0xf0] sm:$0xff] %vm1867, %v1832
      %1899 = vst.msk [vmem:[#allocation2 + $0xf8] sm:$0xff] %vm1867, %v1834
      %v1900 = vrot.slane %v249, 3
      %v1901 = vrot.slane %v250, 3
      %v1902 = vsel %vm756, %v1900, %v1901
      %v1903 = vrot.slane %v251, 3
      %v1904 = vsel %vm756, %v1901, %v1903
      %1905 = vrot.lane.b32.xlu0 %v769, 88
      %v1906 = vpop.permute.xlu0 %1905
      %1907 = vrot.lane.b32.xlu0 %v771, 88
      %v1908 = vpop.permute.xlu0 %1907
      %1909 = vrot.lane.b32.xlu0 %v774, 88
      %v1910 = vpop.permute.xlu0 %1909
      %1911 = vrot.lane.b32.xlu0 %v776, 88
      %v1912 = vpop.permute.xlu0 %1911
      %1913 = vrot.lane.b32.xlu0 %v779, 88
      %v1914 = vpop.permute.xlu0 %1913
      %1915 = vrot.lane.b32.xlu0 %v781, 88
      %v1916 = vpop.permute.xlu0 %1915
      %1917 = vrot.lane.b32.xlu0 %v784, 88
      %v1918 = vpop.permute.xlu0 %1917
      %1919 = vrot.lane.b32.xlu0 %v786, 88
      %v1920 = vpop.permute.xlu0 %1919
      %1921 = vrot.lane.b32.xlu0 %v789, 88
      %v1922 = vpop.permute.xlu0 %1921
      %1923 = vrot.lane.b32.xlu0 %v791, 88
      %v1924 = vpop.permute.xlu0 %1923
      %1925 = vrot.lane.b32.xlu0 %v794, 88
      %v1926 = vpop.permute.xlu0 %1925
      %1927 = vrot.lane.b32.xlu0 %v796, 88
      %v1928 = vpop.permute.xlu0 %1927
      %1929 = vrot.lane.b32.xlu0 %v799, 88
      %v1930 = vpop.permute.xlu0 %1929
      %1931 = vrot.lane.b32.xlu0 %v801, 88
      %v1932 = vpop.permute.xlu0 %1931
      %1933 = vrot.lane.b32.xlu0 %v804, 88
      %v1934 = vpop.permute.xlu0 %1933
      %1935 = vrot.lane.b32.xlu0 %v806, 88
      %v1936 = vpop.permute.xlu0 %1935
      %1937 = vrot.lane.b32.xlu0 %v809, 88
      %v1938 = vpop.permute.xlu0 %1937
      %1939 = vrot.lane.b32.xlu0 %v811, 88
      %v1940 = vpop.permute.xlu0 %1939
      %1941 = vrot.lane.b32.xlu0 %v814, 88
      %v1942 = vpop.permute.xlu0 %1941
      %1943 = vrot.lane.b32.xlu0 %v816, 88
      %v1944 = vpop.permute.xlu0 %1943
      %1945 = vrot.lane.b32.xlu0 %v819, 88
      %v1946 = vpop.permute.xlu0 %1945
      %1947 = vrot.lane.b32.xlu0 %v821, 88
      %v1948 = vpop.permute.xlu0 %1947
      %1949 = vrot.lane.b32.xlu0 %v824, 88
      %v1950 = vpop.permute.xlu0 %1949
      %1951 = vrot.lane.b32.xlu0 %v826, 88
      %v1952 = vpop.permute.xlu0 %1951
      %1953 = vrot.lane.b32.xlu0 %v829, 88
      %v1954 = vpop.permute.xlu0 %1953
      %1955 = vrot.lane.b32.xlu0 %v831, 88
      %v1956 = vpop.permute.xlu0 %1955
      %1957 = vrot.lane.b32.xlu0 %v834, 88
      %v1958 = vpop.permute.xlu0 %1957
      %1959 = vrot.lane.b32.xlu0 %v836, 88
      %v1960 = vpop.permute.xlu0 %1959
      %1961 = vrot.lane.b32.xlu0 %v1368, 88
      %v1962 = vpop.permute.xlu0 %1961
      %1963 = vrot.lane.b32.xlu0 %v1370, 88
      %v1964 = vpop.permute.xlu0 %1963
      %1965 = vrot.lane.b32.xlu0 %v1902, 88
      %v1966 = vpop.permute.xlu0 %1965
      %1967 = vrot.lane.b32.xlu0 %v1904, 88
      %v1968 = vpop.permute.xlu0 %1967
      %vm2001 = vcmask 786112
      %2002 = vst.msk [vmem:[#allocation2] sm:$0xff] %vm2001, %v1906
      %2003 = vst.msk [vmem:[#allocation2 + $0x8] sm:$0xff] %vm2001, %v1908
      %2004 = vst.msk [vmem:[#allocation2 + $0x10] sm:$0xff] %vm2001, %v1910
      %2005 = vst.msk [vmem:[#allocation2 + $0x18] sm:$0xff] %vm2001, %v1912
      %2006 = vst.msk [vmem:[#allocation2 + $0x20] sm:$0xff] %vm2001, %v1914
      %2007 = vst.msk [vmem:[#allocation2 + $0x28] sm:$0xff] %vm2001, %v1916
      %2008 = vst.msk [vmem:[#allocation2 + $0x30] sm:$0xff] %vm2001, %v1918
      %2009 = vst.msk [vmem:[#allocation2 + $0x38] sm:$0xff] %vm2001, %v1920
      %2010 = vst.msk [vmem:[#allocation2 + $0x40] sm:$0xff] %vm2001, %v1922
      %2011 = vst.msk [vmem:[#allocation2 + $0x48] sm:$0xff] %vm2001, %v1924
      %2012 = vst.msk [vmem:[#allocation2 + $0x50] sm:$0xff] %vm2001, %v1926
      %2013 = vst.msk [vmem:[#allocation2 + $0x58] sm:$0xff] %vm2001, %v1928
      %2014 = vst.msk [vmem:[#allocation2 + $0x60] sm:$0xff] %vm2001, %v1930
      %2015 = vst.msk [vmem:[#allocation2 + $0x68] sm:$0xff] %vm2001, %v1932
      %2016 = vst.msk [vmem:[#allocation2 + $0x70] sm:$0xff] %vm2001, %v1934
      %2017 = vst.msk [vmem:[#allocation2 + $0x78] sm:$0xff] %vm2001, %v1936
      %2018 = vst.msk [vmem:[#allocation2 + $0x80] sm:$0xff] %vm2001, %v1938
      %2019 = vst.msk [vmem:[#allocation2 + $0x88] sm:$0xff] %vm2001, %v1940
      %2020 = vst.msk [vmem:[#allocation2 + $0x90] sm:$0xff] %vm2001, %v1942
      %2021 = vst.msk [vmem:[#allocation2 + $0x98] sm:$0xff] %vm2001, %v1944
      %2022 = vst.msk [vmem:[#allocation2 + $0xa0] sm:$0xff] %vm2001, %v1946
      %2023 = vst.msk [vmem:[#allocation2 + $0xa8] sm:$0xff] %vm2001, %v1948
      %2024 = vst.msk [vmem:[#allocation2 + $0xb0] sm:$0xff] %vm2001, %v1950
      %2025 = vst.msk [vmem:[#allocation2 + $0xb8] sm:$0xff] %vm2001, %v1952
      %2026 = vst.msk [vmem:[#allocation2 + $0xc0] sm:$0xff] %vm2001, %v1954
      %2027 = vst.msk [vmem:[#allocation2 + $0xc8] sm:$0xff] %vm2001, %v1956
      %2028 = vst.msk [vmem:[#allocation2 + $0xd0] sm:$0xff] %vm2001, %v1958
      %2029 = vst.msk [vmem:[#allocation2 + $0xd8] sm:$0xff] %vm2001, %v1960
      %2030 = vst.msk [vmem:[#allocation2 + $0xe0] sm:$0xff] %vm2001, %v1962
      %2031 = vst.msk [vmem:[#allocation2 + $0xe8] sm:$0xff] %vm2001, %v1964
      %2032 = vst.msk [vmem:[#allocation2 + $0xf0] sm:$0xff] %vm2001, %v1966
      %2033 = vst.msk [vmem:[#allocation2 + $0xf8] sm:$0xff] %vm2001, %v1968
      %2036 = vrot.lane.b32.xlu0 %v207, 96
      %v2037 = vpop.permute.xlu0 %2036
      %2038 = vrot.lane.b32.xlu0 %v208, 96
      %v2039 = vpop.permute.xlu0 %2038
      %2040 = vrot.lane.b32.xlu0 %v210, 96
      %v2041 = vpop.permute.xlu0 %2040
      %2042 = vrot.lane.b32.xlu0 %v211, 96
      %v2043 = vpop.permute.xlu0 %2042
      %2044 = vrot.lane.b32.xlu0 %v213, 96
      %v2045 = vpop.permute.xlu0 %2044
      %2046 = vrot.lane.b32.xlu0 %v214, 96
      %v2047 = vpop.permute.xlu0 %2046
      %2048 = vrot.lane.b32.xlu0 %v216, 96
      %v2049 = vpop.permute.xlu0 %2048
      %2050 = vrot.lane.b32.xlu0 %v217, 96
      %v2051 = vpop.permute.xlu0 %2050
      %2052 = vrot.lane.b32.xlu0 %v219, 96
      %v2053 = vpop.permute.xlu0 %2052
      %2054 = vrot.lane.b32.xlu0 %v220, 96
      %v2055 = vpop.permute.xlu0 %2054
      %2056 = vrot.lane.b32.xlu0 %v222, 96
      %v2057 = vpop.permute.xlu0 %2056
      %2058 = vrot.lane.b32.xlu0 %v223, 96
      %v2059 = vpop.permute.xlu0 %2058
      %2060 = vrot.lane.b32.xlu0 %v225, 96
      %v2061 = vpop.permute.xlu0 %2060
      %2062 = vrot.lane.b32.xlu0 %v226, 96
      %v2063 = vpop.permute.xlu0 %2062
      %2064 = vrot.lane.b32.xlu0 %v228, 96
      %v2065 = vpop.permute.xlu0 %2064
      %2066 = vrot.lane.b32.xlu0 %v229, 96
      %v2067 = vpop.permute.xlu0 %2066
      %2068 = vrot.lane.b32.xlu0 %v231, 96
      %v2069 = vpop.permute.xlu0 %2068
      %2070 = vrot.lane.b32.xlu0 %v232, 96
      %v2071 = vpop.permute.xlu0 %2070
      %2072 = vrot.lane.b32.xlu0 %v234, 96
      %v2073 = vpop.permute.xlu0 %2072
      %2074 = vrot.lane.b32.xlu0 %v235, 96
      %v2075 = vpop.permute.xlu0 %2074
      %2076 = vrot.lane.b32.xlu0 %v237, 96
      %v2077 = vpop.permute.xlu0 %2076
      %2078 = vrot.lane.b32.xlu0 %v238, 96
      %v2079 = vpop.permute.xlu0 %2078
      %2080 = vrot.lane.b32.xlu0 %v240, 96
      %v2081 = vpop.permute.xlu0 %2080
      %2082 = vrot.lane.b32.xlu0 %v241, 96
      %v2083 = vpop.permute.xlu0 %2082
      %2084 = vrot.lane.b32.xlu0 %v243, 96
      %v2085 = vpop.permute.xlu0 %2084
      %2086 = vrot.lane.b32.xlu0 %v244, 96
      %v2087 = vpop.permute.xlu0 %2086
      %2088 = vrot.lane.b32.xlu0 %v246, 96
      %v2089 = vpop.permute.xlu0 %2088
      %2090 = vrot.lane.b32.xlu0 %v247, 96
      %v2091 = vpop.permute.xlu0 %2090
      %2092 = vrot.lane.b32.xlu0 %v249, 96
      %v2093 = vpop.permute.xlu0 %2092
      %2094 = vrot.lane.b32.xlu0 %v250, 96
      %v2095 = vpop.permute.xlu0 %2094
      %2096 = vrot.lane.b32.xlu0 %v252, 96
      %v2097 = vpop.permute.xlu0 %2096
      %2098 = vrot.lane.b32.xlu0 %v253, 96
      %v2099 = vpop.permute.xlu0 %2098
      %vm2132 = vcmask 851712
      %2133 = vst.msk [vmem:[#allocation2] sm:$0xff] %vm2132, %v2037
      %2134 = vst.msk [vmem:[#allocation2 + $0x8] sm:$0xff] %vm2132, %v2039
      %2135 = vst.msk [vmem:[#allocation2 + $0x10] sm:$0xff] %vm2132, %v2041
      %2136 = vst.msk [vmem:[#allocation2 + $0x18] sm:$0xff] %vm2132, %v2043
      %2137 = vst.msk [vmem:[#allocation2 + $0x20] sm:$0xff] %vm2132, %v2045
      %2138 = vst.msk [vmem:[#allocation2 + $0x28] sm:$0xff] %vm2132, %v2047
      %2139 = vst.msk [vmem:[#allocation2 + $0x30] sm:$0xff] %vm2132, %v2049
      %2140 = vst.msk [vmem:[#allocation2 + $0x38] sm:$0xff] %vm2132, %v2051
      %2141 = vst.msk [vmem:[#allocation2 + $0x40] sm:$0xff] %vm2132, %v2053
      %2142 = vst.msk [vmem:[#allocation2 + $0x48] sm:$0xff] %vm2132, %v2055
      %2143 = vst.msk [vmem:[#allocation2 + $0x50] sm:$0xff] %vm2132, %v2057
      %2144 = vst.msk [vmem:[#allocation2 + $0x58] sm:$0xff] %vm2132, %v2059
      %2145 = vst.msk [vmem:[#allocation2 + $0x60] sm:$0xff] %vm2132, %v2061
      %2146 = vst.msk [vmem:[#allocation2 + $0x68] sm:$0xff] %vm2132, %v2063
      %2147 = vst.msk [vmem:[#allocation2 + $0x70] sm:$0xff] %vm2132, %v2065
      %2148 = vst.msk [vmem:[#allocation2 + $0x78] sm:$0xff] %vm2132, %v2067
      %2149 = vst.msk [vmem:[#allocation2 + $0x80] sm:$0xff] %vm2132, %v2069
      %2150 = vst.msk [vmem:[#allocation2 + $0x88] sm:$0xff] %vm2132, %v2071
      %2151 = vst.msk [vmem:[#allocation2 + $0x90] sm:$0xff] %vm2132, %v2073
      %2152 = vst.msk [vmem:[#allocation2 + $0x98] sm:$0xff] %vm2132, %v2075
      %2153 = vst.msk [vmem:[#allocation2 + $0xa0] sm:$0xff] %vm2132, %v2077
      %2154 = vst.msk [vmem:[#allocation2 + $0xa8] sm:$0xff] %vm2132, %v2079
      %2155 = vst.msk [vmem:[#allocation2 + $0xb0] sm:$0xff] %vm2132, %v2081
      %2156 = vst.msk [vmem:[#allocation2 + $0xb8] sm:$0xff] %vm2132, %v2083
      %2157 = vst.msk [vmem:[#allocation2 + $0xc0] sm:$0xff] %vm2132, %v2085
      %2158 = vst.msk [vmem:[#allocation2 + $0xc8] sm:$0xff] %vm2132, %v2087
      %2159 = vst.msk [vmem:[#allocation2 + $0xd0] sm:$0xff] %vm2132, %v2089
      %2160 = vst.msk [vmem:[#allocation2 + $0xd8] sm:$0xff] %vm2132, %v2091
      %2161 = vst.msk [vmem:[#allocation2 + $0xe0] sm:$0xff] %vm2132, %v2093
      %2162 = vst.msk [vmem:[#allocation2 + $0xe8] sm:$0xff] %vm2132, %v2095
      %2163 = vst.msk [vmem:[#allocation2 + $0xf0] sm:$0xff] %vm2132, %v2097
      %2164 = vst.msk [vmem:[#allocation2 + $0xf8] sm:$0xff] %vm2132, %v2099
      %v2166 = vrot.slane %v252, 1
      %v2167 = vrot.slane %v253, 1
      %v2168 = vsel %vm336, %v2166, %v2167
      %v2169 = vrot.slane %v254, 1
      %v2170 = vsel %vm336, %v2167, %v2169
      %2171 = vrot.lane.b32.xlu0 %v354, 104
      %v2172 = vpop.permute.xlu0 %2171
      %2173 = vrot.lane.b32.xlu0 %v356, 104
      %v2174 = vpop.permute.xlu0 %2173
      %2175 = vrot.lane.b32.xlu0 %v359, 104
      %v2176 = vpop.permute.xlu0 %2175
      %2177 = vrot.lane.b32.xlu0 %v361, 104
      %v2178 = vpop.permute.xlu0 %2177
      %2179 = vrot.lane.b32.xlu0 %v364, 104
      %v2180 = vpop.permute.xlu0 %2179
      %2181 = vrot.lane.b32.xlu0 %v366, 104
      %v2182 = vpop.permute.xlu0 %2181
      %2183 = vrot.lane.b32.xlu0 %v369, 104
      %v2184 = vpop.permute.xlu0 %2183
      %2185 = vrot.lane.b32.xlu0 %v371, 104
      %v2186 = vpop.permute.xlu0 %2185
      %2187 = vrot.lane.b32.xlu0 %v374, 104
      %v2188 = vpop.permute.xlu0 %2187
      %2189 = vrot.lane.b32.xlu0 %v376, 104
      %v2190 = vpop.permute.xlu0 %2189
      %2191 = vrot.lane.b32.xlu0 %v379, 104
      %v2192 = vpop.permute.xlu0 %2191
      %2193 = vrot.lane.b32.xlu0 %v381, 104
      %v2194 = vpop.permute.xlu0 %2193
      %2195 = vrot.lane.b32.xlu0 %v384, 104
      %v2196 = vpop.permute.xlu0 %2195
      %2197 = vrot.lane.b32.xlu0 %v386, 104
      %v2198 = vpop.permute.xlu0 %2197
      %2199 = vrot.lane.b32.xlu0 %v389, 104
      %v2200 = vpop.permute.xlu0 %2199
      %2201 = vrot.lane.b32.xlu0 %v391, 104
      %v2202 = vpop.permute.xlu0 %2201
      %2203 = vrot.lane.b32.xlu0 %v394, 104
      %v2204 = vpop.permute.xlu0 %2203
      %2205 = vrot.lane.b32.xlu0 %v396, 104
      %v2206 = vpop.permute.xlu0 %2205
      %2207 = vrot.lane.b32.xlu0 %v399, 104
      %v2208 = vpop.permute.xlu0 %2207
      %2209 = vrot.lane.b32.xlu0 %v401, 104
      %v2210 = vpop.permute.xlu0 %2209
      %2211 = vrot.lane.b32.xlu0 %v404, 104
      %v2212 = vpop.permute.xlu0 %2211
      %2213 = vrot.lane.b32.xlu0 %v406, 104
      %v2214 = vpop.permute.xlu0 %2213
      %2215 = vrot.lane.b32.xlu0 %v409, 104
      %v2216 = vpop.permute.xlu0 %2215
      %2217 = vrot.lane.b32.xlu0 %v411, 104
      %v2218 = vpop.permute.xlu0 %2217
      %2219 = vrot.lane.b32.xlu0 %v414, 104
      %v2220 = vpop.permute.xlu0 %2219
      %2221 = vrot.lane.b32.xlu0 %v416, 104
      %v2222 = vpop.permute.xlu0 %2221
      %2223 = vrot.lane.b32.xlu0 %v1100, 104
      %v2224 = vpop.permute.xlu0 %2223
      %2225 = vrot.lane.b32.xlu0 %v1102, 104
      %v2226 = vpop.permute.xlu0 %2225
      %2227 = vrot.lane.b32.xlu0 %v1634, 104
      %v2228 = vpop.permute.xlu0 %2227
      %2229 = vrot.lane.b32.xlu0 %v1636, 104
      %v2230 = vpop.permute.xlu0 %2229
      %2231 = vrot.lane.b32.xlu0 %v2168, 104
      %v2232 = vpop.permute.xlu0 %2231
      %2233 = vrot.lane.b32.xlu0 %v2170, 104
      %v2234 = vpop.permute.xlu0 %2233
      %vm2267 = vcmask 917312
      %2268 = vst.msk [vmem:[#allocation2] sm:$0xff] %vm2267, %v2172
      %2269 = vst.msk [vmem:[#allocation2 + $0x8] sm:$0xff] %vm2267, %v2174
      %2270 = vst.msk [vmem:[#allocation2 + $0x10] sm:$0xff] %vm2267, %v2176
      %2271 = vst.msk [vmem:[#allocation2 + $0x18] sm:$0xff] %vm2267, %v2178
      %2272 = vst.msk [vmem:[#allocation2 + $0x20] sm:$0xff] %vm2267, %v2180
      %2273 = vst.msk [vmem:[#allocation2 + $0x28] sm:$0xff] %vm2267, %v2182
      %2274 = vst.msk [vmem:[#allocation2 + $0x30] sm:$0xff] %vm2267, %v2184
      %2275 = vst.msk [vmem:[#allocation2 + $0x38] sm:$0xff] %vm2267, %v2186
      %2276 = vst.msk [vmem:[#allocation2 + $0x40] sm:$0xff] %vm2267, %v2188
      %2277 = vst.msk [vmem:[#allocation2 + $0x48] sm:$0xff] %vm2267, %v2190
      %2278 = vst.msk [vmem:[#allocation2 + $0x50] sm:$0xff] %vm2267, %v2192
      %2279 = vst.msk [vmem:[#allocation2 + $0x58] sm:$0xff] %vm2267, %v2194
      %2280 = vst.msk [vmem:[#allocation2 + $0x60] sm:$0xff] %vm2267, %v2196
      %2281 = vst.msk [vmem:[#allocation2 + $0x68] sm:$0xff] %vm2267, %v2198
      %2282 = vst.msk [vmem:[#allocation2 + $0x70] sm:$0xff] %vm2267, %v2200
      %2283 = vst.msk [vmem:[#allocation2 + $0x78] sm:$0xff] %vm2267, %v2202
      %2284 = vst.msk [vmem:[#allocation2 + $0x80] sm:$0xff] %vm2267, %v2204
      %2285 = vst.msk [vmem:[#allocation2 + $0x88] sm:$0xff] %vm2267, %v2206
      %2286 = vst.msk [vmem:[#allocation2 + $0x90] sm:$0xff] %vm2267, %v2208
      %2287 = vst.msk [vmem:[#allocation2 + $0x98] sm:$0xff] %vm2267, %v2210
      %2288 = vst.msk [vmem:[#allocation2 + $0xa0] sm:$0xff] %vm2267, %v2212
      %2289 = vst.msk [vmem:[#allocation2 + $0xa8] sm:$0xff] %vm2267, %v2214
      %2290 = vst.msk [vmem:[#allocation2 + $0xb0] sm:$0xff] %vm2267, %v2216
      %2291 = vst.msk [vmem:[#allocation2 + $0xb8] sm:$0xff] %vm2267, %v2218
      %2292 = vst.msk [vmem:[#allocation2 + $0xc0] sm:$0xff] %vm2267, %v2220
      %2293 = vst.msk [vmem:[#allocation2 + $0xc8] sm:$0xff] %vm2267, %v2222
      %2294 = vst.msk [vmem:[#allocation2 + $0xd0] sm:$0xff] %vm2267, %v2224
      %2295 = vst.msk [vmem:[#allocation2 + $0xd8] sm:$0xff] %vm2267, %v2226
      %2296 = vst.msk [vmem:[#allocation2 + $0xe0] sm:$0xff] %vm2267, %v2228
      %2297 = vst.msk [vmem:[#allocation2 + $0xe8] sm:$0xff] %vm2267, %v2230
      %2298 = vst.msk [vmem:[#allocation2 + $0xf0] sm:$0xff] %vm2267, %v2232
      %2299 = vst.msk [vmem:[#allocation2 + $0xf8] sm:$0xff] %vm2267, %v2234
      %v2300 = vrot.slane %v252, 2
      %v2301 = vrot.slane %v253, 2
      %v2302 = vsel %vm546, %v2300, %v2301
      %v2303 = vrot.slane %v254, 2
      %v2304 = vsel %vm546, %v2301, %v2303
      %2305 = vrot.lane.b32.xlu0 %v564, 112
      %v2306 = vpop.permute.xlu0 %2305
      %2307 = vrot.lane.b32.xlu0 %v566, 112
      %v2308 = vpop.permute.xlu0 %2307
      %2309 = vrot.lane.b32.xlu0 %v569, 112
      %v2310 = vpop.permute.xlu0 %2309
      %2311 = vrot.lane.b32.xlu0 %v571, 112
      %v2312 = vpop.permute.xlu0 %2311
      %2313 = vrot.lane.b32.xlu0 %v574, 112
      %v2314 = vpop.permute.xlu0 %2313
      %2315 = vrot.lane.b32.xlu0 %v576, 112
      %v2316 = vpop.permute.xlu0 %2315
      %2317 = vrot.lane.b32.xlu0 %v579, 112
      %v2318 = vpop.permute.xlu0 %2317
      %2319 = vrot.lane.b32.xlu0 %v581, 112
      %v2320 = vpop.permute.xlu0 %2319
      %2321 = vrot.lane.b32.xlu0 %v584, 112
      %v2322 = vpop.permute.xlu0 %2321
      %2323 = vrot.lane.b32.xlu0 %v586, 112
      %v2324 = vpop.permute.xlu0 %2323
      %2325 = vrot.lane.b32.xlu0 %v589, 112
      %v2326 = vpop.permute.xlu0 %2325
      %2327 = vrot.lane.b32.xlu0 %v591, 112
      %v2328 = vpop.permute.xlu0 %2327
      %2329 = vrot.lane.b32.xlu0 %v594, 112
      %v2330 = vpop.permute.xlu0 %2329
      %2331 = vrot.lane.b32.xlu0 %v596, 112
      %v2332 = vpop.permute.xlu0 %2331
      %2333 = vrot.lane.b32.xlu0 %v599, 112
      %v2334 = vpop.permute.xlu0 %2333
      %2335 = vrot.lane.b32.xlu0 %v601, 112
      %v2336 = vpop.permute.xlu0 %2335
      %2337 = vrot.lane.b32.xlu0 %v604, 112
      %v2338 = vpop.permute.xlu0 %2337
      %2339 = vrot.lane.b32.xlu0 %v606, 112
      %v2340 = vpop.permute.xlu0 %2339
      %2341 = vrot.lane.b32.xlu0 %v609, 112
      %v2342 = vpop.permute.xlu0 %2341
      %2343 = vrot.lane.b32.xlu0 %v611, 112
      %v2344 = vpop.permute.xlu0 %2343
      %2345 = vrot.lane.b32.xlu0 %v614, 112
      %v2346 = vpop.permute.xlu0 %2345
      %2347 = vrot.lane.b32.xlu0 %v616, 112
      %v2348 = vpop.permute.xlu0 %2347
      %2349 = vrot.lane.b32.xlu0 %v619, 112
      %v2350 = vpop.permute.xlu0 %2349
      %2351 = vrot.lane.b32.xlu0 %v621, 112
      %v2352 = vpop.permute.xlu0 %2351
      %2353 = vrot.lane.b32.xlu0 %v624, 112
      %v2354 = vpop.permute.xlu0 %2353
      %2355 = vrot.lane.b32.xlu0 %v626, 112
      %v2356 = vpop.permute.xlu0 %2355
      %2357 = vrot.lane.b32.xlu0 %v1234, 112
      %v2358 = vpop.permute.xlu0 %2357
      %2359 = vrot.lane.b32.xlu0 %v1236, 112
      %v2360 = vpop.permute.xlu0 %2359
      %2361 = vrot.lane.b32.xlu0 %v1768, 112
      %v2362 = vpop.permute.xlu0 %2361
      %2363 = vrot.lane.b32.xlu0 %v1770, 112
      %v2364 = vpop.permute.xlu0 %2363
      %2365 = vrot.lane.b32.xlu0 %v2302, 112
      %v2366 = vpop.permute.xlu0 %2365
      %2367 = vrot.lane.b32.xlu0 %v2304, 112
      %v2368 = vpop.permute.xlu0 %2367
      %vm2401 = vcmask 982912
      %2402 = vst.msk [vmem:[#allocation2] sm:$0xff] %vm2401, %v2306
      %2403 = vst.msk [vmem:[#allocation2 + $0x8] sm:$0xff] %vm2401, %v2308
      %2404 = vst.msk [vmem:[#allocation2 + $0x10] sm:$0xff] %vm2401, %v2310
      %2405 = vst.msk [vmem:[#allocation2 + $0x18] sm:$0xff] %vm2401, %v2312
      %2406 = vst.msk [vmem:[#allocation2 + $0x20] sm:$0xff] %vm2401, %v2314
      %2407 = vst.msk [vmem:[#allocation2 + $0x28] sm:$0xff] %vm2401, %v2316
      %2408 = vst.msk [vmem:[#allocation2 + $0x30] sm:$0xff] %vm2401, %v2318
      %2409 = vst.msk [vmem:[#allocation2 + $0x38] sm:$0xff] %vm2401, %v2320
      %2410 = vst.msk [vmem:[#allocation2 + $0x40] sm:$0xff] %vm2401, %v2322
      %2411 = vst.msk [vmem:[#allocation2 + $0x48] sm:$0xff] %vm2401, %v2324
      %2412 = vst.msk [vmem:[#allocation2 + $0x50] sm:$0xff] %vm2401, %v2326
      %2413 = vst.msk [vmem:[#allocation2 + $0x58] sm:$0xff] %vm2401, %v2328
      %2414 = vst.msk [vmem:[#allocation2 + $0x60] sm:$0xff] %vm2401, %v2330
      %2415 = vst.msk [vmem:[#allocation2 + $0x68] sm:$0xff] %vm2401, %v2332
      %2416 = vst.msk [vmem:[#allocation2 + $0x70] sm:$0xff] %vm2401, %v2334
      %2417 = vst.msk [vmem:[#allocation2 + $0x78] sm:$0xff] %vm2401, %v2336
      %2418 = vst.msk [vmem:[#allocation2 + $0x80] sm:$0xff] %vm2401, %v2338
      %2419 = vst.msk [vmem:[#allocation2 + $0x88] sm:$0xff] %vm2401, %v2340
      %2420 = vst.msk [vmem:[#allocation2 + $0x90] sm:$0xff] %vm2401, %v2342
      %2421 = vst.msk [vmem:[#allocation2 + $0x98] sm:$0xff] %vm2401, %v2344
      %2422 = vst.msk [vmem:[#allocation2 + $0xa0] sm:$0xff] %vm2401, %v2346
      %2423 = vst.msk [vmem:[#allocation2 + $0xa8] sm:$0xff] %vm2401, %v2348
      %2424 = vst.msk [vmem:[#allocation2 + $0xb0] sm:$0xff] %vm2401, %v2350
      %2425 = vst.msk [vmem:[#allocation2 + $0xb8] sm:$0xff] %vm2401, %v2352
      %2426 = vst.msk [vmem:[#allocation2 + $0xc0] sm:$0xff] %vm2401, %v2354
      %2427 = vst.msk [vmem:[#allocation2 + $0xc8] sm:$0xff] %vm2401, %v2356
      %2428 = vst.msk [vmem:[#allocation2 + $0xd0] sm:$0xff] %vm2401, %v2358
      %2429 = vst.msk [vmem:[#allocation2 + $0xd8] sm:$0xff] %vm2401, %v2360
      %2430 = vst.msk [vmem:[#allocation2 + $0xe0] sm:$0xff] %vm2401, %v2362
      %2431 = vst.msk [vmem:[#allocation2 + $0xe8] sm:$0xff] %vm2401, %v2364
      %2432 = vst.msk [vmem:[#allocation2 + $0xf0] sm:$0xff] %vm2401, %v2366
      %2433 = vst.msk [vmem:[#allocation2 + $0xf8] sm:$0xff] %vm2401, %v2368
      %v2434 = vrot.slane %v252, 3
      %v2435 = vrot.slane %v253, 3
      %v2436 = vsel %vm756, %v2434, %v2435
      %v2437 = vrot.slane %v254, 3
      %v2438 = vsel %vm756, %v2435, %v2437
      %2439 = vrot.lane.b32.xlu0 %v774, 120
      %v2440 = vpop.permute.xlu0 %2439
      %2441 = vrot.lane.b32.xlu0 %v776, 120
      %v2442 = vpop.permute.xlu0 %2441
      %2443 = vrot.lane.b32.xlu0 %v779, 120
      %v2444 = vpop.permute.xlu0 %2443
      %2445 = vrot.lane.b32.xlu0 %v781, 120
      %v2446 = vpop.permute.xlu0 %2445
      %2447 = vrot.lane.b32.xlu0 %v784, 120
      %v2448 = vpop.permute.xlu0 %2447
      %2449 = vrot.lane.b32.xlu0 %v786, 120
      %v2450 = vpop.permute.xlu0 %2449
      %2451 = vrot.lane.b32.xlu0 %v789, 120
      %v2452 = vpop.permute.xlu0 %2451
      %2453 = vrot.lane.b32.xlu0 %v791, 120
      %v2454 = vpop.permute.xlu0 %2453
      %2455 = vrot.lane.b32.xlu0 %v794, 120
      %v2456 = vpop.permute.xlu0 %2455
      %2457 = vrot.lane.b32.xlu0 %v796, 120
      %v2458 = vpop.permute.xlu0 %2457
      %2459 = vrot.lane.b32.xlu0 %v799, 120
      %v2460 = vpop.permute.xlu0 %2459
      %2461 = vrot.lane.b32.xlu0 %v801, 120
      %v2462 = vpop.permute.xlu0 %2461
      %2463 = vrot.lane.b32.xlu0 %v804, 120
      %v2464 = vpop.permute.xlu0 %2463
      %2465 = vrot.lane.b32.xlu0 %v806, 120
      %v2466 = vpop.permute.xlu0 %2465
      %2467 = vrot.lane.b32.xlu0 %v809, 120
      %v2468 = vpop.permute.xlu0 %2467
      %2469 = vrot.lane.b32.xlu0 %v811, 120
      %v2470 = vpop.permute.xlu0 %2469
      %2471 = vrot.lane.b32.xlu0 %v814, 120
      %v2472 = vpop.permute.xlu0 %2471
      %2473 = vrot.lane.b32.xlu0 %v816, 120
      %v2474 = vpop.permute.xlu0 %2473
      %2475 = vrot.lane.b32.xlu0 %v819, 120
      %v2476 = vpop.permute.xlu0 %2475
      %2477 = vrot.lane.b32.xlu0 %v821, 120
      %v2478 = vpop.permute.xlu0 %2477
      %2479 = vrot.lane.b32.xlu0 %v824, 120
      %v2480 = vpop.permute.xlu0 %2479
      %2481 = vrot.lane.b32.xlu0 %v826, 120
      %v2482 = vpop.permute.xlu0 %2481
      %2483 = vrot.lane.b32.xlu0 %v829, 120
      %v2484 = vpop.permute.xlu0 %2483
      %2485 = vrot.lane.b32.xlu0 %v831, 120
      %v2486 = vpop.permute.xlu0 %2485
      %2487 = vrot.lane.b32.xlu0 %v834, 120
      %v2488 = vpop.permute.xlu0 %2487
      %2489 = vrot.lane.b32.xlu0 %v836, 120
      %v2490 = vpop.permute.xlu0 %2489
      %2491 = vrot.lane.b32.xlu0 %v1368, 120
      %v2492 = vpop.permute.xlu0 %2491
      %2493 = vrot.lane.b32.xlu0 %v1370, 120
      %v2494 = vpop.permute.xlu0 %2493
      %2495 = vrot.lane.b32.xlu0 %v1902, 120
      %v2496 = vpop.permute.xlu0 %2495
      %2497 = vrot.lane.b32.xlu0 %v1904, 120
      %v2498 = vpop.permute.xlu0 %2497
      %2499 = vrot.lane.b32.xlu0 %v2436, 120
      %v2500 = vpop.permute.xlu0 %2499
      %2501 = vrot.lane.b32.xlu0 %v2438, 120
      %v2502 = vpop.permute.xlu0 %2501
      %vm2535 = vcmask 1048512
      %2536 = vst.msk [vmem:[#allocation2] sm:$0xff] %vm2535, %v2440
      %2537 = vst.msk [vmem:[#allocation2 + $0x8] sm:$0xff] %vm2535, %v2442
      %2538 = vst.msk [vmem:[#allocation2 + $0x10] sm:$0xff] %vm2535, %v2444
      %2539 = vst.msk [vmem:[#allocation2 + $0x18] sm:$0xff] %vm2535, %v2446
      %2540 = vst.msk [vmem:[#allocation2 + $0x20] sm:$0xff] %vm2535, %v2448
      %2541 = vst.msk [vmem:[#allocation2 + $0x28] sm:$0xff] %vm2535, %v2450
      %2542 = vst.msk [vmem:[#allocation2 + $0x30] sm:$0xff] %vm2535, %v2452
      %2543 = vst.msk [vmem:[#allocation2 + $0x38] sm:$0xff] %vm2535, %v2454
      %2544 = vst.msk [vmem:[#allocation2 + $0x40] sm:$0xff] %vm2535, %v2456
      %2545 = vst.msk [vmem:[#allocation2 + $0x48] sm:$0xff] %vm2535, %v2458
      %2546 = vst.msk [vmem:[#allocation2 + $0x50] sm:$0xff] %vm2535, %v2460
      %2547 = vst.msk [vmem:[#allocation2 + $0x58] sm:$0xff] %vm2535, %v2462
      %2548 = vst.msk [vmem:[#allocation2 + $0x60] sm:$0xff] %vm2535, %v2464
      %2549 = vst.msk [vmem:[#allocation2 + $0x68] sm:$0xff] %vm2535, %v2466
      %2550 = vst.msk [vmem:[#allocation2 + $0x70] sm:$0xff] %vm2535, %v2468
      %2551 = vst.msk [vmem:[#allocation2 + $0x78] sm:$0xff] %vm2535, %v2470
      %2552 = vst.msk [vmem:[#allocation2 + $0x80] sm:$0xff] %vm2535, %v2472
      %2553 = vst.msk [vmem:[#allocation2 + $0x88] sm:$0xff] %vm2535, %v2474
      %2554 = vst.msk [vmem:[#allocation2 + $0x90] sm:$0xff] %vm2535, %v2476
      %2555 = vst.msk [vmem:[#allocation2 + $0x98] sm:$0xff] %vm2535, %v2478
      %2556 = vst.msk [vmem:[#allocation2 + $0xa0] sm:$0xff] %vm2535, %v2480
      %2557 = vst.msk [vmem:[#allocation2 + $0xa8] sm:$0xff] %vm2535, %v2482
      %2558 = vst.msk [vmem:[#allocation2 + $0xb0] sm:$0xff] %vm2535, %v2484
      %2559 = vst.msk [vmem:[#allocation2 + $0xb8] sm:$0xff] %vm2535, %v2486
      %2560 = vst.msk [vmem:[#allocation2 + $0xc0] sm:$0xff] %vm2535, %v2488
      %2561 = vst.msk [vmem:[#allocation2 + $0xc8] sm:$0xff] %vm2535, %v2490
      %2562 = vst.msk [vmem:[#allocation2 + $0xd0] sm:$0xff] %vm2535, %v2492
      %2563 = vst.msk [vmem:[#allocation2 + $0xd8] sm:$0xff] %vm2535, %v2494
      %2564 = vst.msk [vmem:[#allocation2 + $0xe0] sm:$0xff] %vm2535, %v2496
      %2565 = vst.msk [vmem:[#allocation2 + $0xe8] sm:$0xff] %vm2535, %v2498
      %2566 = vst.msk [vmem:[#allocation2 + $0xf0] sm:$0xff] %vm2535, %v2500
      %2567 = vst.msk [vmem:[#allocation2 + $0xf8] sm:$0xff] %vm2535, %v2502
      %v2568 = vld [vmem:[#allocation2] sm:$0xff]
      %v2569 = vld [vmem:[#allocation2 + $0x8] sm:$0xff]
      %v2570 = vld [vmem:[#allocation2 + $0x10] sm:$0xff]
      %v2571 = vld [vmem:[#allocation2 + $0x18] sm:$0xff]
      %v2572 = vld [vmem:[#allocation2 + $0x20] sm:$0xff]
      %v2573 = vld [vmem:[#allocation2 + $0x28] sm:$0xff]
      %v2574 = vld [vmem:[#allocation2 + $0x30] sm:$0xff]
      %v2575 = vld [vmem:[#allocation2 + $0x38] sm:$0xff]
      %v2576 = vld [vmem:[#allocation2 + $0x40] sm:$0xff]
      %v2577 = vld [vmem:[#allocation2 + $0x48] sm:$0xff]
      %v2578 = vld [vmem:[#allocation2 + $0x50] sm:$0xff]
      %v2579 = vld [vmem:[#allocation2 + $0x58] sm:$0xff]
      %v2580 = vld [vmem:[#allocation2 + $0x60] sm:$0xff]
      %v2581 = vld [vmem:[#allocation2 + $0x68] sm:$0xff]
      %v2582 = vld [vmem:[#allocation2 + $0x70] sm:$0xff]
      %v2583 = vld [vmem:[#allocation2 + $0x78] sm:$0xff]
      %v2584 = vld [vmem:[#allocation2 + $0x80] sm:$0xff]
      %v2585 = vld [vmem:[#allocation2 + $0x88] sm:$0xff]
      %v2586 = vld [vmem:[#allocation2 + $0x90] sm:$0xff]
      %v2587 = vld [vmem:[#allocation2 + $0x98] sm:$0xff]
      %v2588 = vld [vmem:[#allocation2 + $0xa0] sm:$0xff]
      %v2589 = vld [vmem:[#allocation2 + $0xa8] sm:$0xff]
      %v2590 = vld [vmem:[#allocation2 + $0xb0] sm:$0xff]
      %v2591 = vld [vmem:[#allocation2 + $0xb8] sm:$0xff]
      %v2592 = vld [vmem:[#allocation2 + $0xc0] sm:$0xff]
      %v2593 = vld [vmem:[#allocation2 + $0xc8] sm:$0xff]
      %v2594 = vld [vmem:[#allocation2 + $0xd0] sm:$0xff]
      %v2595 = vld [vmem:[#allocation2 + $0xd8] sm:$0xff]
      %v2596 = vld [vmem:[#allocation2 + $0xe0] sm:$0xff]
      %v2597 = vld [vmem:[#allocation2 + $0xe8] sm:$0xff]
      %v2598 = vld [vmem:[#allocation2 + $0xf0] sm:$0xff]
      %v2599 = vld [vmem:[#allocation2 + $0xf8] sm:$0xff]
      %v2600 = vld [vmem:[%s1] sm:$0xff]
      %v2601 = vld [vmem:[%s1 + $0x8] sm:$0xff]
      %v2602 = vld [vmem:[%s1 + $0x10] sm:$0xff]
      %v2603 = vld [vmem:[%s1 + $0x18] sm:$0xff]
      %v2604 = vld [vmem:[%s1 + $0x20] sm:$0xff]
      %v2605 = vld [vmem:[%s1 + $0x28] sm:$0xff]
      %v2606 = vld [vmem:[%s1 + $0x30] sm:$0xff]
      %v2607 = vld [vmem:[%s1 + $0x38] sm:$0xff]
      %v2608 = vld [vmem:[%s1 + $0x40] sm:$0xff]
      %v2609 = vld [vmem:[%s1 + $0x48] sm:$0xff]
      %v2610 = vld [vmem:[%s1 + $0x50] sm:$0xff]
      %v2611 = vld [vmem:[%s1 + $0x58] sm:$0xff]
      %v2612 = vld [vmem:[%s1 + $0x60] sm:$0xff]
      %v2613 = vld [vmem:[%s1 + $0x68] sm:$0xff]
      %v2614 = vld [vmem:[%s1 + $0x70] sm:$0xff]
      %v2615 = vld [vmem:[%s1 + $0x78] sm:$0xff]
      %2616 = vmatprep.subr.mxu0 0.0
      %2617 = vmatpush1.msra.mxu0 %v2600
      %2618 = vmatprep.subr.mxu0 0.0
      %2619 = vmatpush1.msra.mxu0 %v2601
      %2620 = vmatprep.subr.mxu0 0.0
      %2621 = vmatpush1.msra.mxu0 %v2602
      %2622 = vmatprep.subr.mxu0 0.0
      %2623 = vmatpush1.msra.mxu0 %v2603
      %2624 = vmatprep.subr.mxu0 0.0
      %2625 = vmatpush1.msra.mxu0 %v2604
      %2626 = vmatprep.subr.mxu0 0.0
      %2627 = vmatpush1.msra.mxu0 %v2605
      %2628 = vmatprep.subr.mxu0 0.0
      %2629 = vmatpush1.msra.mxu0 %v2606
      %2630 = vmatprep.subr.mxu0 0.0
      %2631 = vmatpush1.msra.mxu0 %v2607
      %2632 = vmatprep.subr.mxu0 0.0
      %2633 = vmatpush1.msra.mxu0 %v2608
      %2634 = vmatprep.subr.mxu0 0.0
      %2635 = vmatpush1.msra.mxu0 %v2609
      %2636 = vmatprep.subr.mxu0 0.0
      %2637 = vmatpush1.msra.mxu0 %v2610
      %2638 = vmatprep.subr.mxu0 0.0
      %2639 = vmatpush1.msra.mxu0 %v2611
      %2640 = vmatprep.subr.mxu0 0.0
      %2641 = vmatpush1.msra.mxu0 %v2612
      %2642 = vmatprep.subr.mxu0 0.0
      %2643 = vmatpush1.msra.mxu0 %v2613
      %2644 = vmatprep.subr.mxu0 0.0
      %2645 = vmatpush1.msra.mxu0 %v2614
      %2646 = vmatprep.subr.mxu0 0.0
      %2647 = vmatpush1.msra.mxu0 %v2615
      %2648 = vmatprep.subr.mxu0 0.0
      %2649 = vmatpush1.msra.mxu0 0.0
      %2650 = vmatprep.subr.mxu0 0.0
      %2651 = vmatpush1.msra.mxu0 0.0
      %2652 = vmatprep.subr.mxu0 0.0
      %2653 = vmatpush1.msra.mxu0 0.0
      %2654 = vmatprep.subr.mxu0 0.0
      %2655 = vmatpush1.msra.mxu0 0.0
      %2656 = vmatprep.subr.mxu0 0.0
      %2657 = vmatpush1.msra.mxu0 0.0
      %2658 = vmatprep.subr.mxu0 0.0
      %2659 = vmatpush1.msra.mxu0 0.0
      %2660 = vmatprep.subr.mxu0 0.0
      %2661 = vmatpush1.msra.mxu0 0.0
      %2662 = vmatprep.subr.mxu0 0.0
      %2663 = vmatpush1.msra.mxu0 0.0
      %2664 = vmatprep.subr.mxu0 0.0
      %2665 = vmatpush1.msra.mxu0 0.0
      %2666 = vmatprep.subr.mxu0 0.0
      %2667 = vmatpush1.msra.mxu0 0.0
      %2668 = vmatprep.subr.mxu0 0.0
      %2669 = vmatpush1.msra.mxu0 0.0
      %2670 = vmatprep.subr.mxu0 0.0
      %2671 = vmatpush1.msra.mxu0 0.0
      %2672 = vmatprep.subr.mxu0 0.0
      %2673 = vmatpush1.msra.mxu0 0.0
      %2674 = vmatprep.subr.mxu0 0.0
      %2675 = vmatpush1.msra.mxu0 0.0
      %2676 = vmatprep.subr.mxu0 0.0
      %2677 = vmatpush1.msra.mxu0 0.0
      %2678 = vmatprep.subr.mxu0 0.0
      %2679 = vmatpush1.msra.mxu0 0.0
      %2680 = vmatprep.mubr.f32.mxu0 0.0
      %2681 = vmatmul.mubr.f32.gmra.mrb[0].mxu0 %v2568
      %v2682 = vpop.f32.mrb[0].mxu0
      %v2683 = vadd.f32 0.0, %v2682
      %v2684 = vpop.f32.mrb[0].mxu0
      %2685 = vmatprep.mubr.f32.mxu0 0.0
      %2686 = vmatmul.mubr.f32.gmra.mrb[0].mxu0 %v2569
      %v2687 = vpop.f32.mrb[0].mxu0
      %v2688 = vadd.f32 0.0, %v2687
      %v2689 = vpop.f32.mrb[0].mxu0
      %2690 = vmatprep.mubr.f32.mxu0 0.0
      %2691 = vmatmul.mubr.f32.gmra.mrb[0].mxu0 %v2570
      %v2692 = vpop.f32.mrb[0].mxu0
      %v2693 = vadd.f32 0.0, %v2692
      %v2694 = vpop.f32.mrb[0].mxu0
      %2695 = vmatprep.mubr.f32.mxu0 0.0
      %2696 = vmatmul.mubr.f32.gmra.mrb[0].mxu0 %v2571
      %v2697 = vpop.f32.mrb[0].mxu0
      %v2698 = vadd.f32 0.0, %v2697
      %v2699 = vpop.f32.mrb[0].mxu0
      %2700 = vmatprep.mubr.f32.mxu0 0.0
      %2701 = vmatmul.mubr.f32.gmra.mrb[0].mxu0 %v2572
      %v2702 = vpop.f32.mrb[0].mxu0
      %v2703 = vadd.f32 0.0, %v2702
      %v2704 = vpop.f32.mrb[0].mxu0
      %2705 = vmatprep.mubr.f32.mxu0 0.0
      %2706 = vmatmul.mubr.f32.gmra.mrb[0].mxu0 %v2573
      %v2707 = vpop.f32.mrb[0].mxu0
      %v2708 = vadd.f32 0.0, %v2707
      %v2709 = vpop.f32.mrb[0].mxu0
      %2710 = vmatprep.mubr.f32.mxu0 0.0
      %2711 = vmatmul.mubr.f32.gmra.mrb[0].mxu0 %v2574
      %v2712 = vpop.f32.mrb[0].mxu0
      %v2713 = vadd.f32 0.0, %v2712
      %v2714 = vpop.f32.mrb[0].mxu0
      %2715 = vmatprep.mubr.f32.mxu0 0.0
      %2716 = vmatmul.mubr.f32.gmra.mrb[0].mxu0 %v2575
      %v2717 = vpop.f32.mrb[0].mxu0
      %v2718 = vadd.f32 0.0, %v2717
      %v2719 = vpop.f32.mrb[0].mxu0
      %2720 = vmatprep.mubr.f32.mxu0 0.0
      %2721 = vmatmul.mubr.f32.gmra.mrb[0].mxu0 %v2576
      %v2722 = vpop.f32.mrb[0].mxu0
      %v2723 = vadd.f32 0.0, %v2722
      %v2724 = vpop.f32.mrb[0].mxu0
      %2725 = vmatprep.mubr.f32.mxu0 0.0
      %2726 = vmatmul.mubr.f32.gmra.mrb[0].mxu0 %v2577
      %v2727 = vpop.f32.mrb[0].mxu0
      %v2728 = vadd.f32 0.0, %v2727
      %v2729 = vpop.f32.mrb[0].mxu0
      %2730 = vmatprep.mubr.f32.mxu0 0.0
      %2731 = vmatmul.mubr.f32.gmra.mrb[0].mxu0 %v2578
      %v2732 = vpop.f32.mrb[0].mxu0
      %v2733 = vadd.f32 0.0, %v2732
      %v2734 = vpop.f32.mrb[0].mxu0
      %2735 = vmatprep.mubr.f32.mxu0 0.0
      %2736 = vmatmul.mubr.f32.gmra.mrb[0].mxu0 %v2579
      %v2737 = vpop.f32.mrb[0].mxu0
      %v2738 = vadd.f32 0.0, %v2737
      %v2739 = vpop.f32.mrb[0].mxu0
      %2740 = vmatprep.mubr.f32.mxu0 0.0
      %2741 = vmatmul.mubr.f32.gmra.mrb[0].mxu0 %v2580
      %v2742 = vpop.f32.mrb[0].mxu0
      %v2743 = vadd.f32 0.0, %v2742
      %v2744 = vpop.f32.mrb[0].mxu0
      %2745 = vmatprep.mubr.f32.mxu0 0.0
      %2746 = vmatmul.mubr.f32.gmra.mrb[0].mxu0 %v2581
      %v2747 = vpop.f32.mrb[0].mxu0
      %v2748 = vadd.f32 0.0, %v2747
      %v2749 = vpop.f32.mrb[0].mxu0
      %2750 = vmatprep.mubr.f32.mxu0 0.0
      %2751 = vmatmul.mubr.f32.gmra.mrb[0].mxu0 %v2582
      %v2752 = vpop.f32.mrb[0].mxu0
      %v2753 = vadd.f32 0.0, %v2752
      %v2754 = vpop.f32.mrb[0].mxu0
      %2755 = vmatprep.mubr.f32.mxu0 0.0
      %2756 = vmatmul.mubr.f32.gmra.mrb[0].mxu0 %v2583
      %v2757 = vpop.f32.mrb[0].mxu0
      %v2758 = vadd.f32 0.0, %v2757
      %v2759 = vpop.f32.mrb[0].mxu0
      %2760 = vmatprep.mubr.f32.mxu0 0.0
      %2761 = vmatmul.mubr.f32.gmra.mrb[0].mxu0 %v2584
      %v2762 = vpop.f32.mrb[0].mxu0
      %v2763 = vadd.f32 0.0, %v2762
      %v2764 = vpop.f32.mrb[0].mxu0
      %2765 = vmatprep.mubr.f32.mxu0 0.0
      %2766 = vmatmul.mubr.f32.gmra.mrb[0].mxu0 %v2585
      %v2767 = vpop.f32.mrb[0].mxu0
      %v2768 = vadd.f32 0.0, %v2767
      %v2769 = vpop.f32.mrb[0].mxu0
      %2770 = vmatprep.mubr.f32.mxu0 0.0
      %2771 = vmatmul.mubr.f32.gmra.mrb[0].mxu0 %v2586
      %v2772 = vpop.f32.mrb[0].mxu0
      %v2773 = vadd.f32 0.0, %v2772
      %v2774 = vpop.f32.mrb[0].mxu0
      %2775 = vmatprep.mubr.f32.mxu0 0.0
      %2776 = vmatmul.mubr.f32.gmra.mrb[0].mxu0 %v2587
      %v2777 = vpop.f32.mrb[0].mxu0
      %v2778 = vadd.f32 0.0, %v2777
      %v2779 = vpop.f32.mrb[0].mxu0
      %2780 = vmatprep.mubr.f32.mxu0 0.0
      %2781 = vmatmul.mubr.f32.gmra.mrb[0].mxu0 %v2588
      %v2782 = vpop.f32.mrb[0].mxu0
      %v2783 = vadd.f32 0.0, %v2782
      %v2784 = vpop.f32.mrb[0].mxu0
      %2785 = vmatprep.mubr.f32.mxu0 0.0
      %2786 = vmatmul.mubr.f32.gmra.mrb[0].mxu0 %v2589
      %v2787 = vpop.f32.mrb[0].mxu0
      %v2788 = vadd.f32 0.0, %v2787
      %v2789 = vpop.f32.mrb[0].mxu0
      %2790 = vmatprep.mubr.f32.mxu0 0.0
      %2791 = vmatmul.mubr.f32.gmra.mrb[0].mxu0 %v2590
      %v2792 = vpop.f32.mrb[0].mxu0
      %v2793 = vadd.f32 0.0, %v2792
      %v2794 = vpop.f32.mrb[0].mxu0
      %2795 = vmatprep.mubr.f32.mxu0 0.0
      %2796 = vmatmul.mubr.f32.gmra.mrb[0].mxu0 %v2591
      %v2797 = vpop.f32.mrb[0].mxu0
      %v2798 = vadd.f32 0.0, %v2797
      %v2799 = vpop.f32.mrb[0].mxu0
      %2800 = vmatprep.mubr.f32.mxu0 0.0
      %2801 = vmatmul.mubr.f32.gmra.mrb[0].mxu0 %v2592
      %v2802 = vpop.f32.mrb[0].mxu0
      %v2803 = vadd.f32 0.0, %v2802
      %v2804 = vpop.f32.mrb[0].mxu0
      %2805 = vmatprep.mubr.f32.mxu0 0.0
      %2806 = vmatmul.mubr.f32.gmra.mrb[0].mxu0 %v2593
      %v2807 = vpop.f32.mrb[0].mxu0
      %v2808 = vadd.f32 0.0, %v2807
      %v2809 = vpop.f32.mrb[0].mxu0
      %2810 = vmatprep.mubr.f32.mxu0 0.0
      %2811 = vmatmul.mubr.f32.gmra.mrb[0].mxu0 %v2594
      %v2812 = vpop.f32.mrb[0].mxu0
      %v2813 = vadd.f32 0.0, %v2812
      %v2814 = vpop.f32.mrb[0].mxu0
      %2815 = vmatprep.mubr.f32.mxu0 0.0
      %2816 = vmatmul.mubr.f32.gmra.mrb[0].mxu0 %v2595
      %v2817 = vpop.f32.mrb[0].mxu0
      %v2818 = vadd.f32 0.0, %v2817
      %v2819 = vpop.f32.mrb[0].mxu0
      %2820 = vmatprep.mubr.f32.mxu0 0.0
      %2821 = vmatmul.mubr.f32.gmra.mrb[0].mxu0 %v2596
      %v2822 = vpop.f32.mrb[0].mxu0
      %v2823 = vadd.f32 0.0, %v2822
      %v2824 = vpop.f32.mrb[0].mxu0
      %2825 = vmatprep.mubr.f32.mxu0 0.0
      %2826 = vmatmul.mubr.f32.gmra.mrb[0].mxu0 %v2597
      %v2827 = vpop.f32.mrb[0].mxu0
      %v2828 = vadd.f32 0.0, %v2827
      %v2829 = vpop.f32.mrb[0].mxu0
      %2830 = vmatprep.mubr.f32.mxu0 0.0
      %2831 = vmatmul.mubr.f32.gmra.mrb[0].mxu0 %v2598
      %v2832 = vpop.f32.mrb[0].mxu0
      %v2833 = vadd.f32 0.0, %v2832
      %v2834 = vpop.f32.mrb[0].mxu0
      %2835 = vmatprep.mubr.f32.mxu0 0.0
      %2836 = vmatmul.mubr.f32.gmra.mrb[0].mxu0 %v2599
      %v2837 = vpop.f32.mrb[0].mxu0
      %v2838 = vadd.f32 0.0, %v2837
      %v2839 = vpop.f32.mrb[0].mxu0
      %2840 = vdwg.mxu0
      %v2841 = vld [vmem:[%s2] sm:$0x1]
      %v2843 = vlaneseq
      %v2844 = vshrl.u32 %v2843, 7
      %v2845 = vsub.s32 0, %v2844
      %v2846 = vrot.slane %v2841, %v2845
      %v2848 = vmul.f32 %v2683, %v2846
      %v2849 = vmul.f32 %v2688, %v2846
      %v2850 = vmul.f32 %v2693, %v2846
      %v2851 = vmul.f32 %v2698, %v2846
      %v2852 = vmul.f32 %v2703, %v2846
      %v2853 = vmul.f32 %v2708, %v2846
      %v2854 = vmul.f32 %v2713, %v2846
      %v2855 = vmul.f32 %v2718, %v2846
      %v2856 = vmul.f32 %v2723, %v2846
      %v2857 = vmul.f32 %v2728, %v2846
      %v2858 = vmul.f32 %v2733, %v2846
      %v2859 = vmul.f32 %v2738, %v2846
      %v2860 = vmul.f32 %v2743, %v2846
      %v2861 = vmul.f32 %v2748, %v2846
      %v2862 = vmul.f32 %v2753, %v2846
      %v2863 = vmul.f32 %v2758, %v2846
      %v2864 = vmul.f32 %v2763, %v2846
      %v2865 = vmul.f32 %v2768, %v2846
      %v2866 = vmul.f32 %v2773, %v2846
      %v2867 = vmul.f32 %v2778, %v2846
      %v2868 = vmul.f32 %v2783, %v2846
      %v2869 = vmul.f32 %v2788, %v2846
      %v2870 = vmul.f32 %v2793, %v2846
      %v2871 = vmul.f32 %v2798, %v2846
      %v2872 = vmul.f32 %v2803, %v2846
      %v2873 = vmul.f32 %v2808, %v2846
      %v2874 = vmul.f32 %v2813, %v2846
      %v2875 = vmul.f32 %v2818, %v2846
      %v2876 = vmul.f32 %v2823, %v2846
      %v2877 = vmul.f32 %v2828, %v2846
      %v2878 = vmul.f32 %v2833, %v2846
      %v2879 = vmul.f32 %v2838, %v2846
      %v2880 = vld [vmem:[%s3] sm:$0x1]
      %v2882 = vlaneseq
      %v2883 = vshrl.u32 %v2882, 7
      %v2884 = vsub.s32 0, %v2883
      %v2885 = vrot.slane %v2880, %v2884
      %v2887 = vadd.f32 %v2848, %v2885
      %v2888 = vadd.f32 %v2849, %v2885
      %v2889 = vadd.f32 %v2850, %v2885
      %v2890 = vadd.f32 %v2851, %v2885
      %v2891 = vadd.f32 %v2852, %v2885
      %v2892 = vadd.f32 %v2853, %v2885
      %v2893 = vadd.f32 %v2854, %v2885
      %v2894 = vadd.f32 %v2855, %v2885
      %v2895 = vadd.f32 %v2856, %v2885
      %v2896 = vadd.f32 %v2857, %v2885
      %v2897 = vadd.f32 %v2858, %v2885
      %v2898 = vadd.f32 %v2859, %v2885
      %v2899 = vadd.f32 %v2860, %v2885
      %v2900 = vadd.f32 %v2861, %v2885
      %v2901 = vadd.f32 %v2862, %v2885
      %v2902 = vadd.f32 %v2863, %v2885
      %v2903 = vadd.f32 %v2864, %v2885
      %v2904 = vadd.f32 %v2865, %v2885
      %v2905 = vadd.f32 %v2866, %v2885
      %v2906 = vadd.f32 %v2867, %v2885
      %v2907 = vadd.f32 %v2868, %v2885
      %v2908 = vadd.f32 %v2869, %v2885
      %v2909 = vadd.f32 %v2870, %v2885
      %v2910 = vadd.f32 %v2871, %v2885
      %v2911 = vadd.f32 %v2872, %v2885
      %v2912 = vadd.f32 %v2873, %v2885
      %v2913 = vadd.f32 %v2874, %v2885
      %v2914 = vadd.f32 %v2875, %v2885
      %v2915 = vadd.f32 %v2876, %v2885
      %v2916 = vadd.f32 %v2877, %v2885
      %v2917 = vadd.f32 %v2878, %v2885
      %v2918 = vadd.f32 %v2879, %v2885
      %v2919 = vmax.f32 %v2887, 0.0
      %v2920 = vmax.f32 %v2888, 0.0
      %v2921 = vmax.f32 %v2889, 0.0
      %v2922 = vmax.f32 %v2890, 0.0
      %v2923 = vmax.f32 %v2891, 0.0
      %v2924 = vmax.f32 %v2892, 0.0
      %v2925 = vmax.f32 %v2893, 0.0
      %v2926 = vmax.f32 %v2894, 0.0
      %v2927 = vmax.f32 %v2895, 0.0
      %v2928 = vmax.f32 %v2896, 0.0
      %v2929 = vmax.f32 %v2897, 0.0
      %v2930 = vmax.f32 %v2898, 0.0
      %v2931 = vmax.f32 %v2899, 0.0
      %v2932 = vmax.f32 %v2900, 0.0
      %v2933 = vmax.f32 %v2901, 0.0
      %v2934 = vmax.f32 %v2902, 0.0
      %v2935 = vmax.f32 %v2903, 0.0
      %v2936 = vmax.f32 %v2904, 0.0
      %v2937 = vmax.f32 %v2905, 0.0
      %v2938 = vmax.f32 %v2906, 0.0
      %v2939 = vmax.f32 %v2907, 0.0
      %v2940 = vmax.f32 %v2908, 0.0
      %v2941 = vmax.f32 %v2909, 0.0
      %v2942 = vmax.f32 %v2910, 0.0
      %v2943 = vmax.f32 %v2911, 0.0
      %v2944 = vmax.f32 %v2912, 0.0
      %v2945 = vmax.f32 %v2913, 0.0
      %v2946 = vmax.f32 %v2914, 0.0
      %v2947 = vmax.f32 %v2915, 0.0
      %v2948 = vmax.f32 %v2916, 0.0
      %v2949 = vmax.f32 %v2917, 0.0
      %v2950 = vmax.f32 %v2918, 0.0
      %2951 = vst [vmem:[%s197] sm:$0xff] %v2919
      %2952 = vst [vmem:[%s197 + $0x8] sm:$0xff] %v2920
      %2953 = vst [vmem:[%s197 + $0x10] sm:$0xff] %v2921
      %2954 = vst [vmem:[%s197 + $0x18] sm:$0xff] %v2922
      %2955 = vst [vmem:[%s197 + $0x20] sm:$0xff] %v2923
      %2956 = vst [vmem:[%s197 + $0x28] sm:$0xff] %v2924
      %2957 = vst [vmem:[%s197 + $0x30] sm:$0xff] %v2925
      %2958 = vst [vmem:[%s197 + $0x38] sm:$0xff] %v2926
      %2959 = vst [vmem:[%s197 + $0x40] sm:$0xff] %v2927
      %2960 = vst [vmem:[%s197 + $0x48] sm:$0xff] %v2928
      %2961 = vst [vmem:[%s197 + $0x50] sm:$0xff] %v2929
      %2962 = vst [vmem:[%s197 + $0x58] sm:$0xff] %v2930
      %2963 = vst [vmem:[%s197 + $0x60] sm:$0xff] %v2931
      %2964 = vst [vmem:[%s197 + $0x68] sm:$0xff] %v2932
      %2965 = vst [vmem:[%s197 + $0x70] sm:$0xff] %v2933
      %2966 = vst [vmem:[%s197 + $0x78] sm:$0xff] %v2934
      %2967 = vst [vmem:[%s197 + $0x80] sm:$0xff] %v2935
      %2968 = vst [vmem:[%s197 + $0x88] sm:$0xff] %v2936
      %2969 = vst [vmem:[%s197 + $0x90] sm:$0xff] %v2937
      %2970 = vst [vmem:[%s197 + $0x98] sm:$0xff] %v2938
      %2971 = vst [vmem:[%s197 + $0xa0] sm:$0xff] %v2939
      %2972 = vst [vmem:[%s197 + $0xa8] sm:$0xff] %v2940
      %2973 = vst [vmem:[%s197 + $0xb0] sm:$0xff] %v2941
      %2974 = vst [vmem:[%s197 + $0xb8] sm:$0xff] %v2942
      %2975 = vst [vmem:[%s197 + $0xc0] sm:$0xff] %v2943
      %2976 = vst [vmem:[%s197 + $0xc8] sm:$0xff] %v2944
      %2977 = vst [vmem:[%s197 + $0xd0] sm:$0xff] %v2945
      %2978 = vst [vmem:[%s197 + $0xd8] sm:$0xff] %v2946
      %2979 = vst [vmem:[%s197 + $0xe0] sm:$0xff] %v2947
      %2980 = vst [vmem:[%s197 + $0xe8] sm:$0xff] %v2948
      %2981 = vst [vmem:[%s197 + $0xf0] sm:$0xff] %v2949
      %2982 = vst [vmem:[%s197 + $0xf8] sm:$0xff] %v2950
      %p2983 = scmp.lt.s32.totalorder %s15, 1
      %s2984 = scalar_select %p2983, %s15, 1
      %s2985 = smul.addr %s2984, 32
      %s2986 = smul.addr %s2985, 8
      %s2987 = scalar_lea.vmem %s4, %s2986
      // Predicated region
      $region37: #{conv_transpose2d_bn_ac2.1} parent=35 // pred_check
        %p2988 = pneg %p122
      $region38: #{conv_transpose2d_bn_ac2.1} parent=35 // pred_check_branch
        %2990 = sbr.rel (%p2988) target = $region40
      $region39: #{conv_transpose2d_bn_ac2.1} parent=35 // pred_region
        _
      $region40: #{conv_transpose2d_bn_ac2.1} parent=35 // pred_fallthru
        _
    $region36: #{conv_transpose2d_bn_ac2.1} parent=5 // pred_fallthru
      _
    %p2991 = scmp.le.s32.totalorder 2, %s10
    // Predicated region
    $region41: #{conv_transpose2d_bn_ac2.1} parent=5 // pred_check
      %p2992 = pneg %p2991
    $region42: #{conv_transpose2d_bn_ac2.1} parent=5 // pred_check_branch
      %2994 = sbr.rel (%p2992) target = $region44
    $region43: #{conv_transpose2d_bn_ac2.1} parent=5 // pred_region
      %s2995 = ssub.s32 %s10, 2
      // Predicated region
      $region45: #{conv_transpose2d_bn_ac2.1} parent=43 // pred_check
        %p2996 = pneg %p128
      $region46: #{conv_transpose2d_bn_ac2.1} parent=43 // pred_check_branch
        %2998 = sbr.rel (%p2996) target = $region48
      $region47: #{conv_transpose2d_bn_ac2.1} parent=43 // pred_region
        %p2999 = scmp.lt.s32.totalorder %s16, 1
        %s3000 = scalar_select %p2999, %s16, 1
        %s3001 = smul.addr %s3000, 32
        %s3002 = smul.addr %s3001, 8
        %s3003 = scalar_lea.vmem %s4, %s3002
      $region48: #{conv_transpose2d_bn_ac2.1} parent=43 // pred_fallthru
        _
    $region44: #{conv_transpose2d_bn_ac2.1} parent=5 // pred_fallthru
      _
  $region6: #{conv_transpose2d_bn_ac2.1} parent=0 // loop_footer
    %s14 = sadd.s32 1, %s10
  $region7: #{conv_transpose2d_bn_ac2.1} parent=0 // loop_footer_branch
    %9 = sbr.rel target = $region3
  $region8: #{conv_transpose2d_bn_ac2.1} parent=0 // loop_exit
    _

</llo_original>
